<compile_context>
chip_gen: v7x
topology: tpu7x:2x2x1
jax: 0.10.0
libtpu: 0.0.40
codegen_flags: <defaults>
</compile_context>

<pallas_src>
import jax
import jax.numpy as jnp
import numpy as np
from jax import lax
from jax.experimental import pallas as pl
from jax.experimental.pallas import tpu as pltpu

# --- model hyper-parameters (small, consistent with the module) -------------
EMBED = 32            # embed_size
HEADS = 4             # heads
HEAD_DIM = EMBED // HEADS
FWD_EXP = 4           # forward_expansion
FFN = FWD_EXP * EMBED  # = 128
EPS = 1e-5            # nn.LayerNorm default eps


def _layernorm(x, gamma, beta):
    mean = jnp.mean(x, axis=-1, keepdims=True)
    var = jnp.mean((x - mean) ** 2, axis=-1, keepdims=True)   # population var
    return (x - mean) * lax.rsqrt(var + EPS) * gamma + beta


# --- Pallas kernel: whole encoder stack for ONE batch element ---------------
def encoder_kernel(x_ref, mask_ref, wqkv_ref, wo_ref, w1_ref, w2_ref, vec_ref,
                   o_ref):
    S, E = x_ref.shape
    L = wqkv_ref.shape[0]
    H, D = HEADS, HEAD_DIM

    x = x_ref[...]                                   # (S, E) f32, stays resident
    # Additive mask bias built in-kernel from the raw mask (no wrapper-side
    # where() and no extra (N,S,S) f32 bias tensor in HBM).
    bias = jnp.where(mask_ref[...] == 0.0,
                     jnp.float32(-1e20), jnp.float32(0.0))       # (S, S)

    for l in range(L):                               # static unroll over layers
        vecs = vec_ref[l]                            # (8, 128) packed params, f32
        bo = vecs[0:1, 0:E]
        g1 = vecs[1:2, 0:E]
        be1 = vecs[2:3, 0:E]
        g2 = vecs[3:4, 0:E]
        be2 = vecs[4:5, 0:E]
        bf1 = vecs[5:6, :]                           # (1, FFN)
        bf2 = vecs[6:7, 0:E]

        # Fused Q/K/V projection for all heads (block-diagonal bf16 weights,
        # softmax scale pre-folded into the Q columns); f32 accumulation.
        qkv = jnp.dot(x.astype(jnp.bfloat16), wqkv_ref[l],
                      preferred_element_type=jnp.float32)        # (S, 3E) f32

        q = qkv[:, 0 * E:1 * E].reshape(S, H, D)
        k = qkv[:, 1 * E:2 * E].reshape(S, H, D)
        v = qkv[:, 2 * E:3 * E].reshape(S, H, D)

        # Attention for all heads in one batched einsum; bias added once.
        energy = jnp.einsum('qhd,khd->hqk',
                            q.astype(jnp.bfloat16), k.astype(jnp.bfloat16),
                            preferred_element_type=jnp.float32)  # (H, S, S)
        energy = energy + bias[None, :, :]
        m = jnp.max(energy, axis=-1, keepdims=True)
        p = jnp.exp(energy - m)                                  # f32 softmax
        attn = p * pl.reciprocal(jnp.sum(p, axis=-1, keepdims=True),
                                 approx=True)

        ctx = jnp.einsum('hqk,khd->qhd',
                         attn.astype(jnp.bfloat16), v.astype(jnp.bfloat16),
                         preferred_element_type=jnp.float32)     # (S, H, D)

        attn_out = jnp.dot(ctx.reshape(S, E).astype(jnp.bfloat16), wo_ref[l],
                           preferred_element_type=jnp.float32) + bo

        # residual + norm1 (f32)
        x1 = _layernorm(attn_out + x, g1, be1)

        # feed forward (bf16 MXU, f32 accumulate / bias / relu)
        hdn = jnp.maximum(
            jnp.dot(x1.astype(jnp.bfloat16), w1_ref[l],
                    preferred_element_type=jnp.float32) + bf1, 0.0)
        ff = jnp.dot(hdn.astype(jnp.bfloat16), w2_ref[l],
                     preferred_element_type=jnp.float32) + bf2

        # residual + norm2 (dropout = identity in eval mode)
        x = _layernorm(ff + x1, g2, be2)

    o_ref[...] = x


def encoder_pallas(x, mask, wqkv, wo, w1, w2, vecs):
    N, S, E = x.shape
    L = wqkv.shape[0]

    return pl.pallas_call(
        encoder_kernel,
        out_shape=jax.ShapeDtypeStruct((N, S, E), jnp.float32),
        grid_spec=pltpu.PrefetchScalarGridSpec(
            num_scalar_prefetch=0,
            grid=(N,),   # one independent batch element per step -> megacore-shardable
            in_specs=[
                pl.BlockSpec((None, S, E), lambda b: (b, 0, 0)),          # activations
                pl.BlockSpec((None, S, S), lambda b: (b, 0, 0)),          # raw mask
                pl.BlockSpec((L, E, 3 * E), lambda b: (0, 0, 0)),         # fused QKV (bf16, resident)
                pl.BlockSpec((L, E, E), lambda b: (0, 0, 0)),             # Wo^T (bf16, resident)
                pl.BlockSpec((L, E, FFN), lambda b: (0, 0, 0)),           # W1^T (bf16, resident)
                pl.BlockSpec((L, FFN, E), lambda b: (0, 0, 0)),           # W2^T (bf16, resident)
                pl.BlockSpec((L, 8, 128), lambda b: (0, 0, 0)),           # packed biases / LN params (f32)
            ],
            out_specs=pl.BlockSpec((None, S, E), lambda b: (b, 0, 0)),
        ),
        compiler_params=pltpu.CompilerParams(
            dimension_semantics=("parallel",)),
    )(x, mask, wqkv, wo, w1, w2, vecs)


# --- host-side parameter preparation (done once) -----------------------------
def prepare_params(params):
    scale = jnp.float32(1.0 / np.sqrt(EMBED))   # folded into Q weight columns
    eye_h = jnp.eye(HEADS, dtype=jnp.float32)
    wqkv, wo, w1, w2, vecs = [], [], [], [], []
    for layer in params["layers"]:
        bd_q = jnp.kron(eye_h, layer["wq_t"] * scale)   # (E, E) block-diagonal
        bd_k = jnp.kron(eye_h, layer["wk_t"])
        bd_v = jnp.kron(eye_h, layer["wv_t"])
        wqkv.append(jnp.concatenate([bd_q, bd_k, bd_v], axis=1))   # (E, 3E)
        wo.append(layer["wo_t"])
        w1.append(layer["w1_t"])
        w2.append(layer["w2_t"])
        v = jnp.zeros((8, 128), jnp.float32)
        v = v.at[0, :EMBED].set(layer["bo"].reshape(-1))
        v = v.at[1, :EMBED].set(layer["g1"].reshape(-1))
        v = v.at[2, :EMBED].set(layer["be1"].reshape(-1))
        v = v.at[3, :EMBED].set(layer["g2"].reshape(-1))
        v = v.at[4, :EMBED].set(layer["be2"].reshape(-1))
        v = v.at[5, :FFN].set(layer["bf1"].reshape(-1))
        v = v.at[6, :EMBED].set(layer["bf2"].reshape(-1))
        vecs.append(v)
    return {
        # matmul weights in bf16 (MXU peak dtype on v5e/v6e/v7x); built in f32.
        "wqkv": jnp.stack(wqkv).astype(jnp.bfloat16),
        "wo": jnp.stack(wo).astype(jnp.bfloat16),
        "w1": jnp.stack(w1).astype(jnp.bfloat16),
        "w2": jnp.stack(w2).astype(jnp.bfloat16),
        "vecs": jnp.stack(vecs),                       # small params stay f32
    }


# --- Encoder forward (embedding gathers are plain-JAX glue) ------------------
def encoder_forward(tokens, mask, params, prepared=None):
    if prepared is None:
        prepared = prepare_params(params)
    N, S = tokens.shape
    positions = jnp.arange(S)
    # TODO(synk): embedding lookup (gather) stays in plain JAX; a Pallas DMA
    # gather is not worthwhile at this size.
    out = params["word_emb"][tokens] + params["pos_emb"][positions][None, :, :]
    # self.dropout(...) is identity in eval mode
    x = out.astype(jnp.float32)
    y = encoder_pallas(x, mask.astype(jnp.float32),
                       prepared["wqkv"], prepared["wo"],
                       prepared["w1"], prepared["w2"], prepared["vecs"])
    return y


# --- pure-JAX reference (mirrors the PyTorch math exactly, f32) --------------
def _block_ref(x, mask, layer):
    N, S, E = x.shape
    H, D = HEADS, HEAD_DIM
    xh = x.reshape(N, S, H, D)
    v = jnp.einsum('nshd,do->nsho', xh, layer["wv_t"])
    k = jnp.einsum('nshd,do->nsho', xh, layer["wk_t"])
    q = jnp.einsum('nshd,do->nsho', xh, layer["wq_t"])
    energy = jnp.einsum('nqhd,nkhd->nhqk', q, k)
    energy = jnp.where(mask[:, None, :, :] == 0, -1e20, energy)
    attn = jax.nn.softmax(energy / jnp.sqrt(jnp.float32(E)), axis=-1)
    ao = jnp.einsum('nhqk,nkhd->nqhd', attn, v).reshape(N, S, E)
    ao = ao @ layer["wo_t"] + layer["bo"]
    x1 = _layernorm(ao + x, layer["g1"], layer["be1"])
    hdn = jax.nn.relu(x1 @ layer["w1_t"] + layer["bf1"])
    ff = hdn @ layer["w2_t"] + layer["bf2"]
    return _layernorm(ff + x1, layer["g2"], layer["be2"])


def encoder_reference(tokens, mask, params):
    N, S = tokens.shape
    out = params["word_emb"][tokens] + params["pos_emb"][jnp.arange(S)][None]
    for layer in params["layers"]:
        out = _block_ref(out, mask, layer)
    return out


# --- deterministic parameter init -------------------------------------------
def init_params(key, vocab, max_len, num_layers):
    keys = jax.random.split(key, 2 + num_layers)

    def nrm(k, shape, scale):
        return (scale * jax.random.normal(k, shape)).astype(jnp.float32)

    params = {
        "word_emb": nrm(keys[0], (vocab, EMBED), 1.0),
        "pos_emb": nrm(keys[1], (max_len, EMBED), 1.0),
        "layers": [],
    }
    for i in range(num_layers):
        lk = jax.random.split(keys[2 + i], 8)
        params["layers"].append({
            "wv_t": nrm(lk[0], (HEAD_DIM, HEAD_DIM), 0.3),
            "wk_t": nrm(lk[1], (HEAD_DIM, HEAD_DIM), 0.3),
            "wq_t": nrm(lk[2], (HEAD_DIM, HEAD_DIM), 0.3),
            "wo_t": nrm(lk[3], (EMBED, EMBED), 0.1),
            "bo": jnp.zeros((1, EMBED), jnp.float32),
            "g1": jnp.ones((1, EMBED), jnp.float32),
            "be1": jnp.zeros((1, EMBED), jnp.float32),
            "g2": jnp.ones((1, EMBED), jnp.float32),
            "be2": jnp.zeros((1, EMBED), jnp.float32),
            "w1_t": nrm(lk[4], (EMBED, FFN), 0.1),
            "bf1": nrm(lk[5], (1, FFN), 0.05),
            "w2_t": nrm(lk[6], (FFN, EMBED), 0.1),
            "bf2": nrm(lk[7], (1, EMBED), 0.05),
        })
    return params


if __name__ == "__main__":
    key = jax.random.PRNGKey(0)
    pkey, tkey = jax.random.split(key)

    N, S = 2, 8
    VOCAB, MAX_LEN, NUM_LAYERS = 50, 16, 2

    params = init_params(pkey, VOCAB, MAX_LEN, NUM_LAYERS)
    prepared = prepare_params(params)
    tokens = jax.random.randint(tkey, (N, S), 0, VOCAB)

    # padding-style mask: batch element 1 has its last two key positions masked
    mask = jnp.ones((N, S, S), jnp.float32)
    mask = mask.at[1, :, S - 2:].set(0.0)

    out = encoder_forward(tokens, mask, params, prepared)
    out = jax.block_until_ready(out)
    assert out.shape == (N, S, EMBED)

    ref = encoder_reference(tokens, mask, params)
    # Tolerance accounts for bf16 MXU weights/activations (f32 accumulate) and
    # the approximate softmax reciprocal; structural errors would be O(1).
    np.testing.assert_allclose(np.asarray(out), np.asarray(ref),
                               rtol=5e-2, atol=5e-2)

    print("KERNEL_OK")
</pallas_src>

<mosaic_0001>
module attributes {stable_mosaic.version = 11 : i64} {
  func.func @encoder_kernel(%arg0: i32, %arg1: memref<1x8x32xf32, #tpu.memory_space<vmem>>, %arg2: memref<1x8x8xf32, #tpu.memory_space<vmem>>, %arg3: memref<2x32x96xbf16, #tpu.memory_space<vmem>>, %arg4: memref<2x32x32xbf16, #tpu.memory_space<vmem>>, %arg5: memref<2x32x128xbf16, #tpu.memory_space<vmem>>, %arg6: memref<2x128x32xbf16, #tpu.memory_space<vmem>>, %arg7: memref<2x8x128xf32, #tpu.memory_space<vmem>>, %arg8: memref<1x8x32xf32, #tpu.memory_space<vmem>>) attributes {dimension_semantics = [#tpu.dimension_semantics<parallel>], iteration_bounds = array<i64: 2>, scalar_prefetch = 0 : i64, scratch_operands = 0 : i64, tpu.core_type = #tpu.core_type<tc>, window_params = [{transform_indices = @transform_0, window_bounds = array<i64: 1, 8, 32>}, {transform_indices = @transform_1, window_bounds = array<i64: 1, 8, 8>}, {pipeline_mode = #tpu.pipeline_mode<synchronous>, transform_indices = @transform_2, window_bounds = array<i64: 2, 32, 96>}, {pipeline_mode = #tpu.pipeline_mode<synchronous>, transform_indices = @transform_3, window_bounds = array<i64: 2, 32, 32>}, {pipeline_mode = #tpu.pipeline_mode<synchronous>, transform_indices = @transform_4, window_bounds = array<i64: 2, 32, 128>}, {pipeline_mode = #tpu.pipeline_mode<synchronous>, transform_indices = @transform_5, window_bounds = array<i64: 2, 128, 32>}, {pipeline_mode = #tpu.pipeline_mode<synchronous>, transform_indices = @transform_6, window_bounds = array<i64: 2, 8, 128>}, {transform_indices = @transform_7, window_bounds = array<i64: 1, 8, 32>}]} {
    %c0 = arith.constant 0 : index
    %c0_0 = arith.constant 0 : index
    %c0_1 = arith.constant 0 : index
    %0 = vector.load %arg1[%c0, %c0_0, %c0_1] : memref<1x8x32xf32, #tpu.memory_space<vmem>>, vector<1x8x32xf32>
    %1 = vector.shape_cast %0 : vector<1x8x32xf32> to vector<8x32xf32>
    %c0_2 = arith.constant 0 : index
    %c0_3 = arith.constant 0 : index
    %c0_4 = arith.constant 0 : index
    %2 = vector.load %arg2[%c0_2, %c0_3, %c0_4] : memref<1x8x8xf32, #tpu.memory_space<vmem>>, vector<1x8x8xf32>
    %3 = vector.shape_cast %2 : vector<1x8x8xf32> to vector<8x8xf32>
    %cst = arith.constant 0.000000e+00 : f32
    %4 = vector.broadcast %cst : f32 to vector<8x8xf32>
    %5 = arith.cmpf oeq, %3, %4 : vector<8x8xf32>
    %cst_5 = arith.constant -1.000000e+20 : f32
    %cst_6 = arith.constant 0.000000e+00 : f32
    %6 = vector.broadcast %cst_5 : f32 to vector<8x8xf32>
    %7 = vector.broadcast %cst_6 : f32 to vector<8x8xf32>
    %8 = arith.select %5, %6, %7 : vector<8x8xi1>, vector<8x8xf32>
    %c0_7 = arith.constant 0 : index
    %c0_8 = arith.constant 0 : index
    %c0_9 = arith.constant 0 : index
    %9 = vector.load %arg7[%c0_7, %c0_8, %c0_9] : memref<2x8x128xf32, #tpu.memory_space<vmem>>, vector<1x8x128xf32>
    %10 = vector.shape_cast %9 : vector<1x8x128xf32> to vector<8x128xf32>
    %11 = vector.extract_strided_slice %10 {offsets = [0, 0], sizes = [1, 32], strides = [1, 1]} : vector<8x128xf32> to vector<1x32xf32>
    %12 = vector.extract_strided_slice %10 {offsets = [1, 0], sizes = [1, 32], strides = [1, 1]} : vector<8x128xf32> to vector<1x32xf32>
    %13 = vector.extract_strided_slice %10 {offsets = [2, 0], sizes = [1, 32], strides = [1, 1]} : vector<8x128xf32> to vector<1x32xf32>
    %14 = vector.extract_strided_slice %10 {offsets = [3, 0], sizes = [1, 32], strides = [1, 1]} : vector<8x128xf32> to vector<1x32xf32>
    %15 = vector.extract_strided_slice %10 {offsets = [4, 0], sizes = [1, 32], strides = [1, 1]} : vector<8x128xf32> to vector<1x32xf32>
    %16 = vector.extract_strided_slice %10 {offsets = [5, 0], sizes = [1, 128], strides = [1, 1]} : vector<8x128xf32> to vector<1x128xf32>
    %17 = vector.extract_strided_slice %10 {offsets = [6, 0], sizes = [1, 32], strides = [1, 1]} : vector<8x128xf32> to vector<1x32xf32>
    %18 = arith.truncf %1 : vector<8x32xf32> to vector<8x32xbf16>
    %c0_10 = arith.constant 0 : index
    %c0_11 = arith.constant 0 : index
    %c0_12 = arith.constant 0 : index
    %19 = vector.load %arg3[%c0_10, %c0_11, %c0_12] : memref<2x32x96xbf16, #tpu.memory_space<vmem>>, vector<1x32x96xbf16>
    %20 = vector.shape_cast %19 : vector<1x32x96xbf16> to vector<32x96xbf16>
    %cst_13 = arith.constant dense<0.000000e+00> : vector<8x96xf32>
    %21 = tpu.matmul %18, %20, %cst_13 {dimension_numbers = #tpu.dot_dimension_numbers<[1], [0], [0], [1], [0, 0, 1, 1], [], []>} : vector<8x32xbf16>, vector<32x96xbf16>, vector<8x96xf32> -> vector<8x96xf32>
    %22 = vector.extract_strided_slice %21 {offsets = [0, 0], sizes = [8, 32], strides = [1, 1]} : vector<8x96xf32> to vector<8x32xf32>
    %23 = vector.shape_cast %22 : vector<8x32xf32> to vector<8x4x8xf32>
    %24 = vector.extract_strided_slice %21 {offsets = [0, 32], sizes = [8, 32], strides = [1, 1]} : vector<8x96xf32> to vector<8x32xf32>
    %25 = vector.shape_cast %24 : vector<8x32xf32> to vector<8x4x8xf32>
    %26 = vector.extract_strided_slice %21 {offsets = [0, 64], sizes = [8, 32], strides = [1, 1]} : vector<8x96xf32> to vector<8x32xf32>
    %27 = vector.shape_cast %26 : vector<8x32xf32> to vector<8x4x8xf32>
    %28 = arith.truncf %23 : vector<8x4x8xf32> to vector<8x4x8xbf16>
    %29 = arith.truncf %25 : vector<8x4x8xf32> to vector<8x4x8xbf16>
    "tpu.trace_start"() <{level = 10 : i32, message = "qhd,khd->hqk"}> : () -> ()
    %cst_14 = arith.constant dense<0.000000e+00> : vector<4x8x8xf32>
    %30 = tpu.matmul %28, %29, %cst_14 {dimension_numbers = #tpu.dot_dimension_numbers<[2], [2], [0], [0], [0, 1, 0, 0, 1, 0], [1], [1]>} : vector<8x4x8xbf16>, vector<8x4x8xbf16>, vector<4x8x8xf32> -> vector<4x8x8xf32>
    "tpu.trace_stop"() : () -> ()
    %31 = vector.shape_cast %8 : vector<8x8xf32> to vector<1x8x8xf32>
    %32 = vector.broadcast %31 : vector<1x8x8xf32> to vector<4x8x8xf32>
    %33 = arith.addf %30, %32 : vector<4x8x8xf32>
    %cst_15 = arith.constant dense<0xFF800000> : vector<4x8xf32>
    %34 = vector.multi_reduction <maximumf>, %33, %cst_15 [2] : vector<4x8x8xf32> to vector<4x8xf32>
    %35 = vector.shape_cast %34 : vector<4x8xf32> to vector<4x8x1xf32>
    %36 = vector.broadcast %35 : vector<4x8x1xf32> to vector<4x8x8xf32>
    %37 = arith.subf %33, %36 : vector<4x8x8xf32>
    %38 = math.exp %37 : vector<4x8x8xf32>
    %cst_16 = arith.constant dense<0.000000e+00> : vector<4x8xf32>
    %39 = vector.multi_reduction <add>, %38, %cst_16 [2] : vector<4x8x8xf32> to vector<4x8xf32>
    %40 = vector.shape_cast %39 : vector<4x8xf32> to vector<4x8x1xf32>
    %41 = tpu.reciprocal %40 {approx = true} : vector<4x8x1xf32> -> vector<4x8x1xf32>
    %42 = vector.broadcast %41 : vector<4x8x1xf32> to vector<4x8x8xf32>
    %43 = arith.mulf %38, %42 : vector<4x8x8xf32>
    %44 = arith.truncf %43 : vector<4x8x8xf32> to vector<4x8x8xbf16>
    %45 = arith.truncf %27 : vector<8x4x8xf32> to vector<8x4x8xbf16>
    "tpu.trace_start"() <{level = 10 : i32, message = "hqk,khd->qhd"}> : () -> ()
    %cst_17 = arith.constant dense<0.000000e+00> : vector<4x8x8xf32>
    %46 = tpu.matmul %45, %44, %cst_17 {dimension_numbers = #tpu.dot_dimension_numbers<[0], [2], [2], [1], [0, 1, 0, 2, 1, 1], [1], [0]>} : vector<8x4x8xbf16>, vector<4x8x8xbf16>, vector<4x8x8xf32> -> vector<4x8x8xf32>
    %47 = tpu.transpose %46, [2, 0, 1] : vector<4x8x8xf32> -> vector<8x4x8xf32>
    "tpu.trace_stop"() : () -> ()
    %48 = vector.shape_cast %47 : vector<8x4x8xf32> to vector<8x32xf32>
    %49 = arith.truncf %48 : vector<8x32xf32> to vector<8x32xbf16>
    %c0_18 = arith.constant 0 : index
    %c0_19 = arith.constant 0 : index
    %c0_20 = arith.constant 0 : index
    %50 = vector.load %arg4[%c0_18, %c0_19, %c0_20] : memref<2x32x32xbf16, #tpu.memory_space<vmem>>, vector<1x32x32xbf16>
    %51 = vector.shape_cast %50 : vector<1x32x32xbf16> to vector<32x32xbf16>
    %cst_21 = arith.constant dense<0.000000e+00> : vector<8x32xf32>
    %52 = tpu.matmul %49, %51, %cst_21 {dimension_numbers = #tpu.dot_dimension_numbers<[1], [0], [0], [1], [0, 0, 1, 1], [], []>} : vector<8x32xbf16>, vector<32x32xbf16>, vector<8x32xf32> -> vector<8x32xf32>
    %53 = vector.broadcast %11 : vector<1x32xf32> to vector<8x32xf32>
    %54 = arith.addf %52, %53 : vector<8x32xf32>
    %55 = arith.addf %54, %1 : vector<8x32xf32>
    %cst_22 = arith.constant dense<0.000000e+00> : vector<8xf32>
    %56 = vector.multi_reduction <add>, %55, %cst_22 [1] : vector<8x32xf32> to vector<8xf32>
    %57 = vector.shape_cast %56 : vector<8xf32> to vector<8x1xf32>
    %cst_23 = arith.constant 3.200000e+01 : f32
    %58 = vector.broadcast %cst_23 : f32 to vector<8x1xf32>
    %59 = arith.divf %57, %58 : vector<8x1xf32>
    %60 = vector.broadcast %59 : vector<8x1xf32> to vector<8x32xf32>
    %61 = arith.subf %55, %60 : vector<8x32xf32>
    %62 = arith.mulf %61, %61 : vector<8x32xf32>
    %cst_24 = arith.constant dense<0.000000e+00> : vector<8xf32>
    %63 = vector.multi_reduction <add>, %62, %cst_24 [1] : vector<8x32xf32> to vector<8xf32>
    %64 = vector.shape_cast %63 : vector<8xf32> to vector<8x1xf32>
    %cst_25 = arith.constant 3.200000e+01 : f32
    %65 = vector.broadcast %cst_25 : f32 to vector<8x1xf32>
    %66 = arith.divf %64, %65 : vector<8x1xf32>
    %67 = vector.broadcast %59 : vector<8x1xf32> to vector<8x32xf32>
    %68 = arith.subf %55, %67 : vector<8x32xf32>
    %cst_26 = arith.constant 9.99999974E-6 : f32
    %69 = vector.broadcast %cst_26 : f32 to vector<8x1xf32>
    %70 = arith.addf %66, %69 : vector<8x1xf32>
    %71 = math.rsqrt %70 : vector<8x1xf32>
    %72 = vector.broadcast %71 : vector<8x1xf32> to vector<8x32xf32>
    %73 = arith.mulf %68, %72 : vector<8x32xf32>
    %74 = vector.broadcast %12 : vector<1x32xf32> to vector<8x32xf32>
    %75 = arith.mulf %73, %74 : vector<8x32xf32>
    %76 = vector.broadcast %13 : vector<1x32xf32> to vector<8x32xf32>
    %77 = arith.addf %75, %76 : vector<8x32xf32>
    %78 = arith.truncf %77 : vector<8x32xf32> to vector<8x32xbf16>
    %c0_27 = arith.constant 0 : index
    %c0_28 = arith.constant 0 : index
    %c0_29 = arith.constant 0 : index
    %79 = vector.load %arg5[%c0_27, %c0_28, %c0_29] : memref<2x32x128xbf16, #tpu.memory_space<vmem>>, vector<1x32x128xbf16>
    %80 = vector.shape_cast %79 : vector<1x32x128xbf16> to vector<32x128xbf16>
    %cst_30 = arith.constant dense<0.000000e+00> : vector<8x128xf32>
    %81 = tpu.matmul %78, %80, %cst_30 {dimension_numbers = #tpu.dot_dimension_numbers<[1], [0], [0], [1], [0, 0, 1, 1], [], []>} : vector<8x32xbf16>, vector<32x128xbf16>, vector<8x128xf32> -> vector<8x128xf32>
    %82 = vector.broadcast %16 : vector<1x128xf32> to vector<8x128xf32>
    %83 = arith.addf %81, %82 : vector<8x128xf32>
    %cst_31 = arith.constant 0.000000e+00 : f32
    %84 = vector.broadcast %cst_31 : f32 to vector<8x128xf32>
    %85 = arith.maximumf %83, %84 : vector<8x128xf32>
    %86 = arith.truncf %85 : vector<8x128xf32> to vector<8x128xbf16>
    %c0_32 = arith.constant 0 : index
    %c0_33 = arith.constant 0 : index
    %c0_34 = arith.constant 0 : index
    %87 = vector.load %arg6[%c0_32, %c0_33, %c0_34] : memref<2x128x32xbf16, #tpu.memory_space<vmem>>, vector<1x128x32xbf16>
    %88 = vector.shape_cast %87 : vector<1x128x32xbf16> to vector<128x32xbf16>
    %cst_35 = arith.constant dense<0.000000e+00> : vector<8x32xf32>
    %89 = tpu.matmul %86, %88, %cst_35 {dimension_numbers = #tpu.dot_dimension_numbers<[1], [0], [0], [1], [0, 0, 1, 1], [], []>} : vector<8x128xbf16>, vector<128x32xbf16>, vector<8x32xf32> -> vector<8x32xf32>
    %90 = vector.broadcast %17 : vector<1x32xf32> to vector<8x32xf32>
    %91 = arith.addf %89, %90 : vector<8x32xf32>
    %92 = arith.addf %91, %77 : vector<8x32xf32>
    %cst_36 = arith.constant dense<0.000000e+00> : vector<8xf32>
    %93 = vector.multi_reduction <add>, %92, %cst_36 [1] : vector<8x32xf32> to vector<8xf32>
    %94 = vector.shape_cast %93 : vector<8xf32> to vector<8x1xf32>
    %cst_37 = arith.constant 3.200000e+01 : f32
    %95 = vector.broadcast %cst_37 : f32 to vector<8x1xf32>
    %96 = arith.divf %94, %95 : vector<8x1xf32>
    %97 = vector.broadcast %96 : vector<8x1xf32> to vector<8x32xf32>
    %98 = arith.subf %92, %97 : vector<8x32xf32>
    %99 = arith.mulf %98, %98 : vector<8x32xf32>
    %cst_38 = arith.constant dense<0.000000e+00> : vector<8xf32>
    %100 = vector.multi_reduction <add>, %99, %cst_38 [1] : vector<8x32xf32> to vector<8xf32>
    %101 = vector.shape_cast %100 : vector<8xf32> to vector<8x1xf32>
    %cst_39 = arith.constant 3.200000e+01 : f32
    %102 = vector.broadcast %cst_39 : f32 to vector<8x1xf32>
    %103 = arith.divf %101, %102 : vector<8x1xf32>
    %104 = vector.broadcast %96 : vector<8x1xf32> to vector<8x32xf32>
    %105 = arith.subf %92, %104 : vector<8x32xf32>
    %cst_40 = arith.constant 9.99999974E-6 : f32
    %106 = vector.broadcast %cst_40 : f32 to vector<8x1xf32>
    %107 = arith.addf %103, %106 : vector<8x1xf32>
    %108 = math.rsqrt %107 : vector<8x1xf32>
    %109 = vector.broadcast %108 : vector<8x1xf32> to vector<8x32xf32>
    %110 = arith.mulf %105, %109 : vector<8x32xf32>
    %111 = vector.broadcast %14 : vector<1x32xf32> to vector<8x32xf32>
    %112 = arith.mulf %110, %111 : vector<8x32xf32>
    %113 = vector.broadcast %15 : vector<1x32xf32> to vector<8x32xf32>
    %114 = arith.addf %112, %113 : vector<8x32xf32>
    %c1 = arith.constant 1 : index
    %c0_41 = arith.constant 0 : index
    %c0_42 = arith.constant 0 : index
    %115 = vector.load %arg7[%c1, %c0_41, %c0_42] : memref<2x8x128xf32, #tpu.memory_space<vmem>>, vector<1x8x128xf32>
    %116 = vector.shape_cast %115 : vector<1x8x128xf32> to vector<8x128xf32>
    %117 = vector.extract_strided_slice %116 {offsets = [0, 0], sizes = [1, 32], strides = [1, 1]} : vector<8x128xf32> to vector<1x32xf32>
    %118 = vector.extract_strided_slice %116 {offsets = [1, 0], sizes = [1, 32], strides = [1, 1]} : vector<8x128xf32> to vector<1x32xf32>
    %119 = vector.extract_strided_slice %116 {offsets = [2, 0], sizes = [1, 32], strides = [1, 1]} : vector<8x128xf32> to vector<1x32xf32>
    %120 = vector.extract_strided_slice %116 {offsets = [3, 0], sizes = [1, 32], strides = [1, 1]} : vector<8x128xf32> to vector<1x32xf32>
    %121 = vector.extract_strided_slice %116 {offsets = [4, 0], sizes = [1, 32], strides = [1, 1]} : vector<8x128xf32> to vector<1x32xf32>
    %122 = vector.extract_strided_slice %116 {offsets = [5, 0], sizes = [1, 128], strides = [1, 1]} : vector<8x128xf32> to vector<1x128xf32>
    %123 = vector.extract_strided_slice %116 {offsets = [6, 0], sizes = [1, 32], strides = [1, 1]} : vector<8x128xf32> to vector<1x32xf32>
    %124 = arith.truncf %114 : vector<8x32xf32> to vector<8x32xbf16>
    %c1_43 = arith.constant 1 : index
    %c0_44 = arith.constant 0 : index
    %c0_45 = arith.constant 0 : index
    %125 = vector.load %arg3[%c1_43, %c0_44, %c0_45] : memref<2x32x96xbf16, #tpu.memory_space<vmem>>, vector<1x32x96xbf16>
    %126 = vector.shape_cast %125 : vector<1x32x96xbf16> to vector<32x96xbf16>
    %cst_46 = arith.constant dense<0.000000e+00> : vector<8x96xf32>
    %127 = tpu.matmul %124, %126, %cst_46 {dimension_numbers = #tpu.dot_dimension_numbers<[1], [0], [0], [1], [0, 0, 1, 1], [], []>} : vector<8x32xbf16>, vector<32x96xbf16>, vector<8x96xf32> -> vector<8x96xf32>
    %128 = vector.extract_strided_slice %127 {offsets = [0, 0], sizes = [8, 32], strides = [1, 1]} : vector<8x96xf32> to vector<8x32xf32>
    %129 = vector.shape_cast %128 : vector<8x32xf32> to vector<8x4x8xf32>
    %130 = vector.extract_strided_slice %127 {offsets = [0, 32], sizes = [8, 32], strides = [1, 1]} : vector<8x96xf32> to vector<8x32xf32>
    %131 = vector.shape_cast %130 : vector<8x32xf32> to vector<8x4x8xf32>
    %132 = vector.extract_strided_slice %127 {offsets = [0, 64], sizes = [8, 32], strides = [1, 1]} : vector<8x96xf32> to vector<8x32xf32>
    %133 = vector.shape_cast %132 : vector<8x32xf32> to vector<8x4x8xf32>
    %134 = arith.truncf %129 : vector<8x4x8xf32> to vector<8x4x8xbf16>
    %135 = arith.truncf %131 : vector<8x4x8xf32> to vector<8x4x8xbf16>
    "tpu.trace_start"() <{level = 10 : i32, message = "qhd,khd->hqk"}> : () -> ()
    %cst_47 = arith.constant dense<0.000000e+00> : vector<4x8x8xf32>
    %136 = tpu.matmul %134, %135, %cst_47 {dimension_numbers = #tpu.dot_dimension_numbers<[2], [2], [0], [0], [0, 1, 0, 0, 1, 0], [1], [1]>} : vector<8x4x8xbf16>, vector<8x4x8xbf16>, vector<4x8x8xf32> -> vector<4x8x8xf32>
    "tpu.trace_stop"() : () -> ()
    %137 = vector.shape_cast %8 : vector<8x8xf32> to vector<1x8x8xf32>
    %138 = vector.broadcast %137 : vector<1x8x8xf32> to vector<4x8x8xf32>
    %139 = arith.addf %136, %138 : vector<4x8x8xf32>
    %cst_48 = arith.constant dense<0xFF800000> : vector<4x8xf32>
    %140 = vector.multi_reduction <maximumf>, %139, %cst_48 [2] : vector<4x8x8xf32> to vector<4x8xf32>
    %141 = vector.shape_cast %140 : vector<4x8xf32> to vector<4x8x1xf32>
    %142 = vector.broadcast %141 : vector<4x8x1xf32> to vector<4x8x8xf32>
    %143 = arith.subf %139, %142 : vector<4x8x8xf32>
    %144 = math.exp %143 : vector<4x8x8xf32>
    %cst_49 = arith.constant dense<0.000000e+00> : vector<4x8xf32>
    %145 = vector.multi_reduction <add>, %144, %cst_49 [2] : vector<4x8x8xf32> to vector<4x8xf32>
    %146 = vector.shape_cast %145 : vector<4x8xf32> to vector<4x8x1xf32>
    %147 = tpu.reciprocal %146 {approx = true} : vector<4x8x1xf32> -> vector<4x8x1xf32>
    %148 = vector.broadcast %147 : vector<4x8x1xf32> to vector<4x8x8xf32>
    %149 = arith.mulf %144, %148 : vector<4x8x8xf32>
    %150 = arith.truncf %149 : vector<4x8x8xf32> to vector<4x8x8xbf16>
    %151 = arith.truncf %133 : vector<8x4x8xf32> to vector<8x4x8xbf16>
    "tpu.trace_start"() <{level = 10 : i32, message = "hqk,khd->qhd"}> : () -> ()
    %cst_50 = arith.constant dense<0.000000e+00> : vector<4x8x8xf32>
    %152 = tpu.matmul %151, %150, %cst_50 {dimension_numbers = #tpu.dot_dimension_numbers<[0], [2], [2], [1], [0, 1, 0, 2, 1, 1], [1], [0]>} : vector<8x4x8xbf16>, vector<4x8x8xbf16>, vector<4x8x8xf32> -> vector<4x8x8xf32>
    %153 = tpu.transpose %152, [2, 0, 1] : vector<4x8x8xf32> -> vector<8x4x8xf32>
    "tpu.trace_stop"() : () -> ()
    %154 = vector.shape_cast %153 : vector<8x4x8xf32> to vector<8x32xf32>
    %155 = arith.truncf %154 : vector<8x32xf32> to vector<8x32xbf16>
    %c1_51 = arith.constant 1 : index
    %c0_52 = arith.constant 0 : index
    %c0_53 = arith.constant 0 : index
    %156 = vector.load %arg4[%c1_51, %c0_52, %c0_53] : memref<2x32x32xbf16, #tpu.memory_space<vmem>>, vector<1x32x32xbf16>
    %157 = vector.shape_cast %156 : vector<1x32x32xbf16> to vector<32x32xbf16>
    %cst_54 = arith.constant dense<0.000000e+00> : vector<8x32xf32>
    %158 = tpu.matmul %155, %157, %cst_54 {dimension_numbers = #tpu.dot_dimension_numbers<[1], [0], [0], [1], [0, 0, 1, 1], [], []>} : vector<8x32xbf16>, vector<32x32xbf16>, vector<8x32xf32> -> vector<8x32xf32>
    %159 = vector.broadcast %117 : vector<1x32xf32> to vector<8x32xf32>
    %160 = arith.addf %158, %159 : vector<8x32xf32>
    %161 = arith.addf %160, %114 : vector<8x32xf32>
    %cst_55 = arith.constant dense<0.000000e+00> : vector<8xf32>
    %162 = vector.multi_reduction <add>, %161, %cst_55 [1] : vector<8x32xf32> to vector<8xf32>
    %163 = vector.shape_cast %162 : vector<8xf32> to vector<8x1xf32>
    %cst_56 = arith.constant 3.200000e+01 : f32
    %164 = vector.broadcast %cst_56 : f32 to vector<8x1xf32>
    %165 = arith.divf %163, %164 : vector<8x1xf32>
    %166 = vector.broadcast %165 : vector<8x1xf32> to vector<8x32xf32>
    %167 = arith.subf %161, %166 : vector<8x32xf32>
    %168 = arith.mulf %167, %167 : vector<8x32xf32>
    %cst_57 = arith.constant dense<0.000000e+00> : vector<8xf32>
    %169 = vector.multi_reduction <add>, %168, %cst_57 [1] : vector<8x32xf32> to vector<8xf32>
    %170 = vector.shape_cast %169 : vector<8xf32> to vector<8x1xf32>
    %cst_58 = arith.constant 3.200000e+01 : f32
    %171 = vector.broadcast %cst_58 : f32 to vector<8x1xf32>
    %172 = arith.divf %170, %171 : vector<8x1xf32>
    %173 = vector.broadcast %165 : vector<8x1xf32> to vector<8x32xf32>
    %174 = arith.subf %161, %173 : vector<8x32xf32>
    %cst_59 = arith.constant 9.99999974E-6 : f32
    %175 = vector.broadcast %cst_59 : f32 to vector<8x1xf32>
    %176 = arith.addf %172, %175 : vector<8x1xf32>
    %177 = math.rsqrt %176 : vector<8x1xf32>
    %178 = vector.broadcast %177 : vector<8x1xf32> to vector<8x32xf32>
    %179 = arith.mulf %174, %178 : vector<8x32xf32>
    %180 = vector.broadcast %118 : vector<1x32xf32> to vector<8x32xf32>
    %181 = arith.mulf %179, %180 : vector<8x32xf32>
    %182 = vector.broadcast %119 : vector<1x32xf32> to vector<8x32xf32>
    %183 = arith.addf %181, %182 : vector<8x32xf32>
    %184 = arith.truncf %183 : vector<8x32xf32> to vector<8x32xbf16>
    %c1_60 = arith.constant 1 : index
    %c0_61 = arith.constant 0 : index
    %c0_62 = arith.constant 0 : index
    %185 = vector.load %arg5[%c1_60, %c0_61, %c0_62] : memref<2x32x128xbf16, #tpu.memory_space<vmem>>, vector<1x32x128xbf16>
    %186 = vector.shape_cast %185 : vector<1x32x128xbf16> to vector<32x128xbf16>
    %cst_63 = arith.constant dense<0.000000e+00> : vector<8x128xf32>
    %187 = tpu.matmul %184, %186, %cst_63 {dimension_numbers = #tpu.dot_dimension_numbers<[1], [0], [0], [1], [0, 0, 1, 1], [], []>} : vector<8x32xbf16>, vector<32x128xbf16>, vector<8x128xf32> -> vector<8x128xf32>
    %188 = vector.broadcast %122 : vector<1x128xf32> to vector<8x128xf32>
    %189 = arith.addf %187, %188 : vector<8x128xf32>
    %cst_64 = arith.constant 0.000000e+00 : f32
    %190 = vector.broadcast %cst_64 : f32 to vector<8x128xf32>
    %191 = arith.maximumf %189, %190 : vector<8x128xf32>
    %192 = arith.truncf %191 : vector<8x128xf32> to vector<8x128xbf16>
    %c1_65 = arith.constant 1 : index
    %c0_66 = arith.constant 0 : index
    %c0_67 = arith.constant 0 : index
    %193 = vector.load %arg6[%c1_65, %c0_66, %c0_67] : memref<2x128x32xbf16, #tpu.memory_space<vmem>>, vector<1x128x32xbf16>
    %194 = vector.shape_cast %193 : vector<1x128x32xbf16> to vector<128x32xbf16>
    %cst_68 = arith.constant dense<0.000000e+00> : vector<8x32xf32>
    %195 = tpu.matmul %192, %194, %cst_68 {dimension_numbers = #tpu.dot_dimension_numbers<[1], [0], [0], [1], [0, 0, 1, 1], [], []>} : vector<8x128xbf16>, vector<128x32xbf16>, vector<8x32xf32> -> vector<8x32xf32>
    %196 = vector.broadcast %123 : vector<1x32xf32> to vector<8x32xf32>
    %197 = arith.addf %195, %196 : vector<8x32xf32>
    %198 = arith.addf %197, %183 : vector<8x32xf32>
    %cst_69 = arith.constant dense<0.000000e+00> : vector<8xf32>
    %199 = vector.multi_reduction <add>, %198, %cst_69 [1] : vector<8x32xf32> to vector<8xf32>
    %200 = vector.shape_cast %199 : vector<8xf32> to vector<8x1xf32>
    %cst_70 = arith.constant 3.200000e+01 : f32
    %201 = vector.broadcast %cst_70 : f32 to vector<8x1xf32>
    %202 = arith.divf %200, %201 : vector<8x1xf32>
    %203 = vector.broadcast %202 : vector<8x1xf32> to vector<8x32xf32>
    %204 = arith.subf %198, %203 : vector<8x32xf32>
    %205 = arith.mulf %204, %204 : vector<8x32xf32>
    %cst_71 = arith.constant dense<0.000000e+00> : vector<8xf32>
    %206 = vector.multi_reduction <add>, %205, %cst_71 [1] : vector<8x32xf32> to vector<8xf32>
    %207 = vector.shape_cast %206 : vector<8xf32> to vector<8x1xf32>
    %cst_72 = arith.constant 3.200000e+01 : f32
    %208 = vector.broadcast %cst_72 : f32 to vector<8x1xf32>
    %209 = arith.divf %207, %208 : vector<8x1xf32>
    %210 = vector.broadcast %202 : vector<8x1xf32> to vector<8x32xf32>
    %211 = arith.subf %198, %210 : vector<8x32xf32>
    %cst_73 = arith.constant 9.99999974E-6 : f32
    %212 = vector.broadcast %cst_73 : f32 to vector<8x1xf32>
    %213 = arith.addf %209, %212 : vector<8x1xf32>
    %214 = math.rsqrt %213 : vector<8x1xf32>
    %215 = vector.broadcast %214 : vector<8x1xf32> to vector<8x32xf32>
    %216 = arith.mulf %211, %215 : vector<8x32xf32>
    %217 = vector.broadcast %120 : vector<1x32xf32> to vector<8x32xf32>
    %218 = arith.mulf %216, %217 : vector<8x32xf32>
    %219 = vector.broadcast %121 : vector<1x32xf32> to vector<8x32xf32>
    %220 = arith.addf %218, %219 : vector<8x32xf32>
    %c0_74 = arith.constant 0 : index
    %c0_75 = arith.constant 0 : index
    %c0_76 = arith.constant 0 : index
    %221 = vector.load %arg8[%c0_74, %c0_75, %c0_76] : memref<1x8x32xf32, #tpu.memory_space<vmem>>, vector<1x8x32xf32>
    %222 = vector.shape_cast %221 : vector<1x8x32xf32> to vector<8x32xf32>
    %223 = vector.shape_cast %220 : vector<8x32xf32> to vector<1x8x32xf32>
    tpu.vector_store %arg8[%c0_74, %c0_75, %c0_76], %223 {strides = array<i32>} : memref<1x8x32xf32, #tpu.memory_space<vmem>>, vector<1x8x32xf32>,
    return
  }
  func.func @transform_0(%arg0: i32) -> (i32, i32, i32) {
    %c0_i32 = arith.constant 0 : i32
    %c0_i32_0 = arith.constant 0 : i32
    %c0_i32_1 = arith.constant 0 : i32
    return %arg0, %c0_i32, %c0_i32_0 : i32, i32, i32
  }
  func.func @transform_1(%arg0: i32) -> (i32, i32, i32) {
    %c0_i32 = arith.constant 0 : i32
    %c0_i32_0 = arith.constant 0 : i32
    %c0_i32_1 = arith.constant 0 : i32
    return %arg0, %c0_i32, %c0_i32_0 : i32, i32, i32
  }
  func.func @transform_2(%arg0: i32) -> (i32, i32, i32) {
    %c0_i32 = arith.constant 0 : i32
    %c0_i32_0 = arith.constant 0 : i32
    %c0_i32_1 = arith.constant 0 : i32
    %c0_i32_2 = arith.constant 0 : i32
    return %c0_i32, %c0_i32_0, %c0_i32_1 : i32, i32, i32
  }
  func.func @transform_3(%arg0: i32) -> (i32, i32, i32) {
    %c0_i32 = arith.constant 0 : i32
    %c0_i32_0 = arith.constant 0 : i32
    %c0_i32_1 = arith.constant 0 : i32
    %c0_i32_2 = arith.constant 0 : i32
    return %c0_i32, %c0_i32_0, %c0_i32_1 : i32, i32, i32
  }
  func.func @transform_4(%arg0: i32) -> (i32, i32, i32) {
    %c0_i32 = arith.constant 0 : i32
    %c0_i32_0 = arith.constant 0 : i32
    %c0_i32_1 = arith.constant 0 : i32
    %c0_i32_2 = arith.constant 0 : i32
    return %c0_i32, %c0_i32_0, %c0_i32_1 : i32, i32, i32
  }
  func.func @transform_5(%arg0: i32) -> (i32, i32, i32) {
    %c0_i32 = arith.constant 0 : i32
    %c0_i32_0 = arith.constant 0 : i32
    %c0_i32_1 = arith.constant 0 : i32
    %c0_i32_2 = arith.constant 0 : i32
    return %c0_i32, %c0_i32_0, %c0_i32_1 : i32, i32, i32
  }
  func.func @transform_6(%arg0: i32) -> (i32, i32, i32) {
    %c0_i32 = arith.constant 0 : i32
    %c0_i32_0 = arith.constant 0 : i32
    %c0_i32_1 = arith.constant 0 : i32
    %c0_i32_2 = arith.constant 0 : i32
    return %c0_i32, %c0_i32_0, %c0_i32_1 : i32, i32, i32
  }
  func.func @transform_7(%arg0: i32) -> (i32, i32, i32) {
    %c0_i32 = arith.constant 0 : i32
    %c0_i32_0 = arith.constant 0 : i32
    %c0_i32_1 = arith.constant 0 : i32
    return %arg0, %c0_i32, %c0_i32_0 : i32, i32, i32
  }
}

</mosaic_0001>

<llo_original>
// kernel: tpu_custom_call.1
$region0: #{tpu_custom_call.1}
  #allocation0 [shape = 'u32[]', space=smem, size = 0x4, offset = 0x4, fixed_abs, tag = 'smem constant byte address 0x4 - core index']
  #allocation1 [shape = 'u32[144,128]{1,0:T(1,128)}', space=vmem, size = 0x12000, scoped, tag = 'internal scratch']
  %s0 = inlined_call_operand.vmem [shape: f32[2,8,32], index: 0, kind: input, shape index: {}]
  %s1 = inlined_call_operand.vmem [shape: f32[2,8,8], index: 1, kind: input, shape index: {}]
  %s2 = inlined_call_operand.vmem [shape: bf16[2,32,96], index: 2, kind: input, shape index: {}]
  %s3 = inlined_call_operand.vmem [shape: bf16[2,32,32], index: 3, kind: input, shape index: {}]
  %s4 = inlined_call_operand.vmem [shape: bf16[2,32,128], index: 4, kind: input, shape index: {}]
  %s5 = inlined_call_operand.vmem [shape: bf16[2,128,32], index: 5, kind: input, shape index: {}]
  %s6 = inlined_call_operand.vmem [shape: f32[2,8,128], index: 6, kind: input, shape index: {}]
  %s7 = inlined_call_operand.hbm [shape: f32[2,8,32], index: 7, kind: output, shape index: {}]
  %s8 = sld [smem:[#allocation0]]
  $region61: #{tpu_custom_call.1} parent=0
    _
  %s10 = ssub.s32 1, %s8
  %s11 = scalar_select 0, %s10, %s8
  $region1: #{tpu_custom_call.1} parent=0
    #allocation2 [shape = 'u8[8192]{0}', space=vmem, size = 0x2000, scoped, tag = 'output window, operand 0']
    #allocation3 [shape = 's32[2]{0}', space=sflag, size = 0x8, scoped, tag = 'scoped memory for tpu_custom_call.1']
    %12 = vsyncpa [#allocation3], 0
    %s13 = scalar_lea.sflag [#allocation3], 1
    %14 = vsyncpa %s13, 0
    loop: start=0, step=1, limit=4
    $region2: #{tpu_custom_call.1} parent=1 // loop_pre_header
      _
    $region3: #{tpu_custom_call.1} parent=1 // loop_header
      %s16 = sphi 0, %s20
      %p17 = scmp.ge.s32.totalorder %s16, 4
      %s26 = sphi 0, %s28
      %s29 = sphi 0, %s26
      %s30 = sphi 0, %s29
      %s46 = sphi 0, %s30
      %s52 = sphi 0, %s54
      %s55 = sphi 0, %s52
      %s56 = sphi 0, %s55
      %s72 = sphi 0, %s56
      %s76 = sphi 0, %s76
      %s78 = sphi 0, %s76
      %s79 = sphi 0, %s78
      %s93 = sphi 0, %s79
      %s97 = sphi 0, %s97
      %s99 = sphi 0, %s97
      %s100 = sphi 0, %s99
      %s114 = sphi 0, %s100
      %s118 = sphi 0, %s118
      %s120 = sphi 0, %s118
      %s121 = sphi 0, %s120
      %s135 = sphi 0, %s121
      %s139 = sphi 0, %s139
      %s141 = sphi 0, %s139
      %s142 = sphi 0, %s141
      %s156 = sphi 0, %s142
      %s160 = sphi 0, %s160
      %s162 = sphi 0, %s160
      %s163 = sphi 0, %s162
      %s177 = sphi 0, %s163
      %s183 = sphi 0, %s185
      %s186 = sphi 0, %s183
      %s187 = sphi 0, %s186
      %s203 = sphi 0, %s187
    $region4: #{tpu_custom_call.1} parent=1 // loop_header_branch
      %19 = sbr.rel (%p17) target = $region8
    $region5: #{tpu_custom_call.1} parent=1 // loop_body
      %s21 = ssub.s32 %s16, 1
      %s22 = ssub.s32 %s16, 2
      %s23 = sadd.s32 %s16, 1
      %s24 = ssub.s32 %s16, %s23
      %p25 = scmp.eq.s32.totalorder %s24, 0
      %s27 = sadd.s32 %s26, 1
      %s28 = scalar_select %p25, %s26, %s27
      %p31 = pneg %p25
      %p32 = scmp.eq.s32.totalorder %s16, 1
      %p33 = por %p31, %p32
      %p34 = scmp.ne.s32.totalorder %s26, %s29
      %p35 = scmp.eq.s32.totalorder %s16, 0
      %p36 = por %p34, %p35
      %p37 = scmp.ne.s32.totalorder %s26, %s29
      %p38 = scmp.eq.s32.totalorder %s21, 1
      %p39 = por %p37, %p38
      %p40 = scmp.ne.s32.totalorder %s29, %s30
      %p41 = scmp.eq.s32.totalorder %s21, 0
      %p42 = por %p40, %p41
      %p43 = scmp.ne.s32.totalorder %s29, %s30
      %p44 = scmp.eq.s32.totalorder %s22, 1
      %p45 = por %p43, %p44
      %p47 = scmp.ne.s32.totalorder %s30, %s46
      %p48 = scmp.eq.s32.totalorder %s22, 0
      %p49 = por %p47, %p48
      %s50 = ssub.s32 %s16, %s23
      %p51 = scmp.eq.s32.totalorder %s50, 0
      %s53 = sadd.s32 %s52, 1
      %s54 = scalar_select %p51, %s52, %s53
      %p57 = pneg %p51
      %p58 = scmp.eq.s32.totalorder %s16, 1
      %p59 = por %p57, %p58
      %p60 = scmp.ne.s32.totalorder %s52, %s55
      %p61 = scmp.eq.s32.totalorder %s16, 0
      %p62 = por %p60, %p61
      %p63 = scmp.ne.s32.totalorder %s52, %s55
      %p64 = scmp.eq.s32.totalorder %s21, 1
      %p65 = por %p63, %p64
      %p66 = scmp.ne.s32.totalorder %s55, %s56
      %p67 = scmp.eq.s32.totalorder %s21, 0
      %p68 = por %p66, %p67
      %p69 = scmp.ne.s32.totalorder %s55, %s56
      %p70 = scmp.eq.s32.totalorder %s22, 1
      %p71 = por %p69, %p70
      %p73 = scmp.ne.s32.totalorder %s56, %s72
      %p74 = scmp.eq.s32.totalorder %s22, 0
      %p75 = por %p73, %p74
      %s77 = sadd.s32 %s76, 1
      %p80 = scmp.eq.s32.totalorder %s16, 1
      %p81 = scmp.ne.s32.totalorder %s76, %s78
      %p82 = scmp.eq.s32.totalorder %s16, 0
      %p83 = por %p81, %p82
      %p84 = scmp.ne.s32.totalorder %s76, %s78
      %p85 = scmp.eq.s32.totalorder %s21, 1
      %p86 = por %p84, %p85
      %p87 = scmp.ne.s32.totalorder %s78, %s79
      %p88 = scmp.eq.s32.totalorder %s21, 0
      %p89 = por %p87, %p88
      %p90 = scmp.ne.s32.totalorder %s78, %s79
      %p91 = scmp.eq.s32.totalorder %s22, 1
      %p92 = por %p90, %p91
      %p94 = scmp.ne.s32.totalorder %s79, %s93
      %p95 = scmp.eq.s32.totalorder %s22, 0
      %p96 = por %p94, %p95
      %s98 = sadd.s32 %s97, 1
      %p101 = scmp.eq.s32.totalorder %s16, 1
      %p102 = scmp.ne.s32.totalorder %s97, %s99
      %p103 = scmp.eq.s32.totalorder %s16, 0
      %p104 = por %p102, %p103
      %p105 = scmp.ne.s32.totalorder %s97, %s99
      %p106 = scmp.eq.s32.totalorder %s21, 1
      %p107 = por %p105, %p106
      %p108 = scmp.ne.s32.totalorder %s99, %s100
      %p109 = scmp.eq.s32.totalorder %s21, 0
      %p110 = por %p108, %p109
      %p111 = scmp.ne.s32.totalorder %s99, %s100
      %p112 = scmp.eq.s32.totalorder %s22, 1
      %p113 = por %p111, %p112
      %p115 = scmp.ne.s32.totalorder %s100, %s114
      %p116 = scmp.eq.s32.totalorder %s22, 0
      %p117 = por %p115, %p116
      %s119 = sadd.s32 %s118, 1
      %p122 = scmp.eq.s32.totalorder %s16, 1
      %p123 = scmp.ne.s32.totalorder %s118, %s120
      %p124 = scmp.eq.s32.totalorder %s16, 0
      %p125 = por %p123, %p124
      %p126 = scmp.ne.s32.totalorder %s118, %s120
      %p127 = scmp.eq.s32.totalorder %s21, 1
      %p128 = por %p126, %p127
      %p129 = scmp.ne.s32.totalorder %s120, %s121
      %p130 = scmp.eq.s32.totalorder %s21, 0
      %p131 = por %p129, %p130
      %p132 = scmp.ne.s32.totalorder %s120, %s121
      %p133 = scmp.eq.s32.totalorder %s22, 1
      %p134 = por %p132, %p133
      %p136 = scmp.ne.s32.totalorder %s121, %s135
      %p137 = scmp.eq.s32.totalorder %s22, 0
      %p138 = por %p136, %p137
      %s140 = sadd.s32 %s139, 1
      %p143 = scmp.eq.s32.totalorder %s16, 1
      %p144 = scmp.ne.s32.totalorder %s139, %s141
      %p145 = scmp.eq.s32.totalorder %s16, 0
      %p146 = por %p144, %p145
      %p147 = scmp.ne.s32.totalorder %s139, %s141
      %p148 = scmp.eq.s32.totalorder %s21, 1
      %p149 = por %p147, %p148
      %p150 = scmp.ne.s32.totalorder %s141, %s142
      %p151 = scmp.eq.s32.totalorder %s21, 0
      %p152 = por %p150, %p151
      %p153 = scmp.ne.s32.totalorder %s141, %s142
      %p154 = scmp.eq.s32.totalorder %s22, 1
      %p155 = por %p153, %p154
      %p157 = scmp.ne.s32.totalorder %s142, %s156
      %p158 = scmp.eq.s32.totalorder %s22, 0
      %p159 = por %p157, %p158
      %s161 = sadd.s32 %s160, 1
      %p164 = scmp.eq.s32.totalorder %s16, 1
      %p165 = scmp.ne.s32.totalorder %s160, %s162
      %p166 = scmp.eq.s32.totalorder %s16, 0
      %p167 = por %p165, %p166
      %p168 = scmp.ne.s32.totalorder %s160, %s162
      %p169 = scmp.eq.s32.totalorder %s21, 1
      %p170 = por %p168, %p169
      %p171 = scmp.ne.s32.totalorder %s162, %s163
      %p172 = scmp.eq.s32.totalorder %s21, 0
      %p173 = por %p171, %p172
      %p174 = scmp.ne.s32.totalorder %s162, %s163
      %p175 = scmp.eq.s32.totalorder %s22, 1
      %p176 = por %p174, %p175
      %p178 = scmp.ne.s32.totalorder %s163, %s177
      %p179 = scmp.eq.s32.totalorder %s22, 0
      %p180 = por %p178, %p179
      %s181 = ssub.s32 %s16, %s23
      %p182 = scmp.eq.s32.totalorder %s181, 0
      %s184 = sadd.s32 %s183, 1
      %s185 = scalar_select %p182, %s183, %s184
      %p188 = pneg %p182
      %p189 = scmp.eq.s32.totalorder %s16, 1
      %p190 = por %p188, %p189
      %p191 = scmp.ne.s32.totalorder %s183, %s186
      %p192 = scmp.eq.s32.totalorder %s16, 0
      %p193 = por %p191, %p192
      %p194 = scmp.ne.s32.totalorder %s183, %s186
      %p195 = scmp.eq.s32.totalorder %s21, 1
      %p196 = por %p194, %p195
      %p197 = scmp.ne.s32.totalorder %s186, %s187
      %p198 = scmp.eq.s32.totalorder %s21, 0
      %p199 = por %p197, %p198
      %p200 = scmp.ne.s32.totalorder %s186, %s187
      %p201 = scmp.eq.s32.totalorder %s22, 1
      %p202 = por %p200, %p201
      %p204 = scmp.ne.s32.totalorder %s187, %s203
      %p205 = scmp.eq.s32.totalorder %s22, 0
      %p206 = por %p204, %p205
      %p207 = scmp.le.s32.totalorder 1, %s16
      %p208 = scmp.lt.s32.totalorder %s16, 3
      %p209 = pnand %p207, %p208
      %p210 = pneg %p209
      // Predicated region
      $region9: #{tpu_custom_call.1} parent=5 // pred_check
        _
      $region10: #{tpu_custom_call.1} parent=5 // pred_check_branch
        %212 = sbr.rel (%p209) target = $region12
      $region11: #{tpu_custom_call.1} parent=5 // pred_region
        %s213 = ssub.s32 %s16, 1
        // Predicated region
        $region13: #{tpu_custom_call.1} parent=11 // pred_check
          %p214 = pneg %p89
        $region14: #{tpu_custom_call.1} parent=11 // pred_check_branch
          %216 = sbr.rel (%p214) target = $region16
        $region15: #{tpu_custom_call.1} parent=11 // pred_region
          _
        $region16: #{tpu_custom_call.1} parent=11 // pred_fallthru
          _
        // Predicated region
        $region17: #{tpu_custom_call.1} parent=11 // pred_check
          %p217 = pneg %p110
        $region18: #{tpu_custom_call.1} parent=11 // pred_check_branch
          %219 = sbr.rel (%p217) target = $region20
        $region19: #{tpu_custom_call.1} parent=11 // pred_region
          _
        $region20: #{tpu_custom_call.1} parent=11 // pred_fallthru
          _
        // Predicated region
        $region21: #{tpu_custom_call.1} parent=11 // pred_check
          %p220 = pneg %p131
        $region22: #{tpu_custom_call.1} parent=11 // pred_check_branch
          %222 = sbr.rel (%p220) target = $region24
        $region23: #{tpu_custom_call.1} parent=11 // pred_region
          _
        $region24: #{tpu_custom_call.1} parent=11 // pred_fallthru
          _
        // Predicated region
        $region25: #{tpu_custom_call.1} parent=11 // pred_check
          %p223 = pneg %p152
        $region26: #{tpu_custom_call.1} parent=11 // pred_check_branch
          %225 = sbr.rel (%p223) target = $region28
        $region27: #{tpu_custom_call.1} parent=11 // pred_region
          _
        $region28: #{tpu_custom_call.1} parent=11 // pred_fallthru
          _
        // Predicated region
        $region29: #{tpu_custom_call.1} parent=11 // pred_check
          %p226 = pneg %p173
        $region30: #{tpu_custom_call.1} parent=11 // pred_check_branch
          %228 = sbr.rel (%p226) target = $region32
        $region31: #{tpu_custom_call.1} parent=11 // pred_region
          _
        $region32: #{tpu_custom_call.1} parent=11 // pred_fallthru
          _
      $region12: #{tpu_custom_call.1} parent=5 // pred_fallthru
        _
      %p229 = scmp.lt.s32.totalorder %s16, 2
      // Predicated region
      $region33: #{tpu_custom_call.1} parent=5 // pred_check
        %p230 = pneg %p229
      $region34: #{tpu_custom_call.1} parent=5 // pred_check_branch
        %232 = sbr.rel (%p230) target = $region36
      $region35: #{tpu_custom_call.1} parent=5 // pred_region
        // Predicated region
        $region37: #{tpu_custom_call.1} parent=35 // pred_check
          %p233 = pneg %p36
        $region38: #{tpu_custom_call.1} parent=35 // pred_check_branch
          %235 = sbr.rel (%p233) target = $region40
        $region39: #{tpu_custom_call.1} parent=35 // pred_region
          %p236 = scmp.lt.s32.totalorder %s16, 1
          %s237 = scalar_select %p236, %s16, 1
          %s238 = smul.addr %s237, 8
          %s239 = scalar_lea.vmem %s0, %s238
        $region40: #{tpu_custom_call.1} parent=35 // pred_fallthru
          _
        // Predicated region
        $region41: #{tpu_custom_call.1} parent=35 // pred_check
          %p240 = pneg %p62
        $region42: #{tpu_custom_call.1} parent=35 // pred_check_branch
          %242 = sbr.rel (%p240) target = $region44
        $region43: #{tpu_custom_call.1} parent=35 // pred_region
          %p243 = scmp.lt.s32.totalorder %s16, 1
          %s244 = scalar_select %p243, %s16, 1
          %s245 = smul.addr %s244, 8
          %s246 = scalar_lea.vmem %s1, %s245
        $region44: #{tpu_custom_call.1} parent=35 // pred_fallthru
          _
      $region36: #{tpu_custom_call.1} parent=5 // pred_fallthru
        _
      %p247 = scmp.le.s32.totalorder 1, %s16
      %p248 = scmp.lt.s32.totalorder %s16, 3
      %p249 = pnand %p247, %p248
      %p250 = pneg %p249
      // Predicated region
      $region45: #{tpu_custom_call.1} parent=5 // pred_check
        _
      $region46: #{tpu_custom_call.1} parent=5 // pred_check_branch
        %252 = sbr.rel (%p249) target = $region48
      $region47: #{tpu_custom_call.1} parent=5 // pred_region
        %s253 = ssub.s32 %s16, 1
        %p254 = scmp.lt.s32.totalorder %s21, 1
        %s255 = scalar_select %p254, %s21, 1
        %s256 = smul.addr %s255, 8
        %s257 = scalar_lea.vmem %s0, %s256
        %p258 = pneg %p42
        %p259 = pneg %p39
        %p260 = scmp.lt.s32.totalorder %s21, 1
        %s261 = scalar_select %p260, %s21, 1
        %s262 = smul.addr %s261, 8
        %s263 = scalar_lea.vmem %s1, %s262
        %p264 = pneg %p68
        %p265 = pneg %p65
        %p266 = pneg %p89
        %p267 = pneg %p86
        %p268 = pneg %p110
        %p269 = pneg %p107
        %p270 = pneg %p131
        %p271 = pneg %p128
        %p272 = pneg %p152
        %p273 = pneg %p149
        %p274 = pneg %p173
        %p275 = pneg %p170
        %p276 = pneg %p199
        %p277 = pneg %p196
        %s278 = sand.u32 %s186, 1
        %s279 = scalar_lea.sflag [#allocation3], %s278
        %s280 = sand.u32 %s186, 1
        %s281 = smul.addr %s280, 8
        %s282 = scalar_lea.vmem [#allocation2], %s281
        %p283 = scmp.lt.s32.totalorder %s21, 1
        %s284 = scalar_select %p283, %s21, 1
        %s285 = smul.addr %s284, 8
        %s286 = scalar_lea.vmem %s0, %s285
        %p287 = scmp.lt.s32.totalorder %s21, 1
        %s288 = scalar_select %p287, %s21, 1
        %s289 = smul.addr %s288, 8
        %s290 = scalar_lea.vmem %s1, %s289
        %v292 = vld [vmem:[%s286] sm:$0xff]
        %v293 = vld [vmem:[%s290] sm:$0xff]
        %vm294 = vcmp.eq.f32.partialorder %v293, 0.0
        %v295 = vsel %vm294, -1e+20, 0.0
        %v296 = vld [vmem:[%s6] sm:$0xff]
        %v297 = vpack.c.bf16 %v292, %v292
        %v298 = vld [vmem:[%s2] sm:$0xf]
        %v299 = vld [vmem:[%s2 + $0x4] sm:$0xf]
        %v300 = vld [vmem:[%s2 + $0x8] sm:$0xf]
        %v301 = vld [vmem:[%s2 + $0xc] sm:$0xf]
        %v306 = vunpack.c.l.b16 %v298
        %v307 = vunpack.c.l.b16 %v299
        %v308 = vunpack.c.l.b16 %v300
        %v309 = vunpack.c.l.b16 %v301
        %v310 = vpack.c.b16 %v307, %v306
        %v311 = vpack.c.b16 %v309, %v308
        %vm314 = vcmask 261120
        %v316 = vsel %vm314, %v297, 0
        %318 = vmatprep.subr.bf16.mxu0 0
        %319 = vmatpush1.bf16.msra.mxu0 %v310
        %320 = vmatprep.subr.bf16.mxu0 0
        %321 = vmatpush1.bf16.msra.mxu0 %v311
        %322 = vmatprep.subr.bf16.mxu0 0
        %323 = vmatpush1.bf16.msra.mxu0 0
        %324 = vmatprep.subr.bf16.mxu0 0
        %325 = vmatpush1.bf16.msra.mxu0 0
        %326 = vmatprep.subr.bf16.mxu0 0
        %327 = vmatpush1.bf16.msra.mxu0 0
        %328 = vmatprep.subr.bf16.mxu0 0
        %329 = vmatpush1.bf16.msra.mxu0 0
        %330 = vmatprep.subr.bf16.mxu0 0
        %331 = vmatpush1.bf16.msra.mxu0 0
        %332 = vmatprep.subr.bf16.mxu0 0
        %333 = vmatpush1.bf16.msra.mxu0 0
        %334 = vmatprep.subr.bf16.mxu0 0
        %335 = vmatpush1.bf16.msra.mxu0 0
        %336 = vmatprep.subr.bf16.mxu0 0
        %337 = vmatpush1.bf16.msra.mxu0 0
        %338 = vmatprep.subr.bf16.mxu0 0
        %339 = vmatpush1.bf16.msra.mxu0 0
        %340 = vmatprep.subr.bf16.mxu0 0
        %341 = vmatpush1.bf16.msra.mxu0 0
        %342 = vmatprep.subr.bf16.mxu0 0
        %343 = vmatpush1.bf16.msra.mxu0 0
        %344 = vmatprep.subr.bf16.mxu0 0
        %345 = vmatpush1.bf16.msra.mxu0 0
        %346 = vmatprep.subr.bf16.mxu0 0
        %347 = vmatpush1.bf16.msra.mxu0 0
        %348 = vmatprep.subr.bf16.mxu0 0
        %349 = vmatpush1.bf16.msra.mxu0 0
        %350 = vmatprep.mubr.bf16.mxu0 0
        %351 = vmatmul.mubr.bf16.gmra.mrb[0].mxu0 %v316
        %v352 = vpop.f32.mrb[0].mxu0
        %v353 = vadd.f32 0.0, %v352
        %v354 = vpop.f32.mrb[0].mxu0
        %v355 = vpop.f32.mrb[0].mxu0
        %v356 = vpop.f32.mrb[0].mxu0
        %357 = vdwg.mxu0
        %359 = vrot.lane.b32.xlu0 %v353, 120
        %v360 = vpop.permute.xlu0 %359
        %362 = vrot.lane.b32.xlu0 %v353, 112
        %v363 = vpop.permute.xlu0 %362
        %365 = vrot.lane.b32.xlu0 %v353, 104
        %v366 = vpop.permute.xlu0 %365
        %v368 = vcombine.low %v353, %v363
        %v369 = vcombine.high %v353, %v363
        %v371 = vunpack.c.l.s4 1983009808
        %v372 = vunpack.c.0.s8 %v371
        %v373 = vlaneseq
        %v374 = vshrl.u32 %v373, 7
        %v375 = vsub.s32 %v372, %v374
        %v376 = vrot.slane %v368, %v375
        %v378 = vunpack.c.l.s4 1983009808
        %v379 = vunpack.c.0.s8 %v378
        %v380 = vlaneseq
        %v381 = vshrl.u32 %v380, 7
        %v382 = vsub.s32 %v379, %v381
        %v383 = vrot.slane %v369, %v382
        %v384 = vcombine.low %v360, %v366
        %v385 = vcombine.high %v360, %v366
        %v387 = vunpack.c.l.s4 1983009808
        %v388 = vunpack.c.0.s8 %v387
        %v389 = vlaneseq
        %v390 = vshrl.u32 %v389, 7
        %v391 = vsub.s32 %v388, %v390
        %v392 = vrot.slane %v384, %v391
        %v394 = vunpack.c.l.s4 1983009808
        %v395 = vunpack.c.0.s8 %v394
        %v396 = vlaneseq
        %v397 = vshrl.u32 %v396, 7
        %v398 = vsub.s32 %v395, %v397
        %v399 = vrot.slane %v385, %v398
        %v400 = vcombine.low %v376, %v392
        %v401 = vcombine.high %v376, %v392
        %v403 = vunpack.c.l.s4 1934713408
        %v404 = vunpack.c.0.s8 %v403
        %v405 = vlaneseq
        %v406 = vshrl.u32 %v405, 7
        %v407 = vsub.s32 %v404, %v406
        %v408 = vrot.slane %v400, %v407
        %v410 = vunpack.c.l.s4 1934713408
        %v411 = vunpack.c.0.s8 %v410
        %v412 = vlaneseq
        %v413 = vshrl.u32 %v412, 7
        %v414 = vsub.s32 %v411, %v413
        %v415 = vrot.slane %v401, %v414
        %v416 = vcombine.low %v383, %v399
        %v417 = vcombine.high %v383, %v399
        %v419 = vunpack.c.l.s4 1934713408
        %v420 = vunpack.c.0.s8 %v419
        %v421 = vlaneseq
        %v422 = vshrl.u32 %v421, 7
        %v423 = vsub.s32 %v420, %v422
        %v424 = vrot.slane %v416, %v423
        %v426 = vunpack.c.l.s4 1934713408
        %v427 = vunpack.c.0.s8 %v426
        %v428 = vlaneseq
        %v429 = vshrl.u32 %v428, 7
        %v430 = vsub.s32 %v427, %v429
        %v431 = vrot.slane %v417, %v430
        %v432 = vcombine.high %v408, 0.0
        %v433 = vcombine.high %v415, 0.0
        %v434 = vcombine.high %v424, 0.0
        %v435 = vcombine.high %v431, 0.0
        %436 = vrot.lane.b32.xlu0 %v353, 96
        %v437 = vpop.permute.xlu0 %436
        %438 = vrot.lane.b32.xlu0 %v360, 96
        %v439 = vpop.permute.xlu0 %438
        %440 = vrot.lane.b32.xlu0 %v363, 96
        %v441 = vpop.permute.xlu0 %440
        %442 = vrot.lane.b32.xlu0 %v366, 96
        %v443 = vpop.permute.xlu0 %442
        %v448 = vcombine.low %v437, %v441
        %v449 = vcombine.high %v437, %v441
        %v451 = vunpack.c.l.s4 1983009808
        %v452 = vunpack.c.0.s8 %v451
        %v453 = vlaneseq
        %v454 = vshrl.u32 %v453, 7
        %v455 = vsub.s32 %v452, %v454
        %v456 = vrot.slane %v448, %v455
        %v458 = vunpack.c.l.s4 1983009808
        %v459 = vunpack.c.0.s8 %v458
        %v460 = vlaneseq
        %v461 = vshrl.u32 %v460, 7
        %v462 = vsub.s32 %v459, %v461
        %v463 = vrot.slane %v449, %v462
        %v464 = vcombine.low %v439, %v443
        %v465 = vcombine.high %v439, %v443
        %v467 = vunpack.c.l.s4 1983009808
        %v468 = vunpack.c.0.s8 %v467
        %v469 = vlaneseq
        %v470 = vshrl.u32 %v469, 7
        %v471 = vsub.s32 %v468, %v470
        %v472 = vrot.slane %v464, %v471
        %v474 = vunpack.c.l.s4 1983009808
        %v475 = vunpack.c.0.s8 %v474
        %v476 = vlaneseq
        %v477 = vshrl.u32 %v476, 7
        %v478 = vsub.s32 %v475, %v477
        %v479 = vrot.slane %v465, %v478
        %v480 = vcombine.low %v456, %v472
        %v481 = vcombine.high %v456, %v472
        %v483 = vunpack.c.l.s4 1934713408
        %v484 = vunpack.c.0.s8 %v483
        %v485 = vlaneseq
        %v486 = vshrl.u32 %v485, 7
        %v487 = vsub.s32 %v484, %v486
        %v488 = vrot.slane %v480, %v487
        %v490 = vunpack.c.l.s4 1934713408
        %v491 = vunpack.c.0.s8 %v490
        %v492 = vlaneseq
        %v493 = vshrl.u32 %v492, 7
        %v494 = vsub.s32 %v491, %v493
        %v495 = vrot.slane %v481, %v494
        %v496 = vcombine.low %v463, %v479
        %v497 = vcombine.high %v463, %v479
        %v499 = vunpack.c.l.s4 1934713408
        %v500 = vunpack.c.0.s8 %v499
        %v501 = vlaneseq
        %v502 = vshrl.u32 %v501, 7
        %v503 = vsub.s32 %v500, %v502
        %v504 = vrot.slane %v496, %v503
        %v506 = vunpack.c.l.s4 1934713408
        %v507 = vunpack.c.0.s8 %v506
        %v508 = vlaneseq
        %v509 = vshrl.u32 %v508, 7
        %v510 = vsub.s32 %v507, %v509
        %v511 = vrot.slane %v497, %v510
        %v512 = vcombine.high %v488, 0.0
        %v513 = vcombine.high %v495, 0.0
        %v514 = vcombine.high %v504, 0.0
        %v515 = vcombine.high %v511, 0.0
        %516 = vrot.lane.b32.xlu0 %v353, 64
        %v517 = vpop.permute.xlu0 %516
        %518 = vrot.lane.b32.xlu0 %v360, 64
        %v519 = vpop.permute.xlu0 %518
        %520 = vrot.lane.b32.xlu0 %v363, 64
        %v521 = vpop.permute.xlu0 %520
        %522 = vrot.lane.b32.xlu0 %v366, 64
        %v523 = vpop.permute.xlu0 %522
        %v528 = vcombine.low %v517, %v521
        %v529 = vcombine.high %v517, %v521
        %v531 = vunpack.c.l.s4 1983009808
        %v532 = vunpack.c.0.s8 %v531
        %v533 = vlaneseq
        %v534 = vshrl.u32 %v533, 7
        %v535 = vsub.s32 %v532, %v534
        %v536 = vrot.slane %v528, %v535
        %v538 = vunpack.c.l.s4 1983009808
        %v539 = vunpack.c.0.s8 %v538
        %v540 = vlaneseq
        %v541 = vshrl.u32 %v540, 7
        %v542 = vsub.s32 %v539, %v541
        %v543 = vrot.slane %v529, %v542
        %v544 = vcombine.low %v519, %v523
        %v545 = vcombine.high %v519, %v523
        %v547 = vunpack.c.l.s4 1983009808
        %v548 = vunpack.c.0.s8 %v547
        %v549 = vlaneseq
        %v550 = vshrl.u32 %v549, 7
        %v551 = vsub.s32 %v548, %v550
        %v552 = vrot.slane %v544, %v551
        %v554 = vunpack.c.l.s4 1983009808
        %v555 = vunpack.c.0.s8 %v554
        %v556 = vlaneseq
        %v557 = vshrl.u32 %v556, 7
        %v558 = vsub.s32 %v555, %v557
        %v559 = vrot.slane %v545, %v558
        %v560 = vcombine.low %v536, %v552
        %v561 = vcombine.high %v536, %v552
        %v563 = vunpack.c.l.s4 1934713408
        %v564 = vunpack.c.0.s8 %v563
        %v565 = vlaneseq
        %v566 = vshrl.u32 %v565, 7
        %v567 = vsub.s32 %v564, %v566
        %v568 = vrot.slane %v560, %v567
        %v570 = vunpack.c.l.s4 1934713408
        %v571 = vunpack.c.0.s8 %v570
        %v572 = vlaneseq
        %v573 = vshrl.u32 %v572, 7
        %v574 = vsub.s32 %v571, %v573
        %v575 = vrot.slane %v561, %v574
        %v576 = vcombine.low %v543, %v559
        %v577 = vcombine.high %v543, %v559
        %v579 = vunpack.c.l.s4 1934713408
        %v580 = vunpack.c.0.s8 %v579
        %v581 = vlaneseq
        %v582 = vshrl.u32 %v581, 7
        %v583 = vsub.s32 %v580, %v582
        %v584 = vrot.slane %v576, %v583
        %v586 = vunpack.c.l.s4 1934713408
        %v587 = vunpack.c.0.s8 %v586
        %v588 = vlaneseq
        %v589 = vshrl.u32 %v588, 7
        %v590 = vsub.s32 %v587, %v589
        %v591 = vrot.slane %v577, %v590
        %v592 = vcombine.high %v568, 0.0
        %v593 = vcombine.high %v575, 0.0
        %v594 = vcombine.high %v584, 0.0
        %v595 = vcombine.high %v591, 0.0
        %v596 = vpack.c.bf16 %v408, %v408
        %v597 = vpack.c.bf16 %v432, %v432
        %v598 = vpack.c.bf16 %v415, %v415
        %v599 = vpack.c.bf16 %v433, %v433
        %v600 = vpack.c.bf16 %v424, %v424
        %v601 = vpack.c.bf16 %v434, %v434
        %v602 = vpack.c.bf16 %v431, %v431
        %v603 = vpack.c.bf16 %v435, %v435
        %v604 = vpack.c.bf16 %v488, %v488
        %v605 = vpack.c.bf16 %v512, %v512
        %v606 = vpack.c.bf16 %v495, %v495
        %v607 = vpack.c.bf16 %v513, %v513
        %v608 = vpack.c.bf16 %v504, %v504
        %v609 = vpack.c.bf16 %v514, %v514
        %v610 = vpack.c.bf16 %v511, %v511
        %v611 = vpack.c.bf16 %v515, %v515
        %v612 = vcombine.low %v596, %v600
        %v614 = vunpack.c.l.s4 1983009808
        %v615 = vunpack.c.0.s8 %v614
        %v616 = vlaneseq
        %v617 = vshrl.u32 %v616, 7
        %v618 = vsub.s32 %v615, %v617
        %v619 = vrot.slane %v612, %v618
        %v620 = vcombine.low %v598, %v602
        %v622 = vunpack.c.l.s4 1983009808
        %v623 = vunpack.c.0.s8 %v622
        %v624 = vlaneseq
        %v625 = vshrl.u32 %v624, 7
        %v626 = vsub.s32 %v623, %v625
        %v627 = vrot.slane %v620, %v626
        %v628 = vcombine.low %v619, %v627
        %v630 = vunpack.c.l.s4 1934713408
        %v631 = vunpack.c.0.s8 %v630
        %v632 = vlaneseq
        %v633 = vshrl.u32 %v632, 7
        %v634 = vsub.s32 %v631, %v633
        %v635 = vrot.slane %v628, %v634
        %v636 = vcombine.high %v635, 0
        %v637 = vcombine.low %v597, %v601
        %v639 = vunpack.c.l.s4 1983009808
        %v640 = vunpack.c.0.s8 %v639
        %v641 = vlaneseq
        %v642 = vshrl.u32 %v641, 7
        %v643 = vsub.s32 %v640, %v642
        %v644 = vrot.slane %v637, %v643
        %v645 = vcombine.low %v599, %v603
        %v647 = vunpack.c.l.s4 1983009808
        %v648 = vunpack.c.0.s8 %v647
        %v649 = vlaneseq
        %v650 = vshrl.u32 %v649, 7
        %v651 = vsub.s32 %v648, %v650
        %v652 = vrot.slane %v645, %v651
        %v653 = vcombine.low %v644, %v652
        %v655 = vunpack.c.l.s4 1934713408
        %v656 = vunpack.c.0.s8 %v655
        %v657 = vlaneseq
        %v658 = vshrl.u32 %v657, 7
        %v659 = vsub.s32 %v656, %v658
        %v660 = vrot.slane %v653, %v659
        %v661 = vcombine.high %v660, 0
        %v664 = vpack.i.b16 %v660, %v635
        %v665 = vshrl.u32 %v635, 16
        %v666 = vshrl.u32 %v660, 16
        %v667 = vpack.i.b16 %v666, %v665
        %v670 = vpack.i.b16 %v661, %v636
        %v671 = vshrl.u32 %v636, 16
        %v672 = vshrl.u32 %v661, 16
        %v673 = vpack.i.b16 %v672, %v671
        %674 = vxpose.xlu0.c.b16.start [1/8] %v604, 128
        %675 = vxpose.xlu0.c.b16.cont [2/8] 0, 128
        %676 = vxpose.xlu0.c.b16.cont [3/8] 0, 128
        %677 = vxpose.xlu0.c.b16.cont [4/8] 0, 128
        %678 = vxpose.xlu0.c.b16.cont [5/8] 0, 128
        %679 = vxpose.xlu0.c.b16.cont [6/8] 0, 128
        %680 = vxpose.xlu0.c.b16.cont [7/8] 0, 128
        %681 = vxpose.xlu0.c.b16.end [8/8] 0, 128
        %v682 = vpop.trf.xlu0
        %v683 = vpop.trf.xlu0
        %v684 = vpop.trf.xlu0
        %v685 = vpop.trf.xlu0
        %v686 = vpop.trf.xlu0
        %v687 = vpop.trf.xlu0
        %v688 = vpop.trf.xlu0
        %v689 = vpop.trf.xlu0
        %690 = vxpose.xlu0.c.b16.start [1/8] %v605, 128
        %691 = vxpose.xlu0.c.b16.cont [2/8] 0, 128
        %692 = vxpose.xlu0.c.b16.cont [3/8] 0, 128
        %693 = vxpose.xlu0.c.b16.cont [4/8] 0, 128
        %694 = vxpose.xlu0.c.b16.cont [5/8] 0, 128
        %695 = vxpose.xlu0.c.b16.cont [6/8] 0, 128
        %696 = vxpose.xlu0.c.b16.cont [7/8] 0, 128
        %697 = vxpose.xlu0.c.b16.end [8/8] 0, 128
        %v698 = vpop.trf.xlu0
        %v699 = vpop.trf.xlu0
        %v700 = vpop.trf.xlu0
        %v701 = vpop.trf.xlu0
        %v702 = vpop.trf.xlu0
        %v703 = vpop.trf.xlu0
        %v704 = vpop.trf.xlu0
        %v705 = vpop.trf.xlu0
        %706 = vxpose.xlu0.c.b16.start [1/8] %v606, 128
        %707 = vxpose.xlu0.c.b16.cont [2/8] 0, 128
        %708 = vxpose.xlu0.c.b16.cont [3/8] 0, 128
        %709 = vxpose.xlu0.c.b16.cont [4/8] 0, 128
        %710 = vxpose.xlu0.c.b16.cont [5/8] 0, 128
        %711 = vxpose.xlu0.c.b16.cont [6/8] 0, 128
        %712 = vxpose.xlu0.c.b16.cont [7/8] 0, 128
        %713 = vxpose.xlu0.c.b16.end [8/8] 0, 128
        %v714 = vpop.trf.xlu0
        %v715 = vpop.trf.xlu0
        %v716 = vpop.trf.xlu0
        %v717 = vpop.trf.xlu0
        %v718 = vpop.trf.xlu0
        %v719 = vpop.trf.xlu0
        %v720 = vpop.trf.xlu0
        %v721 = vpop.trf.xlu0
        %722 = vxpose.xlu0.c.b16.start [1/8] %v607, 128
        %723 = vxpose.xlu0.c.b16.cont [2/8] 0, 128
        %724 = vxpose.xlu0.c.b16.cont [3/8] 0, 128
        %725 = vxpose.xlu0.c.b16.cont [4/8] 0, 128
        %726 = vxpose.xlu0.c.b16.cont [5/8] 0, 128
        %727 = vxpose.xlu0.c.b16.cont [6/8] 0, 128
        %728 = vxpose.xlu0.c.b16.cont [7/8] 0, 128
        %729 = vxpose.xlu0.c.b16.end [8/8] 0, 128
        %v730 = vpop.trf.xlu0
        %v731 = vpop.trf.xlu0
        %v732 = vpop.trf.xlu0
        %v733 = vpop.trf.xlu0
        %v734 = vpop.trf.xlu0
        %v735 = vpop.trf.xlu0
        %v736 = vpop.trf.xlu0
        %v737 = vpop.trf.xlu0
        %738 = vxpose.xlu0.c.b16.start [1/8] %v608, 128
        %739 = vxpose.xlu0.c.b16.cont [2/8] 0, 128
        %740 = vxpose.xlu0.c.b16.cont [3/8] 0, 128
        %741 = vxpose.xlu0.c.b16.cont [4/8] 0, 128
        %742 = vxpose.xlu0.c.b16.cont [5/8] 0, 128
        %743 = vxpose.xlu0.c.b16.cont [6/8] 0, 128
        %744 = vxpose.xlu0.c.b16.cont [7/8] 0, 128
        %745 = vxpose.xlu0.c.b16.end [8/8] 0, 128
        %v746 = vpop.trf.xlu0
        %v747 = vpop.trf.xlu0
        %v748 = vpop.trf.xlu0
        %v749 = vpop.trf.xlu0
        %v750 = vpop.trf.xlu0
        %v751 = vpop.trf.xlu0
        %v752 = vpop.trf.xlu0
        %v753 = vpop.trf.xlu0
        %754 = vxpose.xlu0.c.b16.start [1/8] %v609, 128
        %755 = vxpose.xlu0.c.b16.cont [2/8] 0, 128
        %756 = vxpose.xlu0.c.b16.cont [3/8] 0, 128
        %757 = vxpose.xlu0.c.b16.cont [4/8] 0, 128
        %758 = vxpose.xlu0.c.b16.cont [5/8] 0, 128
        %759 = vxpose.xlu0.c.b16.cont [6/8] 0, 128
        %760 = vxpose.xlu0.c.b16.cont [7/8] 0, 128
        %761 = vxpose.xlu0.c.b16.end [8/8] 0, 128
        %v762 = vpop.trf.xlu0
        %v763 = vpop.trf.xlu0
        %v764 = vpop.trf.xlu0
        %v765 = vpop.trf.xlu0
        %v766 = vpop.trf.xlu0
        %v767 = vpop.trf.xlu0
        %v768 = vpop.trf.xlu0
        %v769 = vpop.trf.xlu0
        %770 = vxpose.xlu0.c.b16.start [1/8] %v610, 128
        %771 = vxpose.xlu0.c.b16.cont [2/8] 0, 128
        %772 = vxpose.xlu0.c.b16.cont [3/8] 0, 128
        %773 = vxpose.xlu0.c.b16.cont [4/8] 0, 128
        %774 = vxpose.xlu0.c.b16.cont [5/8] 0, 128
        %775 = vxpose.xlu0.c.b16.cont [6/8] 0, 128
        %776 = vxpose.xlu0.c.b16.cont [7/8] 0, 128
        %777 = vxpose.xlu0.c.b16.end [8/8] 0, 128
        %v778 = vpop.trf.xlu0
        %v779 = vpop.trf.xlu0
        %v780 = vpop.trf.xlu0
        %v781 = vpop.trf.xlu0
        %v782 = vpop.trf.xlu0
        %v783 = vpop.trf.xlu0
        %v784 = vpop.trf.xlu0
        %v785 = vpop.trf.xlu0
        %786 = vxpose.xlu0.c.b16.start [1/8] %v611, 128
        %787 = vxpose.xlu0.c.b16.cont [2/8] 0, 128
        %788 = vxpose.xlu0.c.b16.cont [3/8] 0, 128
        %789 = vxpose.xlu0.c.b16.cont [4/8] 0, 128
        %790 = vxpose.xlu0.c.b16.cont [5/8] 0, 128
        %791 = vxpose.xlu0.c.b16.cont [6/8] 0, 128
        %792 = vxpose.xlu0.c.b16.cont [7/8] 0, 128
        %793 = vxpose.xlu0.c.b16.end [8/8] 0, 128
        %v794 = vpop.trf.xlu0
        %v795 = vpop.trf.xlu0
        %v796 = vpop.trf.xlu0
        %v797 = vpop.trf.xlu0
        %v798 = vpop.trf.xlu0
        %v799 = vpop.trf.xlu0
        %v800 = vpop.trf.xlu0
        %v801 = vpop.trf.xlu0
        %v802 = vcombine.low %v682, %v746
        %v804 = vunpack.c.l.s4 1983009808
        %v805 = vunpack.c.0.s8 %v804
        %v806 = vlaneseq
        %v807 = vshrl.u32 %v806, 7
        %v808 = vsub.s32 %v805, %v807
        %v809 = vrot.slane %v802, %v808
        %v810 = vcombine.low %v714, %v778
        %v812 = vunpack.c.l.s4 1983009808
        %v813 = vunpack.c.0.s8 %v812
        %v814 = vlaneseq
        %v815 = vshrl.u32 %v814, 7
        %v816 = vsub.s32 %v813, %v815
        %v817 = vrot.slane %v810, %v816
        %v818 = vcombine.low %v809, %v817
        %v819 = vcombine.high %v809, %v817
        %v821 = vunpack.c.l.s4 1934713408
        %v822 = vunpack.c.0.s8 %v821
        %v823 = vlaneseq
        %v824 = vshrl.u32 %v823, 7
        %v825 = vsub.s32 %v822, %v824
        %v826 = vrot.slane %v818, %v825
        %v828 = vunpack.c.l.s4 1934713408
        %v829 = vunpack.c.0.s8 %v828
        %v830 = vlaneseq
        %v831 = vshrl.u32 %v830, 7
        %v832 = vsub.s32 %v829, %v831
        %v833 = vrot.slane %v819, %v832
        %v834 = vcombine.high %v826, 0
        %v835 = vcombine.high %v833, 0
        %v836 = vcombine.low %v698, %v762
        %v838 = vunpack.c.l.s4 1983009808
        %v839 = vunpack.c.0.s8 %v838
        %v840 = vlaneseq
        %v841 = vshrl.u32 %v840, 7
        %v842 = vsub.s32 %v839, %v841
        %v843 = vrot.slane %v836, %v842
        %v844 = vcombine.low %v730, %v794
        %v846 = vunpack.c.l.s4 1983009808
        %v847 = vunpack.c.0.s8 %v846
        %v848 = vlaneseq
        %v849 = vshrl.u32 %v848, 7
        %v850 = vsub.s32 %v847, %v849
        %v851 = vrot.slane %v844, %v850
        %v852 = vcombine.low %v843, %v851
        %v853 = vcombine.high %v843, %v851
        %v855 = vunpack.c.l.s4 1934713408
        %v856 = vunpack.c.0.s8 %v855
        %v857 = vlaneseq
        %v858 = vshrl.u32 %v857, 7
        %v859 = vsub.s32 %v856, %v858
        %v860 = vrot.slane %v852, %v859
        %v862 = vunpack.c.l.s4 1934713408
        %v863 = vunpack.c.0.s8 %v862
        %v864 = vlaneseq
        %v865 = vshrl.u32 %v864, 7
        %v866 = vsub.s32 %v863, %v865
        %v867 = vrot.slane %v853, %v866
        %v868 = vcombine.high %v860, 0
        %v869 = vcombine.high %v867, 0
        %v872 = vpack.i.b16 %v860, %v826
        %v874 = vshrl.u32 %v826, 16
        %v875 = vshrl.u32 %v860, 16
        %v876 = vpack.i.b16 %v875, %v874
        %v880 = vpack.i.b16 %v868, %v834
        %v882 = vshrl.u32 %v834, 16
        %v883 = vshrl.u32 %v868, 16
        %v884 = vpack.i.b16 %v883, %v882
        %v888 = vpack.i.b16 %v867, %v833
        %v890 = vshrl.u32 %v833, 16
        %v891 = vshrl.u32 %v867, 16
        %v892 = vpack.i.b16 %v891, %v890
        %v896 = vpack.i.b16 %v869, %v835
        %v898 = vshrl.u32 %v835, 16
        %v899 = vshrl.u32 %v869, 16
        %v900 = vpack.i.b16 %v899, %v898
        %902 = vxpose.xlu0.c.b16.start [1/8] %v872, 128
        %903 = vxpose.xlu0.c.b16.cont [2/8] 0, 128
        %904 = vxpose.xlu0.c.b16.cont [3/8] 0, 128
        %905 = vxpose.xlu0.c.b16.cont [4/8] 0, 128
        %906 = vxpose.xlu0.c.b16.cont [5/8] 0, 128
        %907 = vxpose.xlu0.c.b16.cont [6/8] 0, 128
        %908 = vxpose.xlu0.c.b16.cont [7/8] 0, 128
        %909 = vxpose.xlu0.c.b16.end [8/8] 0, 128
        %v910 = vpop.trf.xlu0
        %v911 = vpop.trf.xlu0
        %v912 = vpop.trf.xlu0
        %v913 = vpop.trf.xlu0
        %v914 = vpop.trf.xlu0
        %v915 = vpop.trf.xlu0
        %v916 = vpop.trf.xlu0
        %v917 = vpop.trf.xlu0
        %918 = vxpose.xlu0.c.b16.start [1/8] %v876, 128
        %919 = vxpose.xlu0.c.b16.cont [2/8] 0, 128
        %920 = vxpose.xlu0.c.b16.cont [3/8] 0, 128
        %921 = vxpose.xlu0.c.b16.cont [4/8] 0, 128
        %922 = vxpose.xlu0.c.b16.cont [5/8] 0, 128
        %923 = vxpose.xlu0.c.b16.cont [6/8] 0, 128
        %924 = vxpose.xlu0.c.b16.cont [7/8] 0, 128
        %925 = vxpose.xlu0.c.b16.end [8/8] 0, 128
        %v926 = vpop.trf.xlu0
        %v927 = vpop.trf.xlu0
        %v928 = vpop.trf.xlu0
        %v929 = vpop.trf.xlu0
        %v930 = vpop.trf.xlu0
        %v931 = vpop.trf.xlu0
        %v932 = vpop.trf.xlu0
        %v933 = vpop.trf.xlu0
        %934 = vxpose.xlu0.c.b16.start [1/8] %v880, 128
        %935 = vxpose.xlu0.c.b16.cont [2/8] 0, 128
        %936 = vxpose.xlu0.c.b16.cont [3/8] 0, 128
        %937 = vxpose.xlu0.c.b16.cont [4/8] 0, 128
        %938 = vxpose.xlu0.c.b16.cont [5/8] 0, 128
        %939 = vxpose.xlu0.c.b16.cont [6/8] 0, 128
        %940 = vxpose.xlu0.c.b16.cont [7/8] 0, 128
        %941 = vxpose.xlu0.c.b16.end [8/8] 0, 128
        %v942 = vpop.trf.xlu0
        %v943 = vpop.trf.xlu0
        %v944 = vpop.trf.xlu0
        %v945 = vpop.trf.xlu0
        %v946 = vpop.trf.xlu0
        %v947 = vpop.trf.xlu0
        %v948 = vpop.trf.xlu0
        %v949 = vpop.trf.xlu0
        %950 = vxpose.xlu0.c.b16.start [1/8] %v884, 128
        %951 = vxpose.xlu0.c.b16.cont [2/8] 0, 128
        %952 = vxpose.xlu0.c.b16.cont [3/8] 0, 128
        %953 = vxpose.xlu0.c.b16.cont [4/8] 0, 128
        %954 = vxpose.xlu0.c.b16.cont [5/8] 0, 128
        %955 = vxpose.xlu0.c.b16.cont [6/8] 0, 128
        %956 = vxpose.xlu0.c.b16.cont [7/8] 0, 128
        %957 = vxpose.xlu0.c.b16.end [8/8] 0, 128
        %v958 = vpop.trf.xlu0
        %v959 = vpop.trf.xlu0
        %v960 = vpop.trf.xlu0
        %v961 = vpop.trf.xlu0
        %v962 = vpop.trf.xlu0
        %v963 = vpop.trf.xlu0
        %v964 = vpop.trf.xlu0
        %v965 = vpop.trf.xlu0
        %966 = vxpose.xlu0.c.b16.start [1/8] %v888, 128
        %967 = vxpose.xlu0.c.b16.cont [2/8] 0, 128
        %968 = vxpose.xlu0.c.b16.cont [3/8] 0, 128
        %969 = vxpose.xlu0.c.b16.cont [4/8] 0, 128
        %970 = vxpose.xlu0.c.b16.cont [5/8] 0, 128
        %971 = vxpose.xlu0.c.b16.cont [6/8] 0, 128
        %972 = vxpose.xlu0.c.b16.cont [7/8] 0, 128
        %973 = vxpose.xlu0.c.b16.end [8/8] 0, 128
        %v974 = vpop.trf.xlu0
        %v975 = vpop.trf.xlu0
        %v976 = vpop.trf.xlu0
        %v977 = vpop.trf.xlu0
        %v978 = vpop.trf.xlu0
        %v979 = vpop.trf.xlu0
        %v980 = vpop.trf.xlu0
        %v981 = vpop.trf.xlu0
        %982 = vxpose.xlu0.c.b16.start [1/8] %v892, 128
        %983 = vxpose.xlu0.c.b16.cont [2/8] 0, 128
        %984 = vxpose.xlu0.c.b16.cont [3/8] 0, 128
        %985 = vxpose.xlu0.c.b16.cont [4/8] 0, 128
        %986 = vxpose.xlu0.c.b16.cont [5/8] 0, 128
        %987 = vxpose.xlu0.c.b16.cont [6/8] 0, 128
        %988 = vxpose.xlu0.c.b16.cont [7/8] 0, 128
        %989 = vxpose.xlu0.c.b16.end [8/8] 0, 128
        %v990 = vpop.trf.xlu0
        %v991 = vpop.trf.xlu0
        %v992 = vpop.trf.xlu0
        %v993 = vpop.trf.xlu0
        %v994 = vpop.trf.xlu0
        %v995 = vpop.trf.xlu0
        %v996 = vpop.trf.xlu0
        %v997 = vpop.trf.xlu0
        %998 = vxpose.xlu0.c.b16.start [1/8] %v896, 128
        %999 = vxpose.xlu0.c.b16.cont [2/8] 0, 128
        %1000 = vxpose.xlu0.c.b16.cont [3/8] 0, 128
        %1001 = vxpose.xlu0.c.b16.cont [4/8] 0, 128
        %1002 = vxpose.xlu0.c.b16.cont [5/8] 0, 128
        %1003 = vxpose.xlu0.c.b16.cont [6/8] 0, 128
        %1004 = vxpose.xlu0.c.b16.cont [7/8] 0, 128
        %1005 = vxpose.xlu0.c.b16.end [8/8] 0, 128
        %v1006 = vpop.trf.xlu0
        %v1007 = vpop.trf.xlu0
        %v1008 = vpop.trf.xlu0
        %v1009 = vpop.trf.xlu0
        %v1010 = vpop.trf.xlu0
        %v1011 = vpop.trf.xlu0
        %v1012 = vpop.trf.xlu0
        %v1013 = vpop.trf.xlu0
        %1014 = vxpose.xlu0.c.b16.start [1/8] %v900, 128
        %1015 = vxpose.xlu0.c.b16.cont [2/8] 0, 128
        %1016 = vxpose.xlu0.c.b16.cont [3/8] 0, 128
        %1017 = vxpose.xlu0.c.b16.cont [4/8] 0, 128
        %1018 = vxpose.xlu0.c.b16.cont [5/8] 0, 128
        %1019 = vxpose.xlu0.c.b16.cont [6/8] 0, 128
        %1020 = vxpose.xlu0.c.b16.cont [7/8] 0, 128
        %1021 = vxpose.xlu0.c.b16.end [8/8] 0, 128
        %v1022 = vpop.trf.xlu0
        %v1023 = vpop.trf.xlu0
        %v1024 = vpop.trf.xlu0
        %v1025 = vpop.trf.xlu0
        %v1026 = vpop.trf.xlu0
        %v1027 = vpop.trf.xlu0
        %v1028 = vpop.trf.xlu0
        %v1029 = vpop.trf.xlu0
        %v1030 = vcombine.low %v910, %v974
        %v1032 = vunpack.c.l.s4 1983009808
        %v1033 = vunpack.c.0.s8 %v1032
        %v1034 = vlaneseq
        %v1035 = vshrl.u32 %v1034, 7
        %v1036 = vsub.s32 %v1033, %v1035
        %v1037 = vrot.slane %v1030, %v1036
        %v1038 = vcombine.low %v942, %v1006
        %v1040 = vunpack.c.l.s4 1983009808
        %v1041 = vunpack.c.0.s8 %v1040
        %v1042 = vlaneseq
        %v1043 = vshrl.u32 %v1042, 7
        %v1044 = vsub.s32 %v1041, %v1043
        %v1045 = vrot.slane %v1038, %v1044
        %v1046 = vcombine.low %v1037, %v1045
        %v1048 = vunpack.c.l.s4 1934713408
        %v1049 = vunpack.c.0.s8 %v1048
        %v1050 = vlaneseq
        %v1051 = vshrl.u32 %v1050, 7
        %v1052 = vsub.s32 %v1049, %v1051
        %v1053 = vrot.slane %v1046, %v1052
        %v1054 = vcombine.high %v1053, 0
        %v1055 = vcombine.low %v926, %v990
        %v1057 = vunpack.c.l.s4 1983009808
        %v1058 = vunpack.c.0.s8 %v1057
        %v1059 = vlaneseq
        %v1060 = vshrl.u32 %v1059, 7
        %v1061 = vsub.s32 %v1058, %v1060
        %v1062 = vrot.slane %v1055, %v1061
        %v1063 = vcombine.low %v958, %v1022
        %v1065 = vunpack.c.l.s4 1983009808
        %v1066 = vunpack.c.0.s8 %v1065
        %v1067 = vlaneseq
        %v1068 = vshrl.u32 %v1067, 7
        %v1069 = vsub.s32 %v1066, %v1068
        %v1070 = vrot.slane %v1063, %v1069
        %v1071 = vcombine.low %v1062, %v1070
        %v1073 = vunpack.c.l.s4 1934713408
        %v1074 = vunpack.c.0.s8 %v1073
        %v1075 = vlaneseq
        %v1076 = vshrl.u32 %v1075, 7
        %v1077 = vsub.s32 %v1074, %v1076
        %v1078 = vrot.slane %v1071, %v1077
        %v1079 = vcombine.high %v1078, 0
        %v1082 = vpack.i.b16 %v1078, %v1053
        %v1083 = vshrl.u32 %v1053, 16
        %v1084 = vshrl.u32 %v1078, 16
        %v1085 = vpack.i.b16 %v1084, %v1083
        %v1088 = vpack.i.b16 %v1079, %v1054
        %v1089 = vshrl.u32 %v1054, 16
        %v1090 = vshrl.u32 %v1079, 16
        %v1091 = vpack.i.b16 %v1090, %v1089
        %vm1092 = vcmask 64512
        %v1094 = vsel %vm1092, %v664, 0
        %vm1096 = vcmask 1043456
        %v1098 = vsel %vm1096, %v1082, 0
        %1100 = vmatprep.subr.bf16.mxu0 0
        %1101 = vmatpush1.bf16.msra.mxu0 %v1098
        %1102 = vmatprep.subr.bf16.mxu0 0
        %1103 = vmatpush1.bf16.msra.mxu0 0
        %1104 = vmatprep.subr.bf16.mxu0 0
        %1105 = vmatpush1.bf16.msra.mxu0 0
        %1106 = vmatprep.subr.bf16.mxu0 0
        %1107 = vmatpush1.bf16.msra.mxu0 0
        %1108 = vmatprep.subr.bf16.mxu0 0
        %1109 = vmatpush1.bf16.msra.mxu0 0
        %1110 = vmatprep.subr.bf16.mxu0 0
        %1111 = vmatpush1.bf16.msra.mxu0 0
        %1112 = vmatprep.subr.bf16.mxu0 0
        %1113 = vmatpush1.bf16.msra.mxu0 0
        %1114 = vmatprep.subr.bf16.mxu0 0
        %1115 = vmatpush1.bf16.msra.mxu0 0
        %1116 = vmatprep.subr.bf16.mxu0 0
        %1117 = vmatpush1.bf16.msra.mxu0 0
        %1118 = vmatprep.subr.bf16.mxu0 0
        %1119 = vmatpush1.bf16.msra.mxu0 0
        %1120 = vmatprep.subr.bf16.mxu0 0
        %1121 = vmatpush1.bf16.msra.mxu0 0
        %1122 = vmatprep.subr.bf16.mxu0 0
        %1123 = vmatpush1.bf16.msra.mxu0 0
        %1124 = vmatprep.subr.bf16.mxu0 0
        %1125 = vmatpush1.bf16.msra.mxu0 0
        %1126 = vmatprep.subr.bf16.mxu0 0
        %1127 = vmatpush1.bf16.msra.mxu0 0
        %1128 = vmatprep.subr.bf16.mxu0 0
        %1129 = vmatpush1.bf16.msra.mxu0 0
        %1130 = vmatprep.subr.bf16.mxu0 0
        %1131 = vmatpush1.bf16.msra.mxu0 0
        %1132 = vmatprep.mubr.bf16.mxu0 0
        %1133 = vmatmul.mubr.bf16.gmra.mrb[0].mxu0 %v1094
        %v1134 = vpop.f32.mrb[0].mxu0
        %v1135 = vadd.f32 %v295, %v1134
        %v1136 = vpop.f32.mrb[0].mxu0
        %v1137 = vpop.f32.mrb[0].mxu0
        %v1138 = vpop.f32.mrb[0].mxu0
        %1139 = vdwg.mxu0
        %v1141 = vsel %vm1092, %v667, 0
        %v1144 = vsel %vm1096, %v1085, 0
        %1146 = vmatprep.subr.bf16.mxu0 0
        %1147 = vmatpush1.bf16.msra.mxu0 %v1144
        %1148 = vmatprep.subr.bf16.mxu0 0
        %1149 = vmatpush1.bf16.msra.mxu0 0
        %1150 = vmatprep.subr.bf16.mxu0 0
        %1151 = vmatpush1.bf16.msra.mxu0 0
        %1152 = vmatprep.subr.bf16.mxu0 0
        %1153 = vmatpush1.bf16.msra.mxu0 0
        %1154 = vmatprep.subr.bf16.mxu0 0
        %1155 = vmatpush1.bf16.msra.mxu0 0
        %1156 = vmatprep.subr.bf16.mxu0 0
        %1157 = vmatpush1.bf16.msra.mxu0 0
        %1158 = vmatprep.subr.bf16.mxu0 0
        %1159 = vmatpush1.bf16.msra.mxu0 0
        %1160 = vmatprep.subr.bf16.mxu0 0
        %1161 = vmatpush1.bf16.msra.mxu0 0
        %1162 = vmatprep.subr.bf16.mxu0 0
        %1163 = vmatpush1.bf16.msra.mxu0 0
        %1164 = vmatprep.subr.bf16.mxu0 0
        %1165 = vmatpush1.bf16.msra.mxu0 0
        %1166 = vmatprep.subr.bf16.mxu0 0
        %1167 = vmatpush1.bf16.msra.mxu0 0
        %1168 = vmatprep.subr.bf16.mxu0 0
        %1169 = vmatpush1.bf16.msra.mxu0 0
        %1170 = vmatprep.subr.bf16.mxu0 0
        %1171 = vmatpush1.bf16.msra.mxu0 0
        %1172 = vmatprep.subr.bf16.mxu0 0
        %1173 = vmatpush1.bf16.msra.mxu0 0
        %1174 = vmatprep.subr.bf16.mxu0 0
        %1175 = vmatpush1.bf16.msra.mxu0 0
        %1176 = vmatprep.subr.bf16.mxu0 0
        %1177 = vmatpush1.bf16.msra.mxu0 0
        %1178 = vmatprep.mubr.bf16.mxu0 0
        %1179 = vmatmul.mubr.bf16.gmra.mrb[0].mxu0 %v1141
        %v1180 = vpop.f32.mrb[0].mxu0
        %v1181 = vadd.f32 %v295, %v1180
        %v1182 = vpop.f32.mrb[0].mxu0
        %v1183 = vpop.f32.mrb[0].mxu0
        %v1184 = vpop.f32.mrb[0].mxu0
        %1185 = vdwg.mxu0
        %v1187 = vsel %vm1092, %v670, 0
        %v1190 = vsel %vm1096, %v1088, 0
        %1192 = vmatprep.subr.bf16.mxu0 0
        %1193 = vmatpush1.bf16.msra.mxu0 %v1190
        %1194 = vmatprep.subr.bf16.mxu0 0
        %1195 = vmatpush1.bf16.msra.mxu0 0
        %1196 = vmatprep.subr.bf16.mxu0 0
        %1197 = vmatpush1.bf16.msra.mxu0 0
        %1198 = vmatprep.subr.bf16.mxu0 0
        %1199 = vmatpush1.bf16.msra.mxu0 0
        %1200 = vmatprep.subr.bf16.mxu0 0
        %1201 = vmatpush1.bf16.msra.mxu0 0
        %1202 = vmatprep.subr.bf16.mxu0 0
        %1203 = vmatpush1.bf16.msra.mxu0 0
        %1204 = vmatprep.subr.bf16.mxu0 0
        %1205 = vmatpush1.bf16.msra.mxu0 0
        %1206 = vmatprep.subr.bf16.mxu0 0
        %1207 = vmatpush1.bf16.msra.mxu0 0
        %1208 = vmatprep.subr.bf16.mxu0 0
        %1209 = vmatpush1.bf16.msra.mxu0 0
        %1210 = vmatprep.subr.bf16.mxu0 0
        %1211 = vmatpush1.bf16.msra.mxu0 0
        %1212 = vmatprep.subr.bf16.mxu0 0
        %1213 = vmatpush1.bf16.msra.mxu0 0
        %1214 = vmatprep.subr.bf16.mxu0 0
        %1215 = vmatpush1.bf16.msra.mxu0 0
        %1216 = vmatprep.subr.bf16.mxu0 0
        %1217 = vmatpush1.bf16.msra.mxu0 0
        %1218 = vmatprep.subr.bf16.mxu0 0
        %1219 = vmatpush1.bf16.msra.mxu0 0
        %1220 = vmatprep.subr.bf16.mxu0 0
        %1221 = vmatpush1.bf16.msra.mxu0 0
        %1222 = vmatprep.subr.bf16.mxu0 0
        %1223 = vmatpush1.bf16.msra.mxu0 0
        %1224 = vmatprep.mubr.bf16.mxu0 0
        %1225 = vmatmul.mubr.bf16.gmra.mrb[0].mxu0 %v1187
        %v1226 = vpop.f32.mrb[0].mxu0
        %v1227 = vadd.f32 %v295, %v1226
        %v1228 = vpop.f32.mrb[0].mxu0
        %v1229 = vpop.f32.mrb[0].mxu0
        %v1230 = vpop.f32.mrb[0].mxu0
        %1231 = vdwg.mxu0
        %v1233 = vsel %vm1092, %v673, 0
        %v1236 = vsel %vm1096, %v1091, 0
        %1238 = vmatprep.subr.bf16.mxu0 0
        %1239 = vmatpush1.bf16.msra.mxu0 %v1236
        %1240 = vmatprep.subr.bf16.mxu0 0
        %1241 = vmatpush1.bf16.msra.mxu0 0
        %1242 = vmatprep.subr.bf16.mxu0 0
        %1243 = vmatpush1.bf16.msra.mxu0 0
        %1244 = vmatprep.subr.bf16.mxu0 0
        %1245 = vmatpush1.bf16.msra.mxu0 0
        %1246 = vmatprep.subr.bf16.mxu0 0
        %1247 = vmatpush1.bf16.msra.mxu0 0
        %1248 = vmatprep.subr.bf16.mxu0 0
        %1249 = vmatpush1.bf16.msra.mxu0 0
        %1250 = vmatprep.subr.bf16.mxu0 0
        %1251 = vmatpush1.bf16.msra.mxu0 0
        %1252 = vmatprep.subr.bf16.mxu0 0
        %1253 = vmatpush1.bf16.msra.mxu0 0
        %1254 = vmatprep.subr.bf16.mxu0 0
        %1255 = vmatpush1.bf16.msra.mxu0 0
        %1256 = vmatprep.subr.bf16.mxu0 0
        %1257 = vmatpush1.bf16.msra.mxu0 0
        %1258 = vmatprep.subr.bf16.mxu0 0
        %1259 = vmatpush1.bf16.msra.mxu0 0
        %1260 = vmatprep.subr.bf16.mxu0 0
        %1261 = vmatpush1.bf16.msra.mxu0 0
        %1262 = vmatprep.subr.bf16.mxu0 0
        %1263 = vmatpush1.bf16.msra.mxu0 0
        %1264 = vmatprep.subr.bf16.mxu0 0
        %1265 = vmatpush1.bf16.msra.mxu0 0
        %1266 = vmatprep.subr.bf16.mxu0 0
        %1267 = vmatpush1.bf16.msra.mxu0 0
        %1268 = vmatprep.subr.bf16.mxu0 0
        %1269 = vmatpush1.bf16.msra.mxu0 0
        %1270 = vmatprep.mubr.bf16.mxu0 0
        %1271 = vmatmul.mubr.bf16.gmra.mrb[0].mxu0 %v1233
        %v1272 = vpop.f32.mrb[0].mxu0
        %v1273 = vadd.f32 %v295, %v1272
        %v1274 = vpop.f32.mrb[0].mxu0
        %v1275 = vpop.f32.mrb[0].mxu0
        %v1276 = vpop.f32.mrb[0].mxu0
        %1277 = vdwg.mxu0
        %v1278 = vsel %vm1092, %v1135, -inf
        %1279 = vmax.xlane.f32.xlu0 %v1278
        %v1280 = vpop.xlane.xlu0 %1279
        %v1281 = vsel %vm1092, %v1181, -inf
        %1282 = vmax.xlane.f32.xlu0 %v1281
        %v1283 = vpop.xlane.xlu0 %1282
        %v1284 = vsel %vm1092, %v1227, -inf
        %1285 = vmax.xlane.f32.xlu0 %v1284
        %v1286 = vpop.xlane.xlu0 %1285
        %v1287 = vsel %vm1092, %v1273, -inf
        %1288 = vmax.xlane.f32.xlu0 %v1287
        %v1289 = vpop.xlane.xlu0 %1288
        %v1290 = vsub.f32 %v1135, %v1280
        %v1291 = vsub.f32 %v1181, %v1283
        %v1292 = vsub.f32 %v1227, %v1286
        %v1293 = vsub.f32 %v1273, %v1289
        %v1294 = vmul.f32 %v1290, 1.442695
        %v1295 = vpow.pop %v1294
        %v1296 = vmul.f32 %v1291, 1.442695
        %v1297 = vpow.pop %v1296
        %v1298 = vmul.f32 %v1292, 1.442695
        %v1299 = vpow.pop %v1298
        %v1300 = vmul.f32 %v1293, 1.442695
        %v1301 = vpow.pop %v1300
        %v1302 = vsel %vm1092, %v1295, 0.0
        %1303 = vadd.xlane.f32.xlu0 %v1302
        %v1304 = vpop.xlane.xlu0 %1303
        %v1305 = vsel %vm1092, %v1297, 0.0
        %1306 = vadd.xlane.f32.xlu0 %v1305
        %v1307 = vpop.xlane.xlu0 %1306
        %v1308 = vsel %vm1092, %v1299, 0.0
        %1309 = vadd.xlane.f32.xlu0 %v1308
        %v1310 = vpop.xlane.xlu0 %1309
        %v1311 = vsel %vm1092, %v1301, 0.0
        %1312 = vadd.xlane.f32.xlu0 %v1311
        %v1313 = vpop.xlane.xlu0 %1312
        %v1314 = vrcp.pop %v1304
        %v1315 = vrcp.pop %v1307
        %v1316 = vrcp.pop %v1310
        %v1317 = vrcp.pop %v1313
        %v1318 = vmul.f32 %v1295, %v1314
        %v1319 = vmul.f32 %v1297, %v1315
        %v1320 = vmul.f32 %v1299, %v1316
        %v1321 = vmul.f32 %v1301, %v1317
        %v1322 = vpack.c.bf16 %v1318, %v1318
        %v1323 = vpack.c.bf16 %v1319, %v1319
        %v1324 = vpack.c.bf16 %v1320, %v1320
        %v1325 = vpack.c.bf16 %v1321, %v1321
        %v1326 = vpack.c.bf16 %v568, %v568
        %v1327 = vpack.c.bf16 %v592, %v592
        %v1328 = vpack.c.bf16 %v575, %v575
        %v1329 = vpack.c.bf16 %v593, %v593
        %v1330 = vpack.c.bf16 %v584, %v584
        %v1331 = vpack.c.bf16 %v594, %v594
        %v1332 = vpack.c.bf16 %v591, %v591
        %v1333 = vpack.c.bf16 %v595, %v595
        %1334 = vxpose.xlu0.c.b16.start [1/8] %v1326, 128
        %1335 = vxpose.xlu0.c.b16.cont [2/8] 0, 128
        %1336 = vxpose.xlu0.c.b16.cont [3/8] 0, 128
        %1337 = vxpose.xlu0.c.b16.cont [4/8] 0, 128
        %1338 = vxpose.xlu0.c.b16.cont [5/8] 0, 128
        %1339 = vxpose.xlu0.c.b16.cont [6/8] 0, 128
        %1340 = vxpose.xlu0.c.b16.cont [7/8] 0, 128
        %1341 = vxpose.xlu0.c.b16.end [8/8] 0, 128
        %v1342 = vpop.trf.xlu0
        %v1343 = vpop.trf.xlu0
        %v1344 = vpop.trf.xlu0
        %v1345 = vpop.trf.xlu0
        %v1346 = vpop.trf.xlu0
        %v1347 = vpop.trf.xlu0
        %v1348 = vpop.trf.xlu0
        %v1349 = vpop.trf.xlu0
        %1350 = vxpose.xlu0.c.b16.start [1/8] %v1327, 128
        %1351 = vxpose.xlu0.c.b16.cont [2/8] 0, 128
        %1352 = vxpose.xlu0.c.b16.cont [3/8] 0, 128
        %1353 = vxpose.xlu0.c.b16.cont [4/8] 0, 128
        %1354 = vxpose.xlu0.c.b16.cont [5/8] 0, 128
        %1355 = vxpose.xlu0.c.b16.cont [6/8] 0, 128
        %1356 = vxpose.xlu0.c.b16.cont [7/8] 0, 128
        %1357 = vxpose.xlu0.c.b16.end [8/8] 0, 128
        %v1358 = vpop.trf.xlu0
        %v1359 = vpop.trf.xlu0
        %v1360 = vpop.trf.xlu0
        %v1361 = vpop.trf.xlu0
        %v1362 = vpop.trf.xlu0
        %v1363 = vpop.trf.xlu0
        %v1364 = vpop.trf.xlu0
        %v1365 = vpop.trf.xlu0
        %1366 = vxpose.xlu0.c.b16.start [1/8] %v1328, 128
        %1367 = vxpose.xlu0.c.b16.cont [2/8] 0, 128
        %1368 = vxpose.xlu0.c.b16.cont [3/8] 0, 128
        %1369 = vxpose.xlu0.c.b16.cont [4/8] 0, 128
        %1370 = vxpose.xlu0.c.b16.cont [5/8] 0, 128
        %1371 = vxpose.xlu0.c.b16.cont [6/8] 0, 128
        %1372 = vxpose.xlu0.c.b16.cont [7/8] 0, 128
        %1373 = vxpose.xlu0.c.b16.end [8/8] 0, 128
        %v1374 = vpop.trf.xlu0
        %v1375 = vpop.trf.xlu0
        %v1376 = vpop.trf.xlu0
        %v1377 = vpop.trf.xlu0
        %v1378 = vpop.trf.xlu0
        %v1379 = vpop.trf.xlu0
        %v1380 = vpop.trf.xlu0
        %v1381 = vpop.trf.xlu0
        %1382 = vxpose.xlu0.c.b16.start [1/8] %v1329, 128
        %1383 = vxpose.xlu0.c.b16.cont [2/8] 0, 128
        %1384 = vxpose.xlu0.c.b16.cont [3/8] 0, 128
        %1385 = vxpose.xlu0.c.b16.cont [4/8] 0, 128
        %1386 = vxpose.xlu0.c.b16.cont [5/8] 0, 128
        %1387 = vxpose.xlu0.c.b16.cont [6/8] 0, 128
        %1388 = vxpose.xlu0.c.b16.cont [7/8] 0, 128
        %1389 = vxpose.xlu0.c.b16.end [8/8] 0, 128
        %v1390 = vpop.trf.xlu0
        %v1391 = vpop.trf.xlu0
        %v1392 = vpop.trf.xlu0
        %v1393 = vpop.trf.xlu0
        %v1394 = vpop.trf.xlu0
        %v1395 = vpop.trf.xlu0
        %v1396 = vpop.trf.xlu0
        %v1397 = vpop.trf.xlu0
        %1398 = vxpose.xlu0.c.b16.start [1/8] %v1330, 128
        %1399 = vxpose.xlu0.c.b16.cont [2/8] 0, 128
        %1400 = vxpose.xlu0.c.b16.cont [3/8] 0, 128
        %1401 = vxpose.xlu0.c.b16.cont [4/8] 0, 128
        %1402 = vxpose.xlu0.c.b16.cont [5/8] 0, 128
        %1403 = vxpose.xlu0.c.b16.cont [6/8] 0, 128
        %1404 = vxpose.xlu0.c.b16.cont [7/8] 0, 128
        %1405 = vxpose.xlu0.c.b16.end [8/8] 0, 128
        %v1406 = vpop.trf.xlu0
        %v1407 = vpop.trf.xlu0
        %v1408 = vpop.trf.xlu0
        %v1409 = vpop.trf.xlu0
        %v1410 = vpop.trf.xlu0
        %v1411 = vpop.trf.xlu0
        %v1412 = vpop.trf.xlu0
        %v1413 = vpop.trf.xlu0
        %1414 = vxpose.xlu0.c.b16.start [1/8] %v1331, 128
        %1415 = vxpose.xlu0.c.b16.cont [2/8] 0, 128
        %1416 = vxpose.xlu0.c.b16.cont [3/8] 0, 128
        %1417 = vxpose.xlu0.c.b16.cont [4/8] 0, 128
        %1418 = vxpose.xlu0.c.b16.cont [5/8] 0, 128
        %1419 = vxpose.xlu0.c.b16.cont [6/8] 0, 128
        %1420 = vxpose.xlu0.c.b16.cont [7/8] 0, 128
        %1421 = vxpose.xlu0.c.b16.end [8/8] 0, 128
        %v1422 = vpop.trf.xlu0
        %v1423 = vpop.trf.xlu0
        %v1424 = vpop.trf.xlu0
        %v1425 = vpop.trf.xlu0
        %v1426 = vpop.trf.xlu0
        %v1427 = vpop.trf.xlu0
        %v1428 = vpop.trf.xlu0
        %v1429 = vpop.trf.xlu0
        %1430 = vxpose.xlu0.c.b16.start [1/8] %v1332, 128
        %1431 = vxpose.xlu0.c.b16.cont [2/8] 0, 128
        %1432 = vxpose.xlu0.c.b16.cont [3/8] 0, 128
        %1433 = vxpose.xlu0.c.b16.cont [4/8] 0, 128
        %1434 = vxpose.xlu0.c.b16.cont [5/8] 0, 128
        %1435 = vxpose.xlu0.c.b16.cont [6/8] 0, 128
        %1436 = vxpose.xlu0.c.b16.cont [7/8] 0, 128
        %1437 = vxpose.xlu0.c.b16.end [8/8] 0, 128
        %v1438 = vpop.trf.xlu0
        %v1439 = vpop.trf.xlu0
        %v1440 = vpop.trf.xlu0
        %v1441 = vpop.trf.xlu0
        %v1442 = vpop.trf.xlu0
        %v1443 = vpop.trf.xlu0
        %v1444 = vpop.trf.xlu0
        %v1445 = vpop.trf.xlu0
        %1446 = vxpose.xlu0.c.b16.start [1/8] %v1333, 128
        %1447 = vxpose.xlu0.c.b16.cont [2/8] 0, 128
        %1448 = vxpose.xlu0.c.b16.cont [3/8] 0, 128
        %1449 = vxpose.xlu0.c.b16.cont [4/8] 0, 128
        %1450 = vxpose.xlu0.c.b16.cont [5/8] 0, 128
        %1451 = vxpose.xlu0.c.b16.cont [6/8] 0, 128
        %1452 = vxpose.xlu0.c.b16.cont [7/8] 0, 128
        %1453 = vxpose.xlu0.c.b16.end [8/8] 0, 128
        %v1454 = vpop.trf.xlu0
        %v1455 = vpop.trf.xlu0
        %v1456 = vpop.trf.xlu0
        %v1457 = vpop.trf.xlu0
        %v1458 = vpop.trf.xlu0
        %v1459 = vpop.trf.xlu0
        %v1460 = vpop.trf.xlu0
        %v1461 = vpop.trf.xlu0
        %v1462 = vcombine.low %v1342, %v1406
        %v1464 = vunpack.c.l.s4 1983009808
        %v1465 = vunpack.c.0.s8 %v1464
        %v1466 = vlaneseq
        %v1467 = vshrl.u32 %v1466, 7
        %v1468 = vsub.s32 %v1465, %v1467
        %v1469 = vrot.slane %v1462, %v1468
        %v1470 = vcombine.low %v1374, %v1438
        %v1472 = vunpack.c.l.s4 1983009808
        %v1473 = vunpack.c.0.s8 %v1472
        %v1474 = vlaneseq
        %v1475 = vshrl.u32 %v1474, 7
        %v1476 = vsub.s32 %v1473, %v1475
        %v1477 = vrot.slane %v1470, %v1476
        %v1478 = vcombine.low %v1469, %v1477
        %v1479 = vcombine.high %v1469, %v1477
        %v1481 = vunpack.c.l.s4 1934713408
        %v1482 = vunpack.c.0.s8 %v1481
        %v1483 = vlaneseq
        %v1484 = vshrl.u32 %v1483, 7
        %v1485 = vsub.s32 %v1482, %v1484
        %v1486 = vrot.slane %v1478, %v1485
        %v1488 = vunpack.c.l.s4 1934713408
        %v1489 = vunpack.c.0.s8 %v1488
        %v1490 = vlaneseq
        %v1491 = vshrl.u32 %v1490, 7
        %v1492 = vsub.s32 %v1489, %v1491
        %v1493 = vrot.slane %v1479, %v1492
        %v1494 = vcombine.high %v1486, 0
        %v1495 = vcombine.high %v1493, 0
        %v1496 = vcombine.low %v1358, %v1422
        %v1498 = vunpack.c.l.s4 1983009808
        %v1499 = vunpack.c.0.s8 %v1498
        %v1500 = vlaneseq
        %v1501 = vshrl.u32 %v1500, 7
        %v1502 = vsub.s32 %v1499, %v1501
        %v1503 = vrot.slane %v1496, %v1502
        %v1504 = vcombine.low %v1390, %v1454
        %v1506 = vunpack.c.l.s4 1983009808
        %v1507 = vunpack.c.0.s8 %v1506
        %v1508 = vlaneseq
        %v1509 = vshrl.u32 %v1508, 7
        %v1510 = vsub.s32 %v1507, %v1509
        %v1511 = vrot.slane %v1504, %v1510
        %v1512 = vcombine.low %v1503, %v1511
        %v1513 = vcombine.high %v1503, %v1511
        %v1515 = vunpack.c.l.s4 1934713408
        %v1516 = vunpack.c.0.s8 %v1515
        %v1517 = vlaneseq
        %v1518 = vshrl.u32 %v1517, 7
        %v1519 = vsub.s32 %v1516, %v1518
        %v1520 = vrot.slane %v1512, %v1519
        %v1522 = vunpack.c.l.s4 1934713408
        %v1523 = vunpack.c.0.s8 %v1522
        %v1524 = vlaneseq
        %v1525 = vshrl.u32 %v1524, 7
        %v1526 = vsub.s32 %v1523, %v1525
        %v1527 = vrot.slane %v1513, %v1526
        %v1528 = vcombine.high %v1520, 0
        %v1529 = vcombine.high %v1527, 0
        %v1532 = vpack.i.b16 %v1520, %v1486
        %v1534 = vshrl.u32 %v1486, 16
        %v1535 = vshrl.u32 %v1520, 16
        %v1536 = vpack.i.b16 %v1535, %v1534
        %v1540 = vpack.i.b16 %v1528, %v1494
        %v1542 = vshrl.u32 %v1494, 16
        %v1543 = vshrl.u32 %v1528, 16
        %v1544 = vpack.i.b16 %v1543, %v1542
        %v1548 = vpack.i.b16 %v1527, %v1493
        %v1550 = vshrl.u32 %v1493, 16
        %v1551 = vshrl.u32 %v1527, 16
        %v1552 = vpack.i.b16 %v1551, %v1550
        %v1556 = vpack.i.b16 %v1529, %v1495
        %v1558 = vshrl.u32 %v1495, 16
        %v1559 = vshrl.u32 %v1529, 16
        %v1560 = vpack.i.b16 %v1559, %v1558
        %1562 = vxpose.xlu0.c.b16.start [1/8] %v1532, 128
        %1563 = vxpose.xlu0.c.b16.cont [2/8] 0, 128
        %1564 = vxpose.xlu0.c.b16.cont [3/8] 0, 128
        %1565 = vxpose.xlu0.c.b16.cont [4/8] 0, 128
        %1566 = vxpose.xlu0.c.b16.cont [5/8] 0, 128
        %1567 = vxpose.xlu0.c.b16.cont [6/8] 0, 128
        %1568 = vxpose.xlu0.c.b16.cont [7/8] 0, 128
        %1569 = vxpose.xlu0.c.b16.end [8/8] 0, 128
        %v1570 = vpop.trf.xlu0
        %v1571 = vpop.trf.xlu0
        %v1572 = vpop.trf.xlu0
        %v1573 = vpop.trf.xlu0
        %v1574 = vpop.trf.xlu0
        %v1575 = vpop.trf.xlu0
        %v1576 = vpop.trf.xlu0
        %v1577 = vpop.trf.xlu0
        %1578 = vxpose.xlu0.c.b16.start [1/8] %v1536, 128
        %1579 = vxpose.xlu0.c.b16.cont [2/8] 0, 128
        %1580 = vxpose.xlu0.c.b16.cont [3/8] 0, 128
        %1581 = vxpose.xlu0.c.b16.cont [4/8] 0, 128
        %1582 = vxpose.xlu0.c.b16.cont [5/8] 0, 128
        %1583 = vxpose.xlu0.c.b16.cont [6/8] 0, 128
        %1584 = vxpose.xlu0.c.b16.cont [7/8] 0, 128
        %1585 = vxpose.xlu0.c.b16.end [8/8] 0, 128
        %v1586 = vpop.trf.xlu0
        %v1587 = vpop.trf.xlu0
        %v1588 = vpop.trf.xlu0
        %v1589 = vpop.trf.xlu0
        %v1590 = vpop.trf.xlu0
        %v1591 = vpop.trf.xlu0
        %v1592 = vpop.trf.xlu0
        %v1593 = vpop.trf.xlu0
        %1594 = vxpose.xlu0.c.b16.start [1/8] %v1540, 128
        %1595 = vxpose.xlu0.c.b16.cont [2/8] 0, 128
        %1596 = vxpose.xlu0.c.b16.cont [3/8] 0, 128
        %1597 = vxpose.xlu0.c.b16.cont [4/8] 0, 128
        %1598 = vxpose.xlu0.c.b16.cont [5/8] 0, 128
        %1599 = vxpose.xlu0.c.b16.cont [6/8] 0, 128
        %1600 = vxpose.xlu0.c.b16.cont [7/8] 0, 128
        %1601 = vxpose.xlu0.c.b16.end [8/8] 0, 128
        %v1602 = vpop.trf.xlu0
        %v1603 = vpop.trf.xlu0
        %v1604 = vpop.trf.xlu0
        %v1605 = vpop.trf.xlu0
        %v1606 = vpop.trf.xlu0
        %v1607 = vpop.trf.xlu0
        %v1608 = vpop.trf.xlu0
        %v1609 = vpop.trf.xlu0
        %1610 = vxpose.xlu0.c.b16.start [1/8] %v1544, 128
        %1611 = vxpose.xlu0.c.b16.cont [2/8] 0, 128
        %1612 = vxpose.xlu0.c.b16.cont [3/8] 0, 128
        %1613 = vxpose.xlu0.c.b16.cont [4/8] 0, 128
        %1614 = vxpose.xlu0.c.b16.cont [5/8] 0, 128
        %1615 = vxpose.xlu0.c.b16.cont [6/8] 0, 128
        %1616 = vxpose.xlu0.c.b16.cont [7/8] 0, 128
        %1617 = vxpose.xlu0.c.b16.end [8/8] 0, 128
        %v1618 = vpop.trf.xlu0
        %v1619 = vpop.trf.xlu0
        %v1620 = vpop.trf.xlu0
        %v1621 = vpop.trf.xlu0
        %v1622 = vpop.trf.xlu0
        %v1623 = vpop.trf.xlu0
        %v1624 = vpop.trf.xlu0
        %v1625 = vpop.trf.xlu0
        %1626 = vxpose.xlu0.c.b16.start [1/8] %v1548, 128
        %1627 = vxpose.xlu0.c.b16.cont [2/8] 0, 128
        %1628 = vxpose.xlu0.c.b16.cont [3/8] 0, 128
        %1629 = vxpose.xlu0.c.b16.cont [4/8] 0, 128
        %1630 = vxpose.xlu0.c.b16.cont [5/8] 0, 128
        %1631 = vxpose.xlu0.c.b16.cont [6/8] 0, 128
        %1632 = vxpose.xlu0.c.b16.cont [7/8] 0, 128
        %1633 = vxpose.xlu0.c.b16.end [8/8] 0, 128
        %v1634 = vpop.trf.xlu0
        %v1635 = vpop.trf.xlu0
        %v1636 = vpop.trf.xlu0
        %v1637 = vpop.trf.xlu0
        %v1638 = vpop.trf.xlu0
        %v1639 = vpop.trf.xlu0
        %v1640 = vpop.trf.xlu0
        %v1641 = vpop.trf.xlu0
        %1642 = vxpose.xlu0.c.b16.start [1/8] %v1552, 128
        %1643 = vxpose.xlu0.c.b16.cont [2/8] 0, 128
        %1644 = vxpose.xlu0.c.b16.cont [3/8] 0, 128
        %1645 = vxpose.xlu0.c.b16.cont [4/8] 0, 128
        %1646 = vxpose.xlu0.c.b16.cont [5/8] 0, 128
        %1647 = vxpose.xlu0.c.b16.cont [6/8] 0, 128
        %1648 = vxpose.xlu0.c.b16.cont [7/8] 0, 128
        %1649 = vxpose.xlu0.c.b16.end [8/8] 0, 128
        %v1650 = vpop.trf.xlu0
        %v1651 = vpop.trf.xlu0
        %v1652 = vpop.trf.xlu0
        %v1653 = vpop.trf.xlu0
        %v1654 = vpop.trf.xlu0
        %v1655 = vpop.trf.xlu0
        %v1656 = vpop.trf.xlu0
        %v1657 = vpop.trf.xlu0
        %1658 = vxpose.xlu0.c.b16.start [1/8] %v1556, 128
        %1659 = vxpose.xlu0.c.b16.cont [2/8] 0, 128
        %1660 = vxpose.xlu0.c.b16.cont [3/8] 0, 128
        %1661 = vxpose.xlu0.c.b16.cont [4/8] 0, 128
        %1662 = vxpose.xlu0.c.b16.cont [5/8] 0, 128
        %1663 = vxpose.xlu0.c.b16.cont [6/8] 0, 128
        %1664 = vxpose.xlu0.c.b16.cont [7/8] 0, 128
        %1665 = vxpose.xlu0.c.b16.end [8/8] 0, 128
        %v1666 = vpop.trf.xlu0
        %v1667 = vpop.trf.xlu0
        %v1668 = vpop.trf.xlu0
        %v1669 = vpop.trf.xlu0
        %v1670 = vpop.trf.xlu0
        %v1671 = vpop.trf.xlu0
        %v1672 = vpop.trf.xlu0
        %v1673 = vpop.trf.xlu0
        %1674 = vxpose.xlu0.c.b16.start [1/8] %v1560, 128
        %1675 = vxpose.xlu0.c.b16.cont [2/8] 0, 128
        %1676 = vxpose.xlu0.c.b16.cont [3/8] 0, 128
        %1677 = vxpose.xlu0.c.b16.cont [4/8] 0, 128
        %1678 = vxpose.xlu0.c.b16.cont [5/8] 0, 128
        %1679 = vxpose.xlu0.c.b16.cont [6/8] 0, 128
        %1680 = vxpose.xlu0.c.b16.cont [7/8] 0, 128
        %1681 = vxpose.xlu0.c.b16.end [8/8] 0, 128
        %v1682 = vpop.trf.xlu0
        %v1683 = vpop.trf.xlu0
        %v1684 = vpop.trf.xlu0
        %v1685 = vpop.trf.xlu0
        %v1686 = vpop.trf.xlu0
        %v1687 = vpop.trf.xlu0
        %v1688 = vpop.trf.xlu0
        %v1689 = vpop.trf.xlu0
        %v1690 = vcombine.low %v1570, %v1634
        %v1692 = vunpack.c.l.s4 1983009808
        %v1693 = vunpack.c.0.s8 %v1692
        %v1694 = vlaneseq
        %v1695 = vshrl.u32 %v1694, 7
        %v1696 = vsub.s32 %v1693, %v1695
        %v1697 = vrot.slane %v1690, %v1696
        %v1698 = vcombine.low %v1602, %v1666
        %v1700 = vunpack.c.l.s4 1983009808
        %v1701 = vunpack.c.0.s8 %v1700
        %v1702 = vlaneseq
        %v1703 = vshrl.u32 %v1702, 7
        %v1704 = vsub.s32 %v1701, %v1703
        %v1705 = vrot.slane %v1698, %v1704
        %v1706 = vcombine.low %v1697, %v1705
        %v1708 = vunpack.c.l.s4 1934713408
        %v1709 = vunpack.c.0.s8 %v1708
        %v1710 = vlaneseq
        %v1711 = vshrl.u32 %v1710, 7
        %v1712 = vsub.s32 %v1709, %v1711
        %v1713 = vrot.slane %v1706, %v1712
        %v1714 = vcombine.high %v1713, 0
        %v1715 = vcombine.low %v1586, %v1650
        %v1717 = vunpack.c.l.s4 1983009808
        %v1718 = vunpack.c.0.s8 %v1717
        %v1719 = vlaneseq
        %v1720 = vshrl.u32 %v1719, 7
        %v1721 = vsub.s32 %v1718, %v1720
        %v1722 = vrot.slane %v1715, %v1721
        %v1723 = vcombine.low %v1618, %v1682
        %v1725 = vunpack.c.l.s4 1983009808
        %v1726 = vunpack.c.0.s8 %v1725
        %v1727 = vlaneseq
        %v1728 = vshrl.u32 %v1727, 7
        %v1729 = vsub.s32 %v1726, %v1728
        %v1730 = vrot.slane %v1723, %v1729
        %v1731 = vcombine.low %v1722, %v1730
        %v1733 = vunpack.c.l.s4 1934713408
        %v1734 = vunpack.c.0.s8 %v1733
        %v1735 = vlaneseq
        %v1736 = vshrl.u32 %v1735, 7
        %v1737 = vsub.s32 %v1734, %v1736
        %v1738 = vrot.slane %v1731, %v1737
        %v1739 = vcombine.high %v1738, 0
        %v1742 = vpack.i.b16 %v1738, %v1713
        %v1743 = vshrl.u32 %v1713, 16
        %v1744 = vshrl.u32 %v1738, 16
        %v1745 = vpack.i.b16 %v1744, %v1743
        %v1748 = vpack.i.b16 %v1739, %v1714
        %v1749 = vshrl.u32 %v1714, 16
        %v1750 = vshrl.u32 %v1739, 16
        %v1751 = vpack.i.b16 %v1750, %v1749
        %v1753 = vsel %vm1092, %v1742, 0
        %v1756 = vsel %vm1092, %v1322, 0
        %1758 = vmatprep.subr.bf16.mxu0 0
        %1759 = vmatpush1.bf16.xpose.msra.mxu0 %v1756
        %1760 = vmatprep.subr.bf16.mxu0 0
        %1761 = vmatpush1.bf16.xpose.msra.mxu0 0
        %1762 = vmatprep.subr.bf16.mxu0 0
        %1763 = vmatpush1.bf16.xpose.msra.mxu0 0
        %1764 = vmatprep.subr.bf16.mxu0 0
        %1765 = vmatpush1.bf16.xpose.msra.mxu0 0
        %1766 = vmatprep.subr.bf16.mxu0 0
        %1767 = vmatpush1.bf16.xpose.msra.mxu0 0
        %1768 = vmatprep.subr.bf16.mxu0 0
        %1769 = vmatpush1.bf16.xpose.msra.mxu0 0
        %1770 = vmatprep.subr.bf16.mxu0 0
        %1771 = vmatpush1.bf16.xpose.msra.mxu0 0
        %1772 = vmatprep.subr.bf16.mxu0 0
        %1773 = vmatpush1.bf16.xpose.msra.mxu0 0
        %1774 = vmatprep.subr.bf16.mxu0 0
        %1775 = vmatpush1.bf16.xpose.msra.mxu0 0
        %1776 = vmatprep.subr.bf16.mxu0 0
        %1777 = vmatpush1.bf16.xpose.msra.mxu0 0
        %1778 = vmatprep.subr.bf16.mxu0 0
        %1779 = vmatpush1.bf16.xpose.msra.mxu0 0
        %1780 = vmatprep.subr.bf16.mxu0 0
        %1781 = vmatpush1.bf16.xpose.msra.mxu0 0
        %1782 = vmatprep.subr.bf16.mxu0 0
        %1783 = vmatpush1.bf16.xpose.msra.mxu0 0
        %1784 = vmatprep.subr.bf16.mxu0 0
        %1785 = vmatpush1.bf16.xpose.msra.mxu0 0
        %1786 = vmatprep.subr.bf16.mxu0 0
        %1787 = vmatpush1.bf16.xpose.msra.mxu0 0
        %1788 = vmatprep.subr.bf16.mxu0 0
        %1789 = vmatpush1.bf16.xpose.msra.mxu0 0
        %1790 = vmatprep.mubr.bf16.mxu0 0
        %1791 = vmatmul.mubr.bf16.gmra.mrb[0].mxu0 %v1753
        %v1792 = vpop.f32.mrb[0].mxu0
        %v1793 = vadd.f32 0.0, %v1792
        %v1794 = vpop.f32.mrb[0].mxu0
        %v1795 = vpop.f32.mrb[0].mxu0
        %v1796 = vpop.f32.mrb[0].mxu0
        %1797 = vdwg.mxu0
        %v1799 = vsel %vm1092, %v1745, 0
        %v1802 = vsel %vm1092, %v1323, 0
        %1804 = vmatprep.subr.bf16.mxu0 0
        %1805 = vmatpush1.bf16.xpose.msra.mxu0 %v1802
        %1806 = vmatprep.subr.bf16.mxu0 0
        %1807 = vmatpush1.bf16.xpose.msra.mxu0 0
        %1808 = vmatprep.subr.bf16.mxu0 0
        %1809 = vmatpush1.bf16.xpose.msra.mxu0 0
        %1810 = vmatprep.subr.bf16.mxu0 0
        %1811 = vmatpush1.bf16.xpose.msra.mxu0 0
        %1812 = vmatprep.subr.bf16.mxu0 0
        %1813 = vmatpush1.bf16.xpose.msra.mxu0 0
        %1814 = vmatprep.subr.bf16.mxu0 0
        %1815 = vmatpush1.bf16.xpose.msra.mxu0 0
        %1816 = vmatprep.subr.bf16.mxu0 0
        %1817 = vmatpush1.bf16.xpose.msra.mxu0 0
        %1818 = vmatprep.subr.bf16.mxu0 0
        %1819 = vmatpush1.bf16.xpose.msra.mxu0 0
        %1820 = vmatprep.subr.bf16.mxu0 0
        %1821 = vmatpush1.bf16.xpose.msra.mxu0 0
        %1822 = vmatprep.subr.bf16.mxu0 0
        %1823 = vmatpush1.bf16.xpose.msra.mxu0 0
        %1824 = vmatprep.subr.bf16.mxu0 0
        %1825 = vmatpush1.bf16.xpose.msra.mxu0 0
        %1826 = vmatprep.subr.bf16.mxu0 0
        %1827 = vmatpush1.bf16.xpose.msra.mxu0 0
        %1828 = vmatprep.subr.bf16.mxu0 0
        %1829 = vmatpush1.bf16.xpose.msra.mxu0 0
        %1830 = vmatprep.subr.bf16.mxu0 0
        %1831 = vmatpush1.bf16.xpose.msra.mxu0 0
        %1832 = vmatprep.subr.bf16.mxu0 0
        %1833 = vmatpush1.bf16.xpose.msra.mxu0 0
        %1834 = vmatprep.subr.bf16.mxu0 0
        %1835 = vmatpush1.bf16.xpose.msra.mxu0 0
        %1836 = vmatprep.mubr.bf16.mxu0 0
        %1837 = vmatmul.mubr.bf16.gmra.mrb[0].mxu0 %v1799
        %v1838 = vpop.f32.mrb[0].mxu0
        %v1839 = vadd.f32 0.0, %v1838
        %v1840 = vpop.f32.mrb[0].mxu0
        %v1841 = vpop.f32.mrb[0].mxu0
        %v1842 = vpop.f32.mrb[0].mxu0
        %1843 = vdwg.mxu0
        %v1845 = vsel %vm1092, %v1748, 0
        %v1848 = vsel %vm1092, %v1324, 0
        %1850 = vmatprep.subr.bf16.mxu0 0
        %1851 = vmatpush1.bf16.xpose.msra.mxu0 %v1848
        %1852 = vmatprep.subr.bf16.mxu0 0
        %1853 = vmatpush1.bf16.xpose.msra.mxu0 0
        %1854 = vmatprep.subr.bf16.mxu0 0
        %1855 = vmatpush1.bf16.xpose.msra.mxu0 0
        %1856 = vmatprep.subr.bf16.mxu0 0
        %1857 = vmatpush1.bf16.xpose.msra.mxu0 0
        %1858 = vmatprep.subr.bf16.mxu0 0
        %1859 = vmatpush1.bf16.xpose.msra.mxu0 0
        %1860 = vmatprep.subr.bf16.mxu0 0
        %1861 = vmatpush1.bf16.xpose.msra.mxu0 0
        %1862 = vmatprep.subr.bf16.mxu0 0
        %1863 = vmatpush1.bf16.xpose.msra.mxu0 0
        %1864 = vmatprep.subr.bf16.mxu0 0
        %1865 = vmatpush1.bf16.xpose.msra.mxu0 0
        %1866 = vmatprep.subr.bf16.mxu0 0
        %1867 = vmatpush1.bf16.xpose.msra.mxu0 0
        %1868 = vmatprep.subr.bf16.mxu0 0
        %1869 = vmatpush1.bf16.xpose.msra.mxu0 0
        %1870 = vmatprep.subr.bf16.mxu0 0
        %1871 = vmatpush1.bf16.xpose.msra.mxu0 0
        %1872 = vmatprep.subr.bf16.mxu0 0
        %1873 = vmatpush1.bf16.xpose.msra.mxu0 0
        %1874 = vmatprep.subr.bf16.mxu0 0
        %1875 = vmatpush1.bf16.xpose.msra.mxu0 0
        %1876 = vmatprep.subr.bf16.mxu0 0
        %1877 = vmatpush1.bf16.xpose.msra.mxu0 0
        %1878 = vmatprep.subr.bf16.mxu0 0
        %1879 = vmatpush1.bf16.xpose.msra.mxu0 0
        %1880 = vmatprep.subr.bf16.mxu0 0
        %1881 = vmatpush1.bf16.xpose.msra.mxu0 0
        %1882 = vmatprep.mubr.bf16.mxu0 0
        %1883 = vmatmul.mubr.bf16.gmra.mrb[0].mxu0 %v1845
        %v1884 = vpop.f32.mrb[0].mxu0
        %v1885 = vadd.f32 0.0, %v1884
        %v1886 = vpop.f32.mrb[0].mxu0
        %v1887 = vpop.f32.mrb[0].mxu0
        %v1888 = vpop.f32.mrb[0].mxu0
        %1889 = vdwg.mxu0
        %v1891 = vsel %vm1092, %v1751, 0
        %v1894 = vsel %vm1092, %v1325, 0
        %1896 = vmatprep.subr.bf16.mxu0 0
        %1897 = vmatpush1.bf16.xpose.msra.mxu0 %v1894
        %1898 = vmatprep.subr.bf16.mxu0 0
        %1899 = vmatpush1.bf16.xpose.msra.mxu0 0
        %1900 = vmatprep.subr.bf16.mxu0 0
        %1901 = vmatpush1.bf16.xpose.msra.mxu0 0
        %1902 = vmatprep.subr.bf16.mxu0 0
        %1903 = vmatpush1.bf16.xpose.msra.mxu0 0
        %1904 = vmatprep.subr.bf16.mxu0 0
        %1905 = vmatpush1.bf16.xpose.msra.mxu0 0
        %1906 = vmatprep.subr.bf16.mxu0 0
        %1907 = vmatpush1.bf16.xpose.msra.mxu0 0
        %1908 = vmatprep.subr.bf16.mxu0 0
        %1909 = vmatpush1.bf16.xpose.msra.mxu0 0
        %1910 = vmatprep.subr.bf16.mxu0 0
        %1911 = vmatpush1.bf16.xpose.msra.mxu0 0
        %1912 = vmatprep.subr.bf16.mxu0 0
        %1913 = vmatpush1.bf16.xpose.msra.mxu0 0
        %1914 = vmatprep.subr.bf16.mxu0 0
        %1915 = vmatpush1.bf16.xpose.msra.mxu0 0
        %1916 = vmatprep.subr.bf16.mxu0 0
        %1917 = vmatpush1.bf16.xpose.msra.mxu0 0
        %1918 = vmatprep.subr.bf16.mxu0 0
        %1919 = vmatpush1.bf16.xpose.msra.mxu0 0
        %1920 = vmatprep.subr.bf16.mxu0 0
        %1921 = vmatpush1.bf16.xpose.msra.mxu0 0
        %1922 = vmatprep.subr.bf16.mxu0 0
        %1923 = vmatpush1.bf16.xpose.msra.mxu0 0
        %1924 = vmatprep.subr.bf16.mxu0 0
        %1925 = vmatpush1.bf16.xpose.msra.mxu0 0
        %1926 = vmatprep.subr.bf16.mxu0 0
        %1927 = vmatpush1.bf16.xpose.msra.mxu0 0
        %1928 = vmatprep.mubr.bf16.mxu0 0
        %1929 = vmatmul.mubr.bf16.gmra.mrb[0].mxu0 %v1891
        %v1930 = vpop.f32.mrb[0].mxu0
        %v1931 = vadd.f32 0.0, %v1930
        %v1932 = vpop.f32.mrb[0].mxu0
        %v1933 = vpop.f32.mrb[0].mxu0
        %v1934 = vpop.f32.mrb[0].mxu0
        %1935 = vdwg.mxu0
        %1936 = vxpose.xlu0.b32.start [1/16] %v1793, 128
        %1937 = vxpose.xlu0.b32.cont [2/16] 0.0, 128
        %1938 = vxpose.xlu0.b32.cont [3/16] 0.0, 128
        %1939 = vxpose.xlu0.b32.cont [4/16] 0.0, 128
        %1940 = vxpose.xlu0.b32.cont [5/16] 0.0, 128
        %1941 = vxpose.xlu0.b32.cont [6/16] 0.0, 128
        %1942 = vxpose.xlu0.b32.cont [7/16] 0.0, 128
        %1943 = vxpose.xlu0.b32.cont [8/16] 0.0, 128
        %1944 = vxpose.xlu0.b32.cont [9/16] 0.0, 128
        %1945 = vxpose.xlu0.b32.cont [10/16] 0.0, 128
        %1946 = vxpose.xlu0.b32.cont [11/16] 0.0, 128
        %1947 = vxpose.xlu0.b32.cont [12/16] 0.0, 128
        %1948 = vxpose.xlu0.b32.cont [13/16] 0.0, 128
        %1949 = vxpose.xlu0.b32.cont [14/16] 0.0, 128
        %1950 = vxpose.xlu0.b32.cont [15/16] 0.0, 128
        %1951 = vxpose.xlu0.b32.end [16/16] 0.0, 128
        %v1952 = vpop.trf.xlu0
        %v1953 = vpop.trf.xlu0
        %v1954 = vpop.trf.xlu0
        %v1955 = vpop.trf.xlu0
        %v1956 = vpop.trf.xlu0
        %v1957 = vpop.trf.xlu0
        %v1958 = vpop.trf.xlu0
        %v1959 = vpop.trf.xlu0
        %v1960 = vpop.trf.xlu0
        %v1961 = vpop.trf.xlu0
        %v1962 = vpop.trf.xlu0
        %v1963 = vpop.trf.xlu0
        %v1964 = vpop.trf.xlu0
        %v1965 = vpop.trf.xlu0
        %v1966 = vpop.trf.xlu0
        %v1967 = vpop.trf.xlu0
        %1968 = vxpose.xlu0.b32.start [1/16] %v1839, 128
        %1969 = vxpose.xlu0.b32.cont [2/16] 0.0, 128
        %1970 = vxpose.xlu0.b32.cont [3/16] 0.0, 128
        %1971 = vxpose.xlu0.b32.cont [4/16] 0.0, 128
        %1972 = vxpose.xlu0.b32.cont [5/16] 0.0, 128
        %1973 = vxpose.xlu0.b32.cont [6/16] 0.0, 128
        %1974 = vxpose.xlu0.b32.cont [7/16] 0.0, 128
        %1975 = vxpose.xlu0.b32.cont [8/16] 0.0, 128
        %1976 = vxpose.xlu0.b32.cont [9/16] 0.0, 128
        %1977 = vxpose.xlu0.b32.cont [10/16] 0.0, 128
        %1978 = vxpose.xlu0.b32.cont [11/16] 0.0, 128
        %1979 = vxpose.xlu0.b32.cont [12/16] 0.0, 128
        %1980 = vxpose.xlu0.b32.cont [13/16] 0.0, 128
        %1981 = vxpose.xlu0.b32.cont [14/16] 0.0, 128
        %1982 = vxpose.xlu0.b32.cont [15/16] 0.0, 128
        %1983 = vxpose.xlu0.b32.end [16/16] 0.0, 128
        %v1984 = vpop.trf.xlu0
        %v1985 = vpop.trf.xlu0
        %v1986 = vpop.trf.xlu0
        %v1987 = vpop.trf.xlu0
        %v1988 = vpop.trf.xlu0
        %v1989 = vpop.trf.xlu0
        %v1990 = vpop.trf.xlu0
        %v1991 = vpop.trf.xlu0
        %v1992 = vpop.trf.xlu0
        %v1993 = vpop.trf.xlu0
        %v1994 = vpop.trf.xlu0
        %v1995 = vpop.trf.xlu0
        %v1996 = vpop.trf.xlu0
        %v1997 = vpop.trf.xlu0
        %v1998 = vpop.trf.xlu0
        %v1999 = vpop.trf.xlu0
        %2000 = vxpose.xlu0.b32.start [1/16] %v1885, 128
        %2001 = vxpose.xlu0.b32.cont [2/16] 0.0, 128
        %2002 = vxpose.xlu0.b32.cont [3/16] 0.0, 128
        %2003 = vxpose.xlu0.b32.cont [4/16] 0.0, 128
        %2004 = vxpose.xlu0.b32.cont [5/16] 0.0, 128
        %2005 = vxpose.xlu0.b32.cont [6/16] 0.0, 128
        %2006 = vxpose.xlu0.b32.cont [7/16] 0.0, 128
        %2007 = vxpose.xlu0.b32.cont [8/16] 0.0, 128
        %2008 = vxpose.xlu0.b32.cont [9/16] 0.0, 128
        %2009 = vxpose.xlu0.b32.cont [10/16] 0.0, 128
        %2010 = vxpose.xlu0.b32.cont [11/16] 0.0, 128
        %2011 = vxpose.xlu0.b32.cont [12/16] 0.0, 128
        %2012 = vxpose.xlu0.b32.cont [13/16] 0.0, 128
        %2013 = vxpose.xlu0.b32.cont [14/16] 0.0, 128
        %2014 = vxpose.xlu0.b32.cont [15/16] 0.0, 128
        %2015 = vxpose.xlu0.b32.end [16/16] 0.0, 128
        %v2016 = vpop.trf.xlu0
        %v2017 = vpop.trf.xlu0
        %v2018 = vpop.trf.xlu0
        %v2019 = vpop.trf.xlu0
        %v2020 = vpop.trf.xlu0
        %v2021 = vpop.trf.xlu0
        %v2022 = vpop.trf.xlu0
        %v2023 = vpop.trf.xlu0
        %v2024 = vpop.trf.xlu0
        %v2025 = vpop.trf.xlu0
        %v2026 = vpop.trf.xlu0
        %v2027 = vpop.trf.xlu0
        %v2028 = vpop.trf.xlu0
        %v2029 = vpop.trf.xlu0
        %v2030 = vpop.trf.xlu0
        %v2031 = vpop.trf.xlu0
        %2032 = vxpose.xlu0.b32.start [1/16] %v1931, 128
        %2033 = vxpose.xlu0.b32.cont [2/16] 0.0, 128
        %2034 = vxpose.xlu0.b32.cont [3/16] 0.0, 128
        %2035 = vxpose.xlu0.b32.cont [4/16] 0.0, 128
        %2036 = vxpose.xlu0.b32.cont [5/16] 0.0, 128
        %2037 = vxpose.xlu0.b32.cont [6/16] 0.0, 128
        %2038 = vxpose.xlu0.b32.cont [7/16] 0.0, 128
        %2039 = vxpose.xlu0.b32.cont [8/16] 0.0, 128
        %2040 = vxpose.xlu0.b32.cont [9/16] 0.0, 128
        %2041 = vxpose.xlu0.b32.cont [10/16] 0.0, 128
        %2042 = vxpose.xlu0.b32.cont [11/16] 0.0, 128
        %2043 = vxpose.xlu0.b32.cont [12/16] 0.0, 128
        %2044 = vxpose.xlu0.b32.cont [13/16] 0.0, 128
        %2045 = vxpose.xlu0.b32.cont [14/16] 0.0, 128
        %2046 = vxpose.xlu0.b32.cont [15/16] 0.0, 128
        %2047 = vxpose.xlu0.b32.end [16/16] 0.0, 128
        %v2048 = vpop.trf.xlu0
        %v2049 = vpop.trf.xlu0
        %v2050 = vpop.trf.xlu0
        %v2051 = vpop.trf.xlu0
        %v2052 = vpop.trf.xlu0
        %v2053 = vpop.trf.xlu0
        %v2054 = vpop.trf.xlu0
        %v2055 = vpop.trf.xlu0
        %v2056 = vpop.trf.xlu0
        %v2057 = vpop.trf.xlu0
        %v2058 = vpop.trf.xlu0
        %v2059 = vpop.trf.xlu0
        %v2060 = vpop.trf.xlu0
        %v2061 = vpop.trf.xlu0
        %v2062 = vpop.trf.xlu0
        %v2063 = vpop.trf.xlu0
        %v2064 = vcombine.low %v1952, %v2016
        %v2065 = vcombine.high %v1952, %v2016
        %v2067 = vunpack.c.l.s4 1983009808
        %v2068 = vunpack.c.0.s8 %v2067
        %v2069 = vlaneseq
        %v2070 = vshrl.u32 %v2069, 7
        %v2071 = vsub.s32 %v2068, %v2070
        %v2072 = vrot.slane %v2064, %v2071
        %v2074 = vunpack.c.l.s4 1983009808
        %v2075 = vunpack.c.0.s8 %v2074
        %v2076 = vlaneseq
        %v2077 = vshrl.u32 %v2076, 7
        %v2078 = vsub.s32 %v2075, %v2077
        %v2079 = vrot.slane %v2065, %v2078
        %v2080 = vcombine.low %v1984, %v2048
        %v2081 = vcombine.high %v1984, %v2048
        %v2083 = vunpack.c.l.s4 1983009808
        %v2084 = vunpack.c.0.s8 %v2083
        %v2085 = vlaneseq
        %v2086 = vshrl.u32 %v2085, 7
        %v2087 = vsub.s32 %v2084, %v2086
        %v2088 = vrot.slane %v2080, %v2087
        %v2090 = vunpack.c.l.s4 1983009808
        %v2091 = vunpack.c.0.s8 %v2090
        %v2092 = vlaneseq
        %v2093 = vshrl.u32 %v2092, 7
        %v2094 = vsub.s32 %v2091, %v2093
        %v2095 = vrot.slane %v2081, %v2094
        %v2096 = vcombine.low %v2072, %v2088
        %v2097 = vcombine.high %v2072, %v2088
        %v2099 = vunpack.c.l.s4 1934713408
        %v2100 = vunpack.c.0.s8 %v2099
        %v2101 = vlaneseq
        %v2102 = vshrl.u32 %v2101, 7
        %v2103 = vsub.s32 %v2100, %v2102
        %v2104 = vrot.slane %v2096, %v2103
        %v2106 = vunpack.c.l.s4 1934713408
        %v2107 = vunpack.c.0.s8 %v2106
        %v2108 = vlaneseq
        %v2109 = vshrl.u32 %v2108, 7
        %v2110 = vsub.s32 %v2107, %v2109
        %v2111 = vrot.slane %v2097, %v2110
        %v2112 = vcombine.low %v2079, %v2095
        %v2113 = vcombine.high %v2079, %v2095
        %v2115 = vunpack.c.l.s4 1934713408
        %v2116 = vunpack.c.0.s8 %v2115
        %v2117 = vlaneseq
        %v2118 = vshrl.u32 %v2117, 7
        %v2119 = vsub.s32 %v2116, %v2118
        %v2120 = vrot.slane %v2112, %v2119
        %v2122 = vunpack.c.l.s4 1934713408
        %v2123 = vunpack.c.0.s8 %v2122
        %v2124 = vlaneseq
        %v2125 = vshrl.u32 %v2124, 7
        %v2126 = vsub.s32 %v2123, %v2125
        %v2127 = vrot.slane %v2113, %v2126
        %v2128 = vcombine.high %v2104, 0.0
        %v2129 = vcombine.high %v2111, 0.0
        %v2130 = vcombine.high %v2120, 0.0
        %v2131 = vcombine.high %v2127, 0.0
        %v2132 = vcombine.low %v2104, %v2111
        %v2134 = vunpack.c.l.s4 1983009808
        %v2135 = vunpack.c.0.s8 %v2134
        %v2136 = vlaneseq
        %v2137 = vshrl.u32 %v2136, 7
        %v2138 = vsub.s32 %v2135, %v2137
        %v2139 = vrot.slane %v2132, %v2138
        %v2140 = vcombine.low %v2128, %v2129
        %v2142 = vunpack.c.l.s4 1983009808
        %v2143 = vunpack.c.0.s8 %v2142
        %v2144 = vlaneseq
        %v2145 = vshrl.u32 %v2144, 7
        %v2146 = vsub.s32 %v2143, %v2145
        %v2147 = vrot.slane %v2140, %v2146
        %v2148 = vcombine.low %v2120, %v2127
        %v2150 = vunpack.c.l.s4 1983009808
        %v2151 = vunpack.c.0.s8 %v2150
        %v2152 = vlaneseq
        %v2153 = vshrl.u32 %v2152, 7
        %v2154 = vsub.s32 %v2151, %v2153
        %v2155 = vrot.slane %v2148, %v2154
        %v2156 = vcombine.low %v2130, %v2131
        %v2158 = vunpack.c.l.s4 1983009808
        %v2159 = vunpack.c.0.s8 %v2158
        %v2160 = vlaneseq
        %v2161 = vshrl.u32 %v2160, 7
        %v2162 = vsub.s32 %v2159, %v2161
        %v2163 = vrot.slane %v2156, %v2162
        %v2164 = vcombine.low %v2139, %v2147
        %v2165 = vcombine.high %v2139, %v2147
        %v2167 = vunpack.c.l.s4 1934713408
        %v2168 = vunpack.c.0.s8 %v2167
        %v2169 = vlaneseq
        %v2170 = vshrl.u32 %v2169, 7
        %v2171 = vsub.s32 %v2168, %v2170
        %v2172 = vrot.slane %v2164, %v2171
        %v2174 = vunpack.c.l.s4 1934713408
        %v2175 = vunpack.c.0.s8 %v2174
        %v2176 = vlaneseq
        %v2177 = vshrl.u32 %v2176, 7
        %v2178 = vsub.s32 %v2175, %v2177
        %v2179 = vrot.slane %v2165, %v2178
        %v2180 = vcombine.low %v2155, %v2163
        %v2181 = vcombine.high %v2155, %v2163
        %v2183 = vunpack.c.l.s4 1934713408
        %v2184 = vunpack.c.0.s8 %v2183
        %v2185 = vlaneseq
        %v2186 = vshrl.u32 %v2185, 7
        %v2187 = vsub.s32 %v2184, %v2186
        %v2188 = vrot.slane %v2180, %v2187
        %v2190 = vunpack.c.l.s4 1934713408
        %v2191 = vunpack.c.0.s8 %v2190
        %v2192 = vlaneseq
        %v2193 = vshrl.u32 %v2192, 7
        %v2194 = vsub.s32 %v2191, %v2193
        %v2195 = vrot.slane %v2181, %v2194
        %v2196 = vcombine.low %v2172, %v2188
        %v2197 = vcombine.high %v2172, %v2188
        %v2198 = vcombine.low %v2179, %v2195
        %v2199 = vcombine.high %v2179, %v2195
        %2201 = vrot.lane.b32.xlu0 %v2197, 8
        %v2202 = vpop.permute.xlu0 %2201
        %2205 = vrot.lane.b32.xlu0 %v2198, 16
        %v2206 = vpop.permute.xlu0 %2205
        %2209 = vrot.lane.b32.xlu0 %v2199, 24
        %v2210 = vpop.permute.xlu0 %2209
        %v2212 = vsel %vm1092, %v2196, %v2202
        %vm2213 = vcmask 130048
        %v2214 = vsel %vm2213, %v2212, %v2206
        %vm2215 = vcmask 195584
        %v2216 = vsel %vm2215, %v2214, %v2210
        %v2217 = vpack.c.bf16 %v2216, %v2216
        %v2218 = vld [vmem:[%s3] sm:$0xf]
        %v2219 = vld [vmem:[%s3 + $0x4] sm:$0xf]
        %v2220 = vld [vmem:[%s3 + $0x8] sm:$0xf]
        %v2221 = vld [vmem:[%s3 + $0xc] sm:$0xf]
        %v2222 = vlaneseq
        %v2223 = vshrl.u32 %v2222, 7
        %v2224 = vsub.s32 0, %v2223
        %v2225 = vrot.slane %v296, %v2224
        %v2230 = vunpack.c.l.b16 %v2218
        %v2231 = vunpack.c.l.b16 %v2219
        %v2232 = vunpack.c.l.b16 %v2220
        %v2233 = vunpack.c.l.b16 %v2221
        %v2234 = vpack.c.b16 %v2231, %v2230
        %v2235 = vpack.c.b16 %v2233, %v2232
        %v2239 = vsel %vm314, %v2217, 0
        %2241 = vmatprep.subr.bf16.mxu0 0
        %2242 = vmatpush1.bf16.msra.mxu0 %v2234
        %2243 = vmatprep.subr.bf16.mxu0 0
        %2244 = vmatpush1.bf16.msra.mxu0 %v2235
        %2245 = vmatprep.subr.bf16.mxu0 0
        %2246 = vmatpush1.bf16.msra.mxu0 0
        %2247 = vmatprep.subr.bf16.mxu0 0
        %2248 = vmatpush1.bf16.msra.mxu0 0
        %2249 = vmatprep.subr.bf16.mxu0 0
        %2250 = vmatpush1.bf16.msra.mxu0 0
        %2251 = vmatprep.subr.bf16.mxu0 0
        %2252 = vmatpush1.bf16.msra.mxu0 0
        %2253 = vmatprep.subr.bf16.mxu0 0
        %2254 = vmatpush1.bf16.msra.mxu0 0
        %2255 = vmatprep.subr.bf16.mxu0 0
        %2256 = vmatpush1.bf16.msra.mxu0 0
        %2257 = vmatprep.subr.bf16.mxu0 0
        %2258 = vmatpush1.bf16.msra.mxu0 0
        %2259 = vmatprep.subr.bf16.mxu0 0
        %2260 = vmatpush1.bf16.msra.mxu0 0
        %2261 = vmatprep.subr.bf16.mxu0 0
        %2262 = vmatpush1.bf16.msra.mxu0 0
        %2263 = vmatprep.subr.bf16.mxu0 0
        %2264 = vmatpush1.bf16.msra.mxu0 0
        %2265 = vmatprep.subr.bf16.mxu0 0
        %2266 = vmatpush1.bf16.msra.mxu0 0
        %2267 = vmatprep.subr.bf16.mxu0 0
        %2268 = vmatpush1.bf16.msra.mxu0 0
        %2269 = vmatprep.subr.bf16.mxu0 0
        %2270 = vmatpush1.bf16.msra.mxu0 0
        %2271 = vmatprep.subr.bf16.mxu0 0
        %2272 = vmatpush1.bf16.msra.mxu0 0
        %2273 = vmatprep.mubr.bf16.mxu0 0
        %2274 = vmatmul.mubr.bf16.gmra.mrb[0].mxu0 %v2239
        %v2275 = vpop.f32.mrb[0].mxu0
        %v2276 = vadd.f32 %v2225, %v2275
        %v2277 = vpop.f32.mrb[0].mxu0
        %v2278 = vpop.f32.mrb[0].mxu0
        %v2279 = vpop.f32.mrb[0].mxu0
        %2280 = vdwg.mxu0
        %v2281 = vadd.f32 %v2276, %v292
        %v2282 = vsel %vm314, %v2281, 0.0
        %2283 = vadd.xlane.f32.xlu0 %v2282
        %v2284 = vpop.xlane.xlu0 %2283
        %v2285 = vrcp.pop 32.0
        %v2286 = vmul.f32 %v2284, %v2285
        %v2287 = vsub.f32 %v2281, %v2286
        %v2288 = vmul.f32 %v2287, %v2287
        %v2289 = vsel %vm314, %v2288, 0.0
        %2290 = vadd.xlane.f32.xlu0 %v2289
        %v2291 = vpop.xlane.xlu0 %2290
        %v2292 = vmul.f32 %v2291, %v2285
        %v2293 = vadd.f32 %v2292, 1e-05
        %v2294 = vrsqrt.pop %v2293
        %v2295 = vmul.f32 %v2287, %v2294
        %v2296 = vlaneseq
        %v2297 = vshrl.u32 %v2296, 7
        %v2298 = vsub.s32 1, %v2297
        %v2299 = vrot.slane %v296, %v2298
        %v2300 = vmul.f32 %v2295, %v2299
        %v2301 = vlaneseq
        %v2302 = vshrl.u32 %v2301, 7
        %v2303 = vsub.s32 2, %v2302
        %v2304 = vrot.slane %v296, %v2303
        %v2305 = vadd.f32 %v2300, %v2304
        %v2306 = vpack.c.bf16 %v2305, %v2305
        %v2307 = vld [vmem:[%s4] sm:$0xf]
        %v2308 = vld [vmem:[%s4 + $0x4] sm:$0xf]
        %v2309 = vld [vmem:[%s4 + $0x8] sm:$0xf]
        %v2310 = vld [vmem:[%s4 + $0xc] sm:$0xf]
        %v2311 = vlaneseq
        %v2312 = vshrl.u32 %v2311, 7
        %v2313 = vsub.s32 5, %v2312
        %v2314 = vrot.slane %v296, %v2313
        %v2319 = vunpack.c.l.b16 %v2307
        %v2320 = vunpack.c.l.b16 %v2308
        %v2321 = vunpack.c.l.b16 %v2309
        %v2322 = vunpack.c.l.b16 %v2310
        %v2323 = vpack.c.b16 %v2320, %v2319
        %v2324 = vpack.c.b16 %v2322, %v2321
        %v2328 = vsel %vm314, %v2306, 0
        %2330 = vmatprep.subr.bf16.mxu0 0
        %2331 = vmatpush1.bf16.msra.mxu0 %v2323
        %2332 = vmatprep.subr.bf16.mxu0 0
        %2333 = vmatpush1.bf16.msra.mxu0 %v2324
        %2334 = vmatprep.subr.bf16.mxu0 0
        %2335 = vmatpush1.bf16.msra.mxu0 0
        %2336 = vmatprep.subr.bf16.mxu0 0
        %2337 = vmatpush1.bf16.msra.mxu0 0
        %2338 = vmatprep.subr.bf16.mxu0 0
        %2339 = vmatpush1.bf16.msra.mxu0 0
        %2340 = vmatprep.subr.bf16.mxu0 0
        %2341 = vmatpush1.bf16.msra.mxu0 0
        %2342 = vmatprep.subr.bf16.mxu0 0
        %2343 = vmatpush1.bf16.msra.mxu0 0
        %2344 = vmatprep.subr.bf16.mxu0 0
        %2345 = vmatpush1.bf16.msra.mxu0 0
        %2346 = vmatprep.subr.bf16.mxu0 0
        %2347 = vmatpush1.bf16.msra.mxu0 0
        %2348 = vmatprep.subr.bf16.mxu0 0
        %2349 = vmatpush1.bf16.msra.mxu0 0
        %2350 = vmatprep.subr.bf16.mxu0 0
        %2351 = vmatpush1.bf16.msra.mxu0 0
        %2352 = vmatprep.subr.bf16.mxu0 0
        %2353 = vmatpush1.bf16.msra.mxu0 0
        %2354 = vmatprep.subr.bf16.mxu0 0
        %2355 = vmatpush1.bf16.msra.mxu0 0
        %2356 = vmatprep.subr.bf16.mxu0 0
        %2357 = vmatpush1.bf16.msra.mxu0 0
        %2358 = vmatprep.subr.bf16.mxu0 0
        %2359 = vmatpush1.bf16.msra.mxu0 0
        %2360 = vmatprep.subr.bf16.mxu0 0
        %2361 = vmatpush1.bf16.msra.mxu0 0
        %2362 = vmatprep.mubr.bf16.mxu0 0
        %2363 = vmatmul.mubr.bf16.gmra.mrb[0].mxu0 %v2328
        %v2364 = vpop.f32.mrb[0].mxu0
        %v2365 = vadd.f32 %v2314, %v2364
        %v2366 = vpop.f32.mrb[0].mxu0
        %v2367 = vpop.f32.mrb[0].mxu0
        %v2368 = vpop.f32.mrb[0].mxu0
        %2369 = vdwg.mxu0
        %v2370 = vmax.f32 %v2365, 0.0
        %v2371 = vpack.c.bf16 %v2370, %v2370
        %v2372 = vld [vmem:[%s5] sm:$0xf]
        %v2373 = vld [vmem:[%s5 + $0x4] sm:$0xf]
        %v2374 = vld [vmem:[%s5 + $0x8] sm:$0xf]
        %v2375 = vld [vmem:[%s5 + $0xc] sm:$0xf]
        %v2376 = vld [vmem:[%s5 + $0x10] sm:$0xf]
        %v2377 = vld [vmem:[%s5 + $0x14] sm:$0xf]
        %v2378 = vld [vmem:[%s5 + $0x18] sm:$0xf]
        %v2379 = vld [vmem:[%s5 + $0x1c] sm:$0xf]
        %v2380 = vld [vmem:[%s5 + $0x20] sm:$0xf]
        %v2381 = vld [vmem:[%s5 + $0x24] sm:$0xf]
        %v2382 = vld [vmem:[%s5 + $0x28] sm:$0xf]
        %v2383 = vld [vmem:[%s5 + $0x2c] sm:$0xf]
        %v2384 = vld [vmem:[%s5 + $0x30] sm:$0xf]
        %v2385 = vld [vmem:[%s5 + $0x34] sm:$0xf]
        %v2386 = vld [vmem:[%s5 + $0x38] sm:$0xf]
        %v2387 = vld [vmem:[%s5 + $0x3c] sm:$0xf]
        %v2388 = vlaneseq
        %v2389 = vshrl.u32 %v2388, 7
        %v2390 = vsub.s32 6, %v2389
        %v2391 = vrot.slane %v296, %v2390
        %v2408 = vunpack.c.l.b16 %v2372
        %v2409 = vunpack.c.l.b16 %v2373
        %v2410 = vunpack.c.l.b16 %v2374
        %v2411 = vunpack.c.l.b16 %v2375
        %v2412 = vunpack.c.l.b16 %v2376
        %v2413 = vunpack.c.l.b16 %v2377
        %v2414 = vunpack.c.l.b16 %v2378
        %v2415 = vunpack.c.l.b16 %v2379
        %v2416 = vunpack.c.l.b16 %v2380
        %v2417 = vunpack.c.l.b16 %v2381
        %v2418 = vunpack.c.l.b16 %v2382
        %v2419 = vunpack.c.l.b16 %v2383
        %v2420 = vunpack.c.l.b16 %v2384
        %v2421 = vunpack.c.l.b16 %v2385
        %v2422 = vunpack.c.l.b16 %v2386
        %v2423 = vunpack.c.l.b16 %v2387
        %v2424 = vpack.c.b16 %v2409, %v2408
        %v2425 = vpack.c.b16 %v2411, %v2410
        %v2426 = vpack.c.b16 %v2413, %v2412
        %v2427 = vpack.c.b16 %v2415, %v2414
        %v2428 = vpack.c.b16 %v2417, %v2416
        %v2429 = vpack.c.b16 %v2419, %v2418
        %v2430 = vpack.c.b16 %v2421, %v2420
        %v2431 = vpack.c.b16 %v2423, %v2422
        %2440 = vmatprep.subr.bf16.mxu0 0
        %2441 = vmatpush1.bf16.msra.mxu0 %v2424
        %2442 = vmatprep.subr.bf16.mxu0 0
        %2443 = vmatpush1.bf16.msra.mxu0 %v2425
        %2444 = vmatprep.subr.bf16.mxu0 0
        %2445 = vmatpush1.bf16.msra.mxu0 %v2426
        %2446 = vmatprep.subr.bf16.mxu0 0
        %2447 = vmatpush1.bf16.msra.mxu0 %v2427
        %2448 = vmatprep.subr.bf16.mxu0 0
        %2449 = vmatpush1.bf16.msra.mxu0 %v2428
        %2450 = vmatprep.subr.bf16.mxu0 0
        %2451 = vmatpush1.bf16.msra.mxu0 %v2429
        %2452 = vmatprep.subr.bf16.mxu0 0
        %2453 = vmatpush1.bf16.msra.mxu0 %v2430
        %2454 = vmatprep.subr.bf16.mxu0 0
        %2455 = vmatpush1.bf16.msra.mxu0 %v2431
        %2456 = vmatprep.subr.bf16.mxu0 0
        %2457 = vmatpush1.bf16.msra.mxu0 0
        %2458 = vmatprep.subr.bf16.mxu0 0
        %2459 = vmatpush1.bf16.msra.mxu0 0
        %2460 = vmatprep.subr.bf16.mxu0 0
        %2461 = vmatpush1.bf16.msra.mxu0 0
        %2462 = vmatprep.subr.bf16.mxu0 0
        %2463 = vmatpush1.bf16.msra.mxu0 0
        %2464 = vmatprep.subr.bf16.mxu0 0
        %2465 = vmatpush1.bf16.msra.mxu0 0
        %2466 = vmatprep.subr.bf16.mxu0 0
        %2467 = vmatpush1.bf16.msra.mxu0 0
        %2468 = vmatprep.subr.bf16.mxu0 0
        %2469 = vmatpush1.bf16.msra.mxu0 0
        %2470 = vmatprep.subr.bf16.mxu0 0
        %2471 = vmatpush1.bf16.msra.mxu0 0
        %2472 = vmatprep.mubr.bf16.mxu0 0
        %2473 = vmatmul.mubr.bf16.gmra.mrb[0].mxu0 %v2371
        %v2474 = vpop.f32.mrb[0].mxu0
        %v2475 = vadd.f32 %v2391, %v2474
        %v2476 = vpop.f32.mrb[0].mxu0
        %v2477 = vpop.f32.mrb[0].mxu0
        %v2478 = vpop.f32.mrb[0].mxu0
        %2479 = vdwg.mxu0
        %v2480 = vadd.f32 %v2475, %v2305
        %v2481 = vsel %vm314, %v2480, 0.0
        %2482 = vadd.xlane.f32.xlu0 %v2481
        %v2483 = vpop.xlane.xlu0 %2482
        %v2484 = vmul.f32 %v2483, %v2285
        %v2485 = vsub.f32 %v2480, %v2484
        %v2486 = vmul.f32 %v2485, %v2485
        %v2487 = vsel %vm314, %v2486, 0.0
        %2488 = vadd.xlane.f32.xlu0 %v2487
        %v2489 = vpop.xlane.xlu0 %2488
        %v2490 = vmul.f32 %v2489, %v2285
        %v2491 = vadd.f32 %v2490, 1e-05
        %v2492 = vrsqrt.pop %v2491
        %v2493 = vmul.f32 %v2485, %v2492
        %v2494 = vlaneseq
        %v2495 = vshrl.u32 %v2494, 7
        %v2496 = vsub.s32 3, %v2495
        %v2497 = vrot.slane %v296, %v2496
        %v2498 = vmul.f32 %v2493, %v2497
        %v2499 = vlaneseq
        %v2500 = vshrl.u32 %v2499, 7
        %v2501 = vsub.s32 4, %v2500
        %v2502 = vrot.slane %v296, %v2501
        %v2503 = vadd.f32 %v2498, %v2502
        %s2504 = scalar_lea.vmem %s6, 8
        %v2505 = vld [vmem:[%s2504] sm:$0xff]
        %v2506 = vpack.c.bf16 %v2503, %v2503
        %s2507 = scalar_lea.vmem %s2, 16
        %v2508 = vld [vmem:[%s2507] sm:$0xf]
        %v2509 = vld [vmem:[%s2507 + $0x4] sm:$0xf]
        %v2510 = vld [vmem:[%s2507 + $0x8] sm:$0xf]
        %v2511 = vld [vmem:[%s2507 + $0xc] sm:$0xf]
        %v2516 = vunpack.c.l.b16 %v2508
        %v2517 = vunpack.c.l.b16 %v2509
        %v2518 = vunpack.c.l.b16 %v2510
        %v2519 = vunpack.c.l.b16 %v2511
        %v2520 = vpack.c.b16 %v2517, %v2516
        %v2521 = vpack.c.b16 %v2519, %v2518
        %v2525 = vsel %vm314, %v2506, 0
        %2527 = vmatprep.subr.bf16.mxu0 0
        %2528 = vmatpush1.bf16.msra.mxu0 %v2520
        %2529 = vmatprep.subr.bf16.mxu0 0
        %2530 = vmatpush1.bf16.msra.mxu0 %v2521
        %2531 = vmatprep.subr.bf16.mxu0 0
        %2532 = vmatpush1.bf16.msra.mxu0 0
        %2533 = vmatprep.subr.bf16.mxu0 0
        %2534 = vmatpush1.bf16.msra.mxu0 0
        %2535 = vmatprep.subr.bf16.mxu0 0
        %2536 = vmatpush1.bf16.msra.mxu0 0
        %2537 = vmatprep.subr.bf16.mxu0 0
        %2538 = vmatpush1.bf16.msra.mxu0 0
        %2539 = vmatprep.subr.bf16.mxu0 0
        %2540 = vmatpush1.bf16.msra.mxu0 0
        %2541 = vmatprep.subr.bf16.mxu0 0
        %2542 = vmatpush1.bf16.msra.mxu0 0
        %2543 = vmatprep.subr.bf16.mxu0 0
        %2544 = vmatpush1.bf16.msra.mxu0 0
        %2545 = vmatprep.subr.bf16.mxu0 0
        %2546 = vmatpush1.bf16.msra.mxu0 0
        %2547 = vmatprep.subr.bf16.mxu0 0
        %2548 = vmatpush1.bf16.msra.mxu0 0
        %2549 = vmatprep.subr.bf16.mxu0 0
        %2550 = vmatpush1.bf16.msra.mxu0 0
        %2551 = vmatprep.subr.bf16.mxu0 0
        %2552 = vmatpush1.bf16.msra.mxu0 0
        %2553 = vmatprep.subr.bf16.mxu0 0
        %2554 = vmatpush1.bf16.msra.mxu0 0
        %2555 = vmatprep.subr.bf16.mxu0 0
        %2556 = vmatpush1.bf16.msra.mxu0 0
        %2557 = vmatprep.subr.bf16.mxu0 0
        %2558 = vmatpush1.bf16.msra.mxu0 0
        %2559 = vmatprep.mubr.bf16.mxu0 0
        %2560 = vmatmul.mubr.bf16.gmra.mrb[0].mxu0 %v2525
        %v2561 = vpop.f32.mrb[0].mxu0
        %v2562 = vadd.f32 0.0, %v2561
        %v2563 = vpop.f32.mrb[0].mxu0
        %v2564 = vpop.f32.mrb[0].mxu0
        %v2565 = vpop.f32.mrb[0].mxu0
        %2566 = vdwg.mxu0
        %2568 = vrot.lane.b32.xlu0 %v2562, 120
        %v2569 = vpop.permute.xlu0 %2568
        %2571 = vrot.lane.b32.xlu0 %v2562, 112
        %v2572 = vpop.permute.xlu0 %2571
        %2574 = vrot.lane.b32.xlu0 %v2562, 104
        %v2575 = vpop.permute.xlu0 %2574
        %v2577 = vcombine.low %v2562, %v2572
        %v2578 = vcombine.high %v2562, %v2572
        %v2580 = vunpack.c.l.s4 1983009808
        %v2581 = vunpack.c.0.s8 %v2580
        %v2582 = vlaneseq
        %v2583 = vshrl.u32 %v2582, 7
        %v2584 = vsub.s32 %v2581, %v2583
        %v2585 = vrot.slane %v2577, %v2584
        %v2587 = vunpack.c.l.s4 1983009808
        %v2588 = vunpack.c.0.s8 %v2587
        %v2589 = vlaneseq
        %v2590 = vshrl.u32 %v2589, 7
        %v2591 = vsub.s32 %v2588, %v2590
        %v2592 = vrot.slane %v2578, %v2591
        %v2593 = vcombine.low %v2569, %v2575
        %v2594 = vcombine.high %v2569, %v2575
        %v2596 = vunpack.c.l.s4 1983009808
        %v2597 = vunpack.c.0.s8 %v2596
        %v2598 = vlaneseq
        %v2599 = vshrl.u32 %v2598, 7
        %v2600 = vsub.s32 %v2597, %v2599
        %v2601 = vrot.slane %v2593, %v2600
        %v2603 = vunpack.c.l.s4 1983009808
        %v2604 = vunpack.c.0.s8 %v2603
        %v2605 = vlaneseq
        %v2606 = vshrl.u32 %v2605, 7
        %v2607 = vsub.s32 %v2604, %v2606
        %v2608 = vrot.slane %v2594, %v2607
        %v2609 = vcombine.low %v2585, %v2601
        %v2610 = vcombine.high %v2585, %v2601
        %v2612 = vunpack.c.l.s4 1934713408
        %v2613 = vunpack.c.0.s8 %v2612
        %v2614 = vlaneseq
        %v2615 = vshrl.u32 %v2614, 7
        %v2616 = vsub.s32 %v2613, %v2615
        %v2617 = vrot.slane %v2609, %v2616
        %v2619 = vunpack.c.l.s4 1934713408
        %v2620 = vunpack.c.0.s8 %v2619
        %v2621 = vlaneseq
        %v2622 = vshrl.u32 %v2621, 7
        %v2623 = vsub.s32 %v2620, %v2622
        %v2624 = vrot.slane %v2610, %v2623
        %v2625 = vcombine.low %v2592, %v2608
        %v2626 = vcombine.high %v2592, %v2608
        %v2628 = vunpack.c.l.s4 1934713408
        %v2629 = vunpack.c.0.s8 %v2628
        %v2630 = vlaneseq
        %v2631 = vshrl.u32 %v2630, 7
        %v2632 = vsub.s32 %v2629, %v2631
        %v2633 = vrot.slane %v2625, %v2632
        %v2635 = vunpack.c.l.s4 1934713408
        %v2636 = vunpack.c.0.s8 %v2635
        %v2637 = vlaneseq
        %v2638 = vshrl.u32 %v2637, 7
        %v2639 = vsub.s32 %v2636, %v2638
        %v2640 = vrot.slane %v2626, %v2639
        %v2641 = vcombine.high %v2617, 0.0
        %v2642 = vcombine.high %v2624, 0.0
        %v2643 = vcombine.high %v2633, 0.0
        %v2644 = vcombine.high %v2640, 0.0
        %2645 = vrot.lane.b32.xlu0 %v2562, 96
        %v2646 = vpop.permute.xlu0 %2645
        %2647 = vrot.lane.b32.xlu0 %v2569, 96
        %v2648 = vpop.permute.xlu0 %2647
        %2649 = vrot.lane.b32.xlu0 %v2572, 96
        %v2650 = vpop.permute.xlu0 %2649
        %2651 = vrot.lane.b32.xlu0 %v2575, 96
        %v2652 = vpop.permute.xlu0 %2651
        %v2657 = vcombine.low %v2646, %v2650
        %v2658 = vcombine.high %v2646, %v2650
        %v2660 = vunpack.c.l.s4 1983009808
        %v2661 = vunpack.c.0.s8 %v2660
        %v2662 = vlaneseq
        %v2663 = vshrl.u32 %v2662, 7
        %v2664 = vsub.s32 %v2661, %v2663
        %v2665 = vrot.slane %v2657, %v2664
        %v2667 = vunpack.c.l.s4 1983009808
        %v2668 = vunpack.c.0.s8 %v2667
        %v2669 = vlaneseq
        %v2670 = vshrl.u32 %v2669, 7
        %v2671 = vsub.s32 %v2668, %v2670
        %v2672 = vrot.slane %v2658, %v2671
        %v2673 = vcombine.low %v2648, %v2652
        %v2674 = vcombine.high %v2648, %v2652
        %v2676 = vunpack.c.l.s4 1983009808
        %v2677 = vunpack.c.0.s8 %v2676
        %v2678 = vlaneseq
        %v2679 = vshrl.u32 %v2678, 7
        %v2680 = vsub.s32 %v2677, %v2679
        %v2681 = vrot.slane %v2673, %v2680
        %v2683 = vunpack.c.l.s4 1983009808
        %v2684 = vunpack.c.0.s8 %v2683
        %v2685 = vlaneseq
        %v2686 = vshrl.u32 %v2685, 7
        %v2687 = vsub.s32 %v2684, %v2686
        %v2688 = vrot.slane %v2674, %v2687
        %v2689 = vcombine.low %v2665, %v2681
        %v2690 = vcombine.high %v2665, %v2681
        %v2692 = vunpack.c.l.s4 1934713408
        %v2693 = vunpack.c.0.s8 %v2692
        %v2694 = vlaneseq
        %v2695 = vshrl.u32 %v2694, 7
        %v2696 = vsub.s32 %v2693, %v2695
        %v2697 = vrot.slane %v2689, %v2696
        %v2699 = vunpack.c.l.s4 1934713408
        %v2700 = vunpack.c.0.s8 %v2699
        %v2701 = vlaneseq
        %v2702 = vshrl.u32 %v2701, 7
        %v2703 = vsub.s32 %v2700, %v2702
        %v2704 = vrot.slane %v2690, %v2703
        %v2705 = vcombine.low %v2672, %v2688
        %v2706 = vcombine.high %v2672, %v2688
        %v2708 = vunpack.c.l.s4 1934713408
        %v2709 = vunpack.c.0.s8 %v2708
        %v2710 = vlaneseq
        %v2711 = vshrl.u32 %v2710, 7
        %v2712 = vsub.s32 %v2709, %v2711
        %v2713 = vrot.slane %v2705, %v2712
        %v2715 = vunpack.c.l.s4 1934713408
        %v2716 = vunpack.c.0.s8 %v2715
        %v2717 = vlaneseq
        %v2718 = vshrl.u32 %v2717, 7
        %v2719 = vsub.s32 %v2716, %v2718
        %v2720 = vrot.slane %v2706, %v2719
        %v2721 = vcombine.high %v2697, 0.0
        %v2722 = vcombine.high %v2704, 0.0
        %v2723 = vcombine.high %v2713, 0.0
        %v2724 = vcombine.high %v2720, 0.0
        %2725 = vrot.lane.b32.xlu0 %v2562, 64
        %v2726 = vpop.permute.xlu0 %2725
        %2727 = vrot.lane.b32.xlu0 %v2569, 64
        %v2728 = vpop.permute.xlu0 %2727
        %2729 = vrot.lane.b32.xlu0 %v2572, 64
        %v2730 = vpop.permute.xlu0 %2729
        %2731 = vrot.lane.b32.xlu0 %v2575, 64
        %v2732 = vpop.permute.xlu0 %2731
        %v2737 = vcombine.low %v2726, %v2730
        %v2738 = vcombine.high %v2726, %v2730
        %v2740 = vunpack.c.l.s4 1983009808
        %v2741 = vunpack.c.0.s8 %v2740
        %v2742 = vlaneseq
        %v2743 = vshrl.u32 %v2742, 7
        %v2744 = vsub.s32 %v2741, %v2743
        %v2745 = vrot.slane %v2737, %v2744
        %v2747 = vunpack.c.l.s4 1983009808
        %v2748 = vunpack.c.0.s8 %v2747
        %v2749 = vlaneseq
        %v2750 = vshrl.u32 %v2749, 7
        %v2751 = vsub.s32 %v2748, %v2750
        %v2752 = vrot.slane %v2738, %v2751
        %v2753 = vcombine.low %v2728, %v2732
        %v2754 = vcombine.high %v2728, %v2732
        %v2756 = vunpack.c.l.s4 1983009808
        %v2757 = vunpack.c.0.s8 %v2756
        %v2758 = vlaneseq
        %v2759 = vshrl.u32 %v2758, 7
        %v2760 = vsub.s32 %v2757, %v2759
        %v2761 = vrot.slane %v2753, %v2760
        %v2763 = vunpack.c.l.s4 1983009808
        %v2764 = vunpack.c.0.s8 %v2763
        %v2765 = vlaneseq
        %v2766 = vshrl.u32 %v2765, 7
        %v2767 = vsub.s32 %v2764, %v2766
        %v2768 = vrot.slane %v2754, %v2767
        %v2769 = vcombine.low %v2745, %v2761
        %v2770 = vcombine.high %v2745, %v2761
        %v2772 = vunpack.c.l.s4 1934713408
        %v2773 = vunpack.c.0.s8 %v2772
        %v2774 = vlaneseq
        %v2775 = vshrl.u32 %v2774, 7
        %v2776 = vsub.s32 %v2773, %v2775
        %v2777 = vrot.slane %v2769, %v2776
        %v2779 = vunpack.c.l.s4 1934713408
        %v2780 = vunpack.c.0.s8 %v2779
        %v2781 = vlaneseq
        %v2782 = vshrl.u32 %v2781, 7
        %v2783 = vsub.s32 %v2780, %v2782
        %v2784 = vrot.slane %v2770, %v2783
        %v2785 = vcombine.low %v2752, %v2768
        %v2786 = vcombine.high %v2752, %v2768
        %v2788 = vunpack.c.l.s4 1934713408
        %v2789 = vunpack.c.0.s8 %v2788
        %v2790 = vlaneseq
        %v2791 = vshrl.u32 %v2790, 7
        %v2792 = vsub.s32 %v2789, %v2791
        %v2793 = vrot.slane %v2785, %v2792
        %v2795 = vunpack.c.l.s4 1934713408
        %v2796 = vunpack.c.0.s8 %v2795
        %v2797 = vlaneseq
        %v2798 = vshrl.u32 %v2797, 7
        %v2799 = vsub.s32 %v2796, %v2798
        %v2800 = vrot.slane %v2786, %v2799
        %v2801 = vcombine.high %v2777, 0.0
        %v2802 = vcombine.high %v2784, 0.0
        %v2803 = vcombine.high %v2793, 0.0
        %v2804 = vcombine.high %v2800, 0.0
        %v2805 = vpack.c.bf16 %v2617, %v2617
        %v2806 = vpack.c.bf16 %v2641, %v2641
        %v2807 = vpack.c.bf16 %v2624, %v2624
        %v2808 = vpack.c.bf16 %v2642, %v2642
        %v2809 = vpack.c.bf16 %v2633, %v2633
        %v2810 = vpack.c.bf16 %v2643, %v2643
        %v2811 = vpack.c.bf16 %v2640, %v2640
        %v2812 = vpack.c.bf16 %v2644, %v2644
        %v2813 = vpack.c.bf16 %v2697, %v2697
        %v2814 = vpack.c.bf16 %v2721, %v2721
        %v2815 = vpack.c.bf16 %v2704, %v2704
        %v2816 = vpack.c.bf16 %v2722, %v2722
        %v2817 = vpack.c.bf16 %v2713, %v2713
        %v2818 = vpack.c.bf16 %v2723, %v2723
        %v2819 = vpack.c.bf16 %v2720, %v2720
        %v2820 = vpack.c.bf16 %v2724, %v2724
        %v2821 = vcombine.low %v2805, %v2809
        %v2823 = vunpack.c.l.s4 1983009808
        %v2824 = vunpack.c.0.s8 %v2823
        %v2825 = vlaneseq
        %v2826 = vshrl.u32 %v2825, 7
        %v2827 = vsub.s32 %v2824, %v2826
        %v2828 = vrot.slane %v2821, %v2827
        %v2829 = vcombine.low %v2807, %v2811
        %v2831 = vunpack.c.l.s4 1983009808
        %v2832 = vunpack.c.0.s8 %v2831
        %v2833 = vlaneseq
        %v2834 = vshrl.u32 %v2833, 7
        %v2835 = vsub.s32 %v2832, %v2834
        %v2836 = vrot.slane %v2829, %v2835
        %v2837 = vcombine.low %v2828, %v2836
        %v2839 = vunpack.c.l.s4 1934713408
        %v2840 = vunpack.c.0.s8 %v2839
        %v2841 = vlaneseq
        %v2842 = vshrl.u32 %v2841, 7
        %v2843 = vsub.s32 %v2840, %v2842
        %v2844 = vrot.slane %v2837, %v2843
        %v2845 = vcombine.high %v2844, 0
        %v2846 = vcombine.low %v2806, %v2810
        %v2848 = vunpack.c.l.s4 1983009808
        %v2849 = vunpack.c.0.s8 %v2848
        %v2850 = vlaneseq
        %v2851 = vshrl.u32 %v2850, 7
        %v2852 = vsub.s32 %v2849, %v2851
        %v2853 = vrot.slane %v2846, %v2852
        %v2854 = vcombine.low %v2808, %v2812
        %v2856 = vunpack.c.l.s4 1983009808
        %v2857 = vunpack.c.0.s8 %v2856
        %v2858 = vlaneseq
        %v2859 = vshrl.u32 %v2858, 7
        %v2860 = vsub.s32 %v2857, %v2859
        %v2861 = vrot.slane %v2854, %v2860
        %v2862 = vcombine.low %v2853, %v2861
        %v2864 = vunpack.c.l.s4 1934713408
        %v2865 = vunpack.c.0.s8 %v2864
        %v2866 = vlaneseq
        %v2867 = vshrl.u32 %v2866, 7
        %v2868 = vsub.s32 %v2865, %v2867
        %v2869 = vrot.slane %v2862, %v2868
        %v2870 = vcombine.high %v2869, 0
        %v2873 = vpack.i.b16 %v2869, %v2844
        %v2874 = vshrl.u32 %v2844, 16
        %v2875 = vshrl.u32 %v2869, 16
        %v2876 = vpack.i.b16 %v2875, %v2874
        %v2879 = vpack.i.b16 %v2870, %v2845
        %v2880 = vshrl.u32 %v2845, 16
        %v2881 = vshrl.u32 %v2870, 16
        %v2882 = vpack.i.b16 %v2881, %v2880
        %2883 = vxpose.xlu0.c.b16.start [1/8] %v2813, 128
        %2884 = vxpose.xlu0.c.b16.cont [2/8] 0, 128
        %2885 = vxpose.xlu0.c.b16.cont [3/8] 0, 128
        %2886 = vxpose.xlu0.c.b16.cont [4/8] 0, 128
        %2887 = vxpose.xlu0.c.b16.cont [5/8] 0, 128
        %2888 = vxpose.xlu0.c.b16.cont [6/8] 0, 128
        %2889 = vxpose.xlu0.c.b16.cont [7/8] 0, 128
        %2890 = vxpose.xlu0.c.b16.end [8/8] 0, 128
        %v2891 = vpop.trf.xlu0
        %v2892 = vpop.trf.xlu0
        %v2893 = vpop.trf.xlu0
        %v2894 = vpop.trf.xlu0
        %v2895 = vpop.trf.xlu0
        %v2896 = vpop.trf.xlu0
        %v2897 = vpop.trf.xlu0
        %v2898 = vpop.trf.xlu0
        %2899 = vxpose.xlu0.c.b16.start [1/8] %v2814, 128
        %2900 = vxpose.xlu0.c.b16.cont [2/8] 0, 128
        %2901 = vxpose.xlu0.c.b16.cont [3/8] 0, 128
        %2902 = vxpose.xlu0.c.b16.cont [4/8] 0, 128
        %2903 = vxpose.xlu0.c.b16.cont [5/8] 0, 128
        %2904 = vxpose.xlu0.c.b16.cont [6/8] 0, 128
        %2905 = vxpose.xlu0.c.b16.cont [7/8] 0, 128
        %2906 = vxpose.xlu0.c.b16.end [8/8] 0, 128
        %v2907 = vpop.trf.xlu0
        %v2908 = vpop.trf.xlu0
        %v2909 = vpop.trf.xlu0
        %v2910 = vpop.trf.xlu0
        %v2911 = vpop.trf.xlu0
        %v2912 = vpop.trf.xlu0
        %v2913 = vpop.trf.xlu0
        %v2914 = vpop.trf.xlu0
        %2915 = vxpose.xlu0.c.b16.start [1/8] %v2815, 128
        %2916 = vxpose.xlu0.c.b16.cont [2/8] 0, 128
        %2917 = vxpose.xlu0.c.b16.cont [3/8] 0, 128
        %2918 = vxpose.xlu0.c.b16.cont [4/8] 0, 128
        %2919 = vxpose.xlu0.c.b16.cont [5/8] 0, 128
        %2920 = vxpose.xlu0.c.b16.cont [6/8] 0, 128
        %2921 = vxpose.xlu0.c.b16.cont [7/8] 0, 128
        %2922 = vxpose.xlu0.c.b16.end [8/8] 0, 128
        %v2923 = vpop.trf.xlu0
        %v2924 = vpop.trf.xlu0
        %v2925 = vpop.trf.xlu0
        %v2926 = vpop.trf.xlu0
        %v2927 = vpop.trf.xlu0
        %v2928 = vpop.trf.xlu0
        %v2929 = vpop.trf.xlu0
        %v2930 = vpop.trf.xlu0
        %2931 = vxpose.xlu0.c.b16.start [1/8] %v2816, 128
        %2932 = vxpose.xlu0.c.b16.cont [2/8] 0, 128
        %2933 = vxpose.xlu0.c.b16.cont [3/8] 0, 128
        %2934 = vxpose.xlu0.c.b16.cont [4/8] 0, 128
        %2935 = vxpose.xlu0.c.b16.cont [5/8] 0, 128
        %2936 = vxpose.xlu0.c.b16.cont [6/8] 0, 128
        %2937 = vxpose.xlu0.c.b16.cont [7/8] 0, 128
        %2938 = vxpose.xlu0.c.b16.end [8/8] 0, 128
        %v2939 = vpop.trf.xlu0
        %v2940 = vpop.trf.xlu0
        %v2941 = vpop.trf.xlu0
        %v2942 = vpop.trf.xlu0
        %v2943 = vpop.trf.xlu0
        %v2944 = vpop.trf.xlu0
        %v2945 = vpop.trf.xlu0
        %v2946 = vpop.trf.xlu0
        %2947 = vxpose.xlu0.c.b16.start [1/8] %v2817, 128
        %2948 = vxpose.xlu0.c.b16.cont [2/8] 0, 128
        %2949 = vxpose.xlu0.c.b16.cont [3/8] 0, 128
        %2950 = vxpose.xlu0.c.b16.cont [4/8] 0, 128
        %2951 = vxpose.xlu0.c.b16.cont [5/8] 0, 128
        %2952 = vxpose.xlu0.c.b16.cont [6/8] 0, 128
        %2953 = vxpose.xlu0.c.b16.cont [7/8] 0, 128
        %2954 = vxpose.xlu0.c.b16.end [8/8] 0, 128
        %v2955 = vpop.trf.xlu0
        %v2956 = vpop.trf.xlu0
        %v2957 = vpop.trf.xlu0
        %v2958 = vpop.trf.xlu0
        %v2959 = vpop.trf.xlu0
        %v2960 = vpop.trf.xlu0
        %v2961 = vpop.trf.xlu0
        %v2962 = vpop.trf.xlu0
        %2963 = vxpose.xlu0.c.b16.start [1/8] %v2818, 128
        %2964 = vxpose.xlu0.c.b16.cont [2/8] 0, 128
        %2965 = vxpose.xlu0.c.b16.cont [3/8] 0, 128
        %2966 = vxpose.xlu0.c.b16.cont [4/8] 0, 128
        %2967 = vxpose.xlu0.c.b16.cont [5/8] 0, 128
        %2968 = vxpose.xlu0.c.b16.cont [6/8] 0, 128
        %2969 = vxpose.xlu0.c.b16.cont [7/8] 0, 128
        %2970 = vxpose.xlu0.c.b16.end [8/8] 0, 128
        %v2971 = vpop.trf.xlu0
        %v2972 = vpop.trf.xlu0
        %v2973 = vpop.trf.xlu0
        %v2974 = vpop.trf.xlu0
        %v2975 = vpop.trf.xlu0
        %v2976 = vpop.trf.xlu0
        %v2977 = vpop.trf.xlu0
        %v2978 = vpop.trf.xlu0
        %2979 = vxpose.xlu0.c.b16.start [1/8] %v2819, 128
        %2980 = vxpose.xlu0.c.b16.cont [2/8] 0, 128
        %2981 = vxpose.xlu0.c.b16.cont [3/8] 0, 128
        %2982 = vxpose.xlu0.c.b16.cont [4/8] 0, 128
        %2983 = vxpose.xlu0.c.b16.cont [5/8] 0, 128
        %2984 = vxpose.xlu0.c.b16.cont [6/8] 0, 128
        %2985 = vxpose.xlu0.c.b16.cont [7/8] 0, 128
        %2986 = vxpose.xlu0.c.b16.end [8/8] 0, 128
        %v2987 = vpop.trf.xlu0
        %v2988 = vpop.trf.xlu0
        %v2989 = vpop.trf.xlu0
        %v2990 = vpop.trf.xlu0
        %v2991 = vpop.trf.xlu0
        %v2992 = vpop.trf.xlu0
        %v2993 = vpop.trf.xlu0
        %v2994 = vpop.trf.xlu0
        %2995 = vxpose.xlu0.c.b16.start [1/8] %v2820, 128
        %2996 = vxpose.xlu0.c.b16.cont [2/8] 0, 128
        %2997 = vxpose.xlu0.c.b16.cont [3/8] 0, 128
        %2998 = vxpose.xlu0.c.b16.cont [4/8] 0, 128
        %2999 = vxpose.xlu0.c.b16.cont [5/8] 0, 128
        %3000 = vxpose.xlu0.c.b16.cont [6/8] 0, 128
        %3001 = vxpose.xlu0.c.b16.cont [7/8] 0, 128
        %3002 = vxpose.xlu0.c.b16.end [8/8] 0, 128
        %v3003 = vpop.trf.xlu0
        %v3004 = vpop.trf.xlu0
        %v3005 = vpop.trf.xlu0
        %v3006 = vpop.trf.xlu0
        %v3007 = vpop.trf.xlu0
        %v3008 = vpop.trf.xlu0
        %v3009 = vpop.trf.xlu0
        %v3010 = vpop.trf.xlu0
        %v3011 = vcombine.low %v2891, %v2955
        %v3013 = vunpack.c.l.s4 1983009808
        %v3014 = vunpack.c.0.s8 %v3013
        %v3015 = vlaneseq
        %v3016 = vshrl.u32 %v3015, 7
        %v3017 = vsub.s32 %v3014, %v3016
        %v3018 = vrot.slane %v3011, %v3017
        %v3019 = vcombine.low %v2923, %v2987
        %v3021 = vunpack.c.l.s4 1983009808
        %v3022 = vunpack.c.0.s8 %v3021
        %v3023 = vlaneseq
        %v3024 = vshrl.u32 %v3023, 7
        %v3025 = vsub.s32 %v3022, %v3024
        %v3026 = vrot.slane %v3019, %v3025
        %v3027 = vcombine.low %v3018, %v3026
        %v3028 = vcombine.high %v3018, %v3026
        %v3030 = vunpack.c.l.s4 1934713408
        %v3031 = vunpack.c.0.s8 %v3030
        %v3032 = vlaneseq
        %v3033 = vshrl.u32 %v3032, 7
        %v3034 = vsub.s32 %v3031, %v3033
        %v3035 = vrot.slane %v3027, %v3034
        %v3037 = vunpack.c.l.s4 1934713408
        %v3038 = vunpack.c.0.s8 %v3037
        %v3039 = vlaneseq
        %v3040 = vshrl.u32 %v3039, 7
        %v3041 = vsub.s32 %v3038, %v3040
        %v3042 = vrot.slane %v3028, %v3041
        %v3043 = vcombine.high %v3035, 0
        %v3044 = vcombine.high %v3042, 0
        %v3045 = vcombine.low %v2907, %v2971
        %v3047 = vunpack.c.l.s4 1983009808
        %v3048 = vunpack.c.0.s8 %v3047
        %v3049 = vlaneseq
        %v3050 = vshrl.u32 %v3049, 7
        %v3051 = vsub.s32 %v3048, %v3050
        %v3052 = vrot.slane %v3045, %v3051
        %v3053 = vcombine.low %v2939, %v3003
        %v3055 = vunpack.c.l.s4 1983009808
        %v3056 = vunpack.c.0.s8 %v3055
        %v3057 = vlaneseq
        %v3058 = vshrl.u32 %v3057, 7
        %v3059 = vsub.s32 %v3056, %v3058
        %v3060 = vrot.slane %v3053, %v3059
        %v3061 = vcombine.low %v3052, %v3060
        %v3062 = vcombine.high %v3052, %v3060
        %v3064 = vunpack.c.l.s4 1934713408
        %v3065 = vunpack.c.0.s8 %v3064
        %v3066 = vlaneseq
        %v3067 = vshrl.u32 %v3066, 7
        %v3068 = vsub.s32 %v3065, %v3067
        %v3069 = vrot.slane %v3061, %v3068
        %v3071 = vunpack.c.l.s4 1934713408
        %v3072 = vunpack.c.0.s8 %v3071
        %v3073 = vlaneseq
        %v3074 = vshrl.u32 %v3073, 7
        %v3075 = vsub.s32 %v3072, %v3074
        %v3076 = vrot.slane %v3062, %v3075
        %v3077 = vcombine.high %v3069, 0
        %v3078 = vcombine.high %v3076, 0
        %v3081 = vpack.i.b16 %v3069, %v3035
        %v3083 = vshrl.u32 %v3035, 16
        %v3084 = vshrl.u32 %v3069, 16
        %v3085 = vpack.i.b16 %v3084, %v3083
        %v3089 = vpack.i.b16 %v3077, %v3043
        %v3091 = vshrl.u32 %v3043, 16
        %v3092 = vshrl.u32 %v3077, 16
        %v3093 = vpack.i.b16 %v3092, %v3091
        %v3097 = vpack.i.b16 %v3076, %v3042
        %v3099 = vshrl.u32 %v3042, 16
        %v3100 = vshrl.u32 %v3076, 16
        %v3101 = vpack.i.b16 %v3100, %v3099
        %v3105 = vpack.i.b16 %v3078, %v3044
        %v3107 = vshrl.u32 %v3044, 16
        %v3108 = vshrl.u32 %v3078, 16
        %v3109 = vpack.i.b16 %v3108, %v3107
        %3111 = vxpose.xlu0.c.b16.start [1/8] %v3081, 128
        %3112 = vxpose.xlu0.c.b16.cont [2/8] 0, 128
        %3113 = vxpose.xlu0.c.b16.cont [3/8] 0, 128
        %3114 = vxpose.xlu0.c.b16.cont [4/8] 0, 128
        %3115 = vxpose.xlu0.c.b16.cont [5/8] 0, 128
        %3116 = vxpose.xlu0.c.b16.cont [6/8] 0, 128
        %3117 = vxpose.xlu0.c.b16.cont [7/8] 0, 128
        %3118 = vxpose.xlu0.c.b16.end [8/8] 0, 128
        %v3119 = vpop.trf.xlu0
        %v3120 = vpop.trf.xlu0
        %v3121 = vpop.trf.xlu0
        %v3122 = vpop.trf.xlu0
        %v3123 = vpop.trf.xlu0
        %v3124 = vpop.trf.xlu0
        %v3125 = vpop.trf.xlu0
        %v3126 = vpop.trf.xlu0
        %3127 = vxpose.xlu0.c.b16.start [1/8] %v3085, 128
        %3128 = vxpose.xlu0.c.b16.cont [2/8] 0, 128
        %3129 = vxpose.xlu0.c.b16.cont [3/8] 0, 128
        %3130 = vxpose.xlu0.c.b16.cont [4/8] 0, 128
        %3131 = vxpose.xlu0.c.b16.cont [5/8] 0, 128
        %3132 = vxpose.xlu0.c.b16.cont [6/8] 0, 128
        %3133 = vxpose.xlu0.c.b16.cont [7/8] 0, 128
        %3134 = vxpose.xlu0.c.b16.end [8/8] 0, 128
        %v3135 = vpop.trf.xlu0
        %v3136 = vpop.trf.xlu0
        %v3137 = vpop.trf.xlu0
        %v3138 = vpop.trf.xlu0
        %v3139 = vpop.trf.xlu0
        %v3140 = vpop.trf.xlu0
        %v3141 = vpop.trf.xlu0
        %v3142 = vpop.trf.xlu0
        %3143 = vxpose.xlu0.c.b16.start [1/8] %v3089, 128
        %3144 = vxpose.xlu0.c.b16.cont [2/8] 0, 128
        %3145 = vxpose.xlu0.c.b16.cont [3/8] 0, 128
        %3146 = vxpose.xlu0.c.b16.cont [4/8] 0, 128
        %3147 = vxpose.xlu0.c.b16.cont [5/8] 0, 128
        %3148 = vxpose.xlu0.c.b16.cont [6/8] 0, 128
        %3149 = vxpose.xlu0.c.b16.cont [7/8] 0, 128
        %3150 = vxpose.xlu0.c.b16.end [8/8] 0, 128
        %v3151 = vpop.trf.xlu0
        %v3152 = vpop.trf.xlu0
        %v3153 = vpop.trf.xlu0
        %v3154 = vpop.trf.xlu0
        %v3155 = vpop.trf.xlu0
        %v3156 = vpop.trf.xlu0
        %v3157 = vpop.trf.xlu0
        %v3158 = vpop.trf.xlu0
        %3159 = vxpose.xlu0.c.b16.start [1/8] %v3093, 128
        %3160 = vxpose.xlu0.c.b16.cont [2/8] 0, 128
        %3161 = vxpose.xlu0.c.b16.cont [3/8] 0, 128
        %3162 = vxpose.xlu0.c.b16.cont [4/8] 0, 128
        %3163 = vxpose.xlu0.c.b16.cont [5/8] 0, 128
        %3164 = vxpose.xlu0.c.b16.cont [6/8] 0, 128
        %3165 = vxpose.xlu0.c.b16.cont [7/8] 0, 128
        %3166 = vxpose.xlu0.c.b16.end [8/8] 0, 128
        %v3167 = vpop.trf.xlu0
        %v3168 = vpop.trf.xlu0
        %v3169 = vpop.trf.xlu0
        %v3170 = vpop.trf.xlu0
        %v3171 = vpop.trf.xlu0
        %v3172 = vpop.trf.xlu0
        %v3173 = vpop.trf.xlu0
        %v3174 = vpop.trf.xlu0
        %3175 = vxpose.xlu0.c.b16.start [1/8] %v3097, 128
        %3176 = vxpose.xlu0.c.b16.cont [2/8] 0, 128
        %3177 = vxpose.xlu0.c.b16.cont [3/8] 0, 128
        %3178 = vxpose.xlu0.c.b16.cont [4/8] 0, 128
        %3179 = vxpose.xlu0.c.b16.cont [5/8] 0, 128
        %3180 = vxpose.xlu0.c.b16.cont [6/8] 0, 128
        %3181 = vxpose.xlu0.c.b16.cont [7/8] 0, 128
        %3182 = vxpose.xlu0.c.b16.end [8/8] 0, 128
        %v3183 = vpop.trf.xlu0
        %v3184 = vpop.trf.xlu0
        %v3185 = vpop.trf.xlu0
        %v3186 = vpop.trf.xlu0
        %v3187 = vpop.trf.xlu0
        %v3188 = vpop.trf.xlu0
        %v3189 = vpop.trf.xlu0
        %v3190 = vpop.trf.xlu0
        %3191 = vxpose.xlu0.c.b16.start [1/8] %v3101, 128
        %3192 = vxpose.xlu0.c.b16.cont [2/8] 0, 128
        %3193 = vxpose.xlu0.c.b16.cont [3/8] 0, 128
        %3194 = vxpose.xlu0.c.b16.cont [4/8] 0, 128
        %3195 = vxpose.xlu0.c.b16.cont [5/8] 0, 128
        %3196 = vxpose.xlu0.c.b16.cont [6/8] 0, 128
        %3197 = vxpose.xlu0.c.b16.cont [7/8] 0, 128
        %3198 = vxpose.xlu0.c.b16.end [8/8] 0, 128
        %v3199 = vpop.trf.xlu0
        %v3200 = vpop.trf.xlu0
        %v3201 = vpop.trf.xlu0
        %v3202 = vpop.trf.xlu0
        %v3203 = vpop.trf.xlu0
        %v3204 = vpop.trf.xlu0
        %v3205 = vpop.trf.xlu0
        %v3206 = vpop.trf.xlu0
        %3207 = vxpose.xlu0.c.b16.start [1/8] %v3105, 128
        %3208 = vxpose.xlu0.c.b16.cont [2/8] 0, 128
        %3209 = vxpose.xlu0.c.b16.cont [3/8] 0, 128
        %3210 = vxpose.xlu0.c.b16.cont [4/8] 0, 128
        %3211 = vxpose.xlu0.c.b16.cont [5/8] 0, 128
        %3212 = vxpose.xlu0.c.b16.cont [6/8] 0, 128
        %3213 = vxpose.xlu0.c.b16.cont [7/8] 0, 128
        %3214 = vxpose.xlu0.c.b16.end [8/8] 0, 128
        %v3215 = vpop.trf.xlu0
        %v3216 = vpop.trf.xlu0
        %v3217 = vpop.trf.xlu0
        %v3218 = vpop.trf.xlu0
        %v3219 = vpop.trf.xlu0
        %v3220 = vpop.trf.xlu0
        %v3221 = vpop.trf.xlu0
        %v3222 = vpop.trf.xlu0
        %3223 = vxpose.xlu0.c.b16.start [1/8] %v3109, 128
        %3224 = vxpose.xlu0.c.b16.cont [2/8] 0, 128
        %3225 = vxpose.xlu0.c.b16.cont [3/8] 0, 128
        %3226 = vxpose.xlu0.c.b16.cont [4/8] 0, 128
        %3227 = vxpose.xlu0.c.b16.cont [5/8] 0, 128
        %3228 = vxpose.xlu0.c.b16.cont [6/8] 0, 128
        %3229 = vxpose.xlu0.c.b16.cont [7/8] 0, 128
        %3230 = vxpose.xlu0.c.b16.end [8/8] 0, 128
        %v3231 = vpop.trf.xlu0
        %v3232 = vpop.trf.xlu0
        %v3233 = vpop.trf.xlu0
        %v3234 = vpop.trf.xlu0
        %v3235 = vpop.trf.xlu0
        %v3236 = vpop.trf.xlu0
        %v3237 = vpop.trf.xlu0
        %v3238 = vpop.trf.xlu0
        %v3239 = vcombine.low %v3119, %v3183
        %v3241 = vunpack.c.l.s4 1983009808
        %v3242 = vunpack.c.0.s8 %v3241
        %v3243 = vlaneseq
        %v3244 = vshrl.u32 %v3243, 7
        %v3245 = vsub.s32 %v3242, %v3244
        %v3246 = vrot.slane %v3239, %v3245
        %v3247 = vcombine.low %v3151, %v3215
        %v3249 = vunpack.c.l.s4 1983009808
        %v3250 = vunpack.c.0.s8 %v3249
        %v3251 = vlaneseq
        %v3252 = vshrl.u32 %v3251, 7
        %v3253 = vsub.s32 %v3250, %v3252
        %v3254 = vrot.slane %v3247, %v3253
        %v3255 = vcombine.low %v3246, %v3254
        %v3257 = vunpack.c.l.s4 1934713408
        %v3258 = vunpack.c.0.s8 %v3257
        %v3259 = vlaneseq
        %v3260 = vshrl.u32 %v3259, 7
        %v3261 = vsub.s32 %v3258, %v3260
        %v3262 = vrot.slane %v3255, %v3261
        %v3263 = vcombine.high %v3262, 0
        %v3264 = vcombine.low %v3135, %v3199
        %v3266 = vunpack.c.l.s4 1983009808
        %v3267 = vunpack.c.0.s8 %v3266
        %v3268 = vlaneseq
        %v3269 = vshrl.u32 %v3268, 7
        %v3270 = vsub.s32 %v3267, %v3269
        %v3271 = vrot.slane %v3264, %v3270
        %v3272 = vcombine.low %v3167, %v3231
        %v3274 = vunpack.c.l.s4 1983009808
        %v3275 = vunpack.c.0.s8 %v3274
        %v3276 = vlaneseq
        %v3277 = vshrl.u32 %v3276, 7
        %v3278 = vsub.s32 %v3275, %v3277
        %v3279 = vrot.slane %v3272, %v3278
        %v3280 = vcombine.low %v3271, %v3279
        %v3282 = vunpack.c.l.s4 1934713408
        %v3283 = vunpack.c.0.s8 %v3282
        %v3284 = vlaneseq
        %v3285 = vshrl.u32 %v3284, 7
        %v3286 = vsub.s32 %v3283, %v3285
        %v3287 = vrot.slane %v3280, %v3286
        %v3288 = vcombine.high %v3287, 0
        %v3291 = vpack.i.b16 %v3287, %v3262
        %v3292 = vshrl.u32 %v3262, 16
        %v3293 = vshrl.u32 %v3287, 16
        %v3294 = vpack.i.b16 %v3293, %v3292
        %v3297 = vpack.i.b16 %v3288, %v3263
        %v3298 = vshrl.u32 %v3263, 16
        %v3299 = vshrl.u32 %v3288, 16
        %v3300 = vpack.i.b16 %v3299, %v3298
        %v3302 = vsel %vm1092, %v2873, 0
        %v3305 = vsel %vm1096, %v3291, 0
        %3307 = vmatprep.subr.bf16.mxu0 0
        %3308 = vmatpush1.bf16.msra.mxu0 %v3305
        %3309 = vmatprep.subr.bf16.mxu0 0
        %3310 = vmatpush1.bf16.msra.mxu0 0
        %3311 = vmatprep.subr.bf16.mxu0 0
        %3312 = vmatpush1.bf16.msra.mxu0 0
        %3313 = vmatprep.subr.bf16.mxu0 0
        %3314 = vmatpush1.bf16.msra.mxu0 0
        %3315 = vmatprep.subr.bf16.mxu0 0
        %3316 = vmatpush1.bf16.msra.mxu0 0
        %3317 = vmatprep.subr.bf16.mxu0 0
        %3318 = vmatpush1.bf16.msra.mxu0 0
        %3319 = vmatprep.subr.bf16.mxu0 0
        %3320 = vmatpush1.bf16.msra.mxu0 0
        %3321 = vmatprep.subr.bf16.mxu0 0
        %3322 = vmatpush1.bf16.msra.mxu0 0
        %3323 = vmatprep.subr.bf16.mxu0 0
        %3324 = vmatpush1.bf16.msra.mxu0 0
        %3325 = vmatprep.subr.bf16.mxu0 0
        %3326 = vmatpush1.bf16.msra.mxu0 0
        %3327 = vmatprep.subr.bf16.mxu0 0
        %3328 = vmatpush1.bf16.msra.mxu0 0
        %3329 = vmatprep.subr.bf16.mxu0 0
        %3330 = vmatpush1.bf16.msra.mxu0 0
        %3331 = vmatprep.subr.bf16.mxu0 0
        %3332 = vmatpush1.bf16.msra.mxu0 0
        %3333 = vmatprep.subr.bf16.mxu0 0
        %3334 = vmatpush1.bf16.msra.mxu0 0
        %3335 = vmatprep.subr.bf16.mxu0 0
        %3336 = vmatpush1.bf16.msra.mxu0 0
        %3337 = vmatprep.subr.bf16.mxu0 0
        %3338 = vmatpush1.bf16.msra.mxu0 0
        %3339 = vmatprep.mubr.bf16.mxu0 0
        %3340 = vmatmul.mubr.bf16.gmra.mrb[0].mxu0 %v3302
        %v3341 = vpop.f32.mrb[0].mxu0
        %v3342 = vadd.f32 %v295, %v3341
        %v3343 = vpop.f32.mrb[0].mxu0
        %v3344 = vpop.f32.mrb[0].mxu0
        %v3345 = vpop.f32.mrb[0].mxu0
        %3346 = vdwg.mxu0
        %v3348 = vsel %vm1092, %v2876, 0
        %v3351 = vsel %vm1096, %v3294, 0
        %3353 = vmatprep.subr.bf16.mxu0 0
        %3354 = vmatpush1.bf16.msra.mxu0 %v3351
        %3355 = vmatprep.subr.bf16.mxu0 0
        %3356 = vmatpush1.bf16.msra.mxu0 0
        %3357 = vmatprep.subr.bf16.mxu0 0
        %3358 = vmatpush1.bf16.msra.mxu0 0
        %3359 = vmatprep.subr.bf16.mxu0 0
        %3360 = vmatpush1.bf16.msra.mxu0 0
        %3361 = vmatprep.subr.bf16.mxu0 0
        %3362 = vmatpush1.bf16.msra.mxu0 0
        %3363 = vmatprep.subr.bf16.mxu0 0
        %3364 = vmatpush1.bf16.msra.mxu0 0
        %3365 = vmatprep.subr.bf16.mxu0 0
        %3366 = vmatpush1.bf16.msra.mxu0 0
        %3367 = vmatprep.subr.bf16.mxu0 0
        %3368 = vmatpush1.bf16.msra.mxu0 0
        %3369 = vmatprep.subr.bf16.mxu0 0
        %3370 = vmatpush1.bf16.msra.mxu0 0
        %3371 = vmatprep.subr.bf16.mxu0 0
        %3372 = vmatpush1.bf16.msra.mxu0 0
        %3373 = vmatprep.subr.bf16.mxu0 0
        %3374 = vmatpush1.bf16.msra.mxu0 0
        %3375 = vmatprep.subr.bf16.mxu0 0
        %3376 = vmatpush1.bf16.msra.mxu0 0
        %3377 = vmatprep.subr.bf16.mxu0 0
        %3378 = vmatpush1.bf16.msra.mxu0 0
        %3379 = vmatprep.subr.bf16.mxu0 0
        %3380 = vmatpush1.bf16.msra.mxu0 0
        %3381 = vmatprep.subr.bf16.mxu0 0
        %3382 = vmatpush1.bf16.msra.mxu0 0
        %3383 = vmatprep.subr.bf16.mxu0 0
        %3384 = vmatpush1.bf16.msra.mxu0 0
        %3385 = vmatprep.mubr.bf16.mxu0 0
        %3386 = vmatmul.mubr.bf16.gmra.mrb[0].mxu0 %v3348
        %v3387 = vpop.f32.mrb[0].mxu0
        %v3388 = vadd.f32 %v295, %v3387
        %v3389 = vpop.f32.mrb[0].mxu0
        %v3390 = vpop.f32.mrb[0].mxu0
        %v3391 = vpop.f32.mrb[0].mxu0
        %3392 = vdwg.mxu0
        %v3394 = vsel %vm1092, %v2879, 0
        %v3397 = vsel %vm1096, %v3297, 0
        %3399 = vmatprep.subr.bf16.mxu0 0
        %3400 = vmatpush1.bf16.msra.mxu0 %v3397
        %3401 = vmatprep.subr.bf16.mxu0 0
        %3402 = vmatpush1.bf16.msra.mxu0 0
        %3403 = vmatprep.subr.bf16.mxu0 0
        %3404 = vmatpush1.bf16.msra.mxu0 0
        %3405 = vmatprep.subr.bf16.mxu0 0
        %3406 = vmatpush1.bf16.msra.mxu0 0
        %3407 = vmatprep.subr.bf16.mxu0 0
        %3408 = vmatpush1.bf16.msra.mxu0 0
        %3409 = vmatprep.subr.bf16.mxu0 0
        %3410 = vmatpush1.bf16.msra.mxu0 0
        %3411 = vmatprep.subr.bf16.mxu0 0
        %3412 = vmatpush1.bf16.msra.mxu0 0
        %3413 = vmatprep.subr.bf16.mxu0 0
        %3414 = vmatpush1.bf16.msra.mxu0 0
        %3415 = vmatprep.subr.bf16.mxu0 0
        %3416 = vmatpush1.bf16.msra.mxu0 0
        %3417 = vmatprep.subr.bf16.mxu0 0
        %3418 = vmatpush1.bf16.msra.mxu0 0
        %3419 = vmatprep.subr.bf16.mxu0 0
        %3420 = vmatpush1.bf16.msra.mxu0 0
        %3421 = vmatprep.subr.bf16.mxu0 0
        %3422 = vmatpush1.bf16.msra.mxu0 0
        %3423 = vmatprep.subr.bf16.mxu0 0
        %3424 = vmatpush1.bf16.msra.mxu0 0
        %3425 = vmatprep.subr.bf16.mxu0 0
        %3426 = vmatpush1.bf16.msra.mxu0 0
        %3427 = vmatprep.subr.bf16.mxu0 0
        %3428 = vmatpush1.bf16.msra.mxu0 0
        %3429 = vmatprep.subr.bf16.mxu0 0
        %3430 = vmatpush1.bf16.msra.mxu0 0
        %3431 = vmatprep.mubr.bf16.mxu0 0
        %3432 = vmatmul.mubr.bf16.gmra.mrb[0].mxu0 %v3394
        %v3433 = vpop.f32.mrb[0].mxu0
        %v3434 = vadd.f32 %v295, %v3433
        %v3435 = vpop.f32.mrb[0].mxu0
        %v3436 = vpop.f32.mrb[0].mxu0
        %v3437 = vpop.f32.mrb[0].mxu0
        %3438 = vdwg.mxu0
        %v3440 = vsel %vm1092, %v2882, 0
        %v3443 = vsel %vm1096, %v3300, 0
        %3445 = vmatprep.subr.bf16.mxu0 0
        %3446 = vmatpush1.bf16.msra.mxu0 %v3443
        %3447 = vmatprep.subr.bf16.mxu0 0
        %3448 = vmatpush1.bf16.msra.mxu0 0
        %3449 = vmatprep.subr.bf16.mxu0 0
        %3450 = vmatpush1.bf16.msra.mxu0 0
        %3451 = vmatprep.subr.bf16.mxu0 0
        %3452 = vmatpush1.bf16.msra.mxu0 0
        %3453 = vmatprep.subr.bf16.mxu0 0
        %3454 = vmatpush1.bf16.msra.mxu0 0
        %3455 = vmatprep.subr.bf16.mxu0 0
        %3456 = vmatpush1.bf16.msra.mxu0 0
        %3457 = vmatprep.subr.bf16.mxu0 0
        %3458 = vmatpush1.bf16.msra.mxu0 0
        %3459 = vmatprep.subr.bf16.mxu0 0
        %3460 = vmatpush1.bf16.msra.mxu0 0
        %3461 = vmatprep.subr.bf16.mxu0 0
        %3462 = vmatpush1.bf16.msra.mxu0 0
        %3463 = vmatprep.subr.bf16.mxu0 0
        %3464 = vmatpush1.bf16.msra.mxu0 0
        %3465 = vmatprep.subr.bf16.mxu0 0
        %3466 = vmatpush1.bf16.msra.mxu0 0
        %3467 = vmatprep.subr.bf16.mxu0 0
        %3468 = vmatpush1.bf16.msra.mxu0 0
        %3469 = vmatprep.subr.bf16.mxu0 0
        %3470 = vmatpush1.bf16.msra.mxu0 0
        %3471 = vmatprep.subr.bf16.mxu0 0
        %3472 = vmatpush1.bf16.msra.mxu0 0
        %3473 = vmatprep.subr.bf16.mxu0 0
        %3474 = vmatpush1.bf16.msra.mxu0 0
        %3475 = vmatprep.subr.bf16.mxu0 0
        %3476 = vmatpush1.bf16.msra.mxu0 0
        %3477 = vmatprep.mubr.bf16.mxu0 0
        %3478 = vmatmul.mubr.bf16.gmra.mrb[0].mxu0 %v3440
        %v3479 = vpop.f32.mrb[0].mxu0
        %v3480 = vadd.f32 %v295, %v3479
        %v3481 = vpop.f32.mrb[0].mxu0
        %v3482 = vpop.f32.mrb[0].mxu0
        %v3483 = vpop.f32.mrb[0].mxu0
        %3484 = vdwg.mxu0
        %v3485 = vsel %vm1092, %v3342, -inf
        %3486 = vmax.xlane.f32.xlu0 %v3485
        %v3487 = vpop.xlane.xlu0 %3486
        %v3488 = vsel %vm1092, %v3388, -inf
        %3489 = vmax.xlane.f32.xlu0 %v3488
        %v3490 = vpop.xlane.xlu0 %3489
        %v3491 = vsel %vm1092, %v3434, -inf
        %3492 = vmax.xlane.f32.xlu0 %v3491
        %v3493 = vpop.xlane.xlu0 %3492
        %v3494 = vsel %vm1092, %v3480, -inf
        %3495 = vmax.xlane.f32.xlu0 %v3494
        %v3496 = vpop.xlane.xlu0 %3495
        %v3497 = vsub.f32 %v3342, %v3487
        %v3498 = vsub.f32 %v3388, %v3490
        %v3499 = vsub.f32 %v3434, %v3493
        %v3500 = vsub.f32 %v3480, %v3496
        %v3501 = vmul.f32 %v3497, 1.442695
        %v3502 = vpow.pop %v3501
        %v3503 = vmul.f32 %v3498, 1.442695
        %v3504 = vpow.pop %v3503
        %v3505 = vmul.f32 %v3499, 1.442695
        %v3506 = vpow.pop %v3505
        %v3507 = vmul.f32 %v3500, 1.442695
        %v3508 = vpow.pop %v3507
        %v3509 = vsel %vm1092, %v3502, 0.0
        %3510 = vadd.xlane.f32.xlu0 %v3509
        %v3511 = vpop.xlane.xlu0 %3510
        %v3512 = vsel %vm1092, %v3504, 0.0
        %3513 = vadd.xlane.f32.xlu0 %v3512
        %v3514 = vpop.xlane.xlu0 %3513
        %v3515 = vsel %vm1092, %v3506, 0.0
        %3516 = vadd.xlane.f32.xlu0 %v3515
        %v3517 = vpop.xlane.xlu0 %3516
        %v3518 = vsel %vm1092, %v3508, 0.0
        %3519 = vadd.xlane.f32.xlu0 %v3518
        %v3520 = vpop.xlane.xlu0 %3519
        %v3521 = vrcp.pop %v3511
        %v3522 = vrcp.pop %v3514
        %v3523 = vrcp.pop %v3517
        %v3524 = vrcp.pop %v3520
        %v3525 = vmul.f32 %v3502, %v3521
        %v3526 = vmul.f32 %v3504, %v3522
        %v3527 = vmul.f32 %v3506, %v3523
        %v3528 = vmul.f32 %v3508, %v3524
        %v3529 = vpack.c.bf16 %v3525, %v3525
        %v3530 = vpack.c.bf16 %v3526, %v3526
        %v3531 = vpack.c.bf16 %v3527, %v3527
        %v3532 = vpack.c.bf16 %v3528, %v3528
        %v3533 = vpack.c.bf16 %v2777, %v2777
        %v3534 = vpack.c.bf16 %v2801, %v2801
        %v3535 = vpack.c.bf16 %v2784, %v2784
        %v3536 = vpack.c.bf16 %v2802, %v2802
        %v3537 = vpack.c.bf16 %v2793, %v2793
        %v3538 = vpack.c.bf16 %v2803, %v2803
        %v3539 = vpack.c.bf16 %v2800, %v2800
        %v3540 = vpack.c.bf16 %v2804, %v2804
        %3541 = vxpose.xlu0.c.b16.start [1/8] %v3533, 128
        %3542 = vxpose.xlu0.c.b16.cont [2/8] 0, 128
        %3543 = vxpose.xlu0.c.b16.cont [3/8] 0, 128
        %3544 = vxpose.xlu0.c.b16.cont [4/8] 0, 128
        %3545 = vxpose.xlu0.c.b16.cont [5/8] 0, 128
        %3546 = vxpose.xlu0.c.b16.cont [6/8] 0, 128
        %3547 = vxpose.xlu0.c.b16.cont [7/8] 0, 128
        %3548 = vxpose.xlu0.c.b16.end [8/8] 0, 128
        %v3549 = vpop.trf.xlu0
        %v3550 = vpop.trf.xlu0
        %v3551 = vpop.trf.xlu0
        %v3552 = vpop.trf.xlu0
        %v3553 = vpop.trf.xlu0
        %v3554 = vpop.trf.xlu0
        %v3555 = vpop.trf.xlu0
        %v3556 = vpop.trf.xlu0
        %3557 = vxpose.xlu0.c.b16.start [1/8] %v3534, 128
        %3558 = vxpose.xlu0.c.b16.cont [2/8] 0, 128
        %3559 = vxpose.xlu0.c.b16.cont [3/8] 0, 128
        %3560 = vxpose.xlu0.c.b16.cont [4/8] 0, 128
        %3561 = vxpose.xlu0.c.b16.cont [5/8] 0, 128
        %3562 = vxpose.xlu0.c.b16.cont [6/8] 0, 128
        %3563 = vxpose.xlu0.c.b16.cont [7/8] 0, 128
        %3564 = vxpose.xlu0.c.b16.end [8/8] 0, 128
        %v3565 = vpop.trf.xlu0
        %v3566 = vpop.trf.xlu0
        %v3567 = vpop.trf.xlu0
        %v3568 = vpop.trf.xlu0
        %v3569 = vpop.trf.xlu0
        %v3570 = vpop.trf.xlu0
        %v3571 = vpop.trf.xlu0
        %v3572 = vpop.trf.xlu0
        %3573 = vxpose.xlu0.c.b16.start [1/8] %v3535, 128
        %3574 = vxpose.xlu0.c.b16.cont [2/8] 0, 128
        %3575 = vxpose.xlu0.c.b16.cont [3/8] 0, 128
        %3576 = vxpose.xlu0.c.b16.cont [4/8] 0, 128
        %3577 = vxpose.xlu0.c.b16.cont [5/8] 0, 128
        %3578 = vxpose.xlu0.c.b16.cont [6/8] 0, 128
        %3579 = vxpose.xlu0.c.b16.cont [7/8] 0, 128
        %3580 = vxpose.xlu0.c.b16.end [8/8] 0, 128
        %v3581 = vpop.trf.xlu0
        %v3582 = vpop.trf.xlu0
        %v3583 = vpop.trf.xlu0
        %v3584 = vpop.trf.xlu0
        %v3585 = vpop.trf.xlu0
        %v3586 = vpop.trf.xlu0
        %v3587 = vpop.trf.xlu0
        %v3588 = vpop.trf.xlu0
        %3589 = vxpose.xlu0.c.b16.start [1/8] %v3536, 128
        %3590 = vxpose.xlu0.c.b16.cont [2/8] 0, 128
        %3591 = vxpose.xlu0.c.b16.cont [3/8] 0, 128
        %3592 = vxpose.xlu0.c.b16.cont [4/8] 0, 128
        %3593 = vxpose.xlu0.c.b16.cont [5/8] 0, 128
        %3594 = vxpose.xlu0.c.b16.cont [6/8] 0, 128
        %3595 = vxpose.xlu0.c.b16.cont [7/8] 0, 128
        %3596 = vxpose.xlu0.c.b16.end [8/8] 0, 128
        %v3597 = vpop.trf.xlu0
        %v3598 = vpop.trf.xlu0
        %v3599 = vpop.trf.xlu0
        %v3600 = vpop.trf.xlu0
        %v3601 = vpop.trf.xlu0
        %v3602 = vpop.trf.xlu0
        %v3603 = vpop.trf.xlu0
        %v3604 = vpop.trf.xlu0
        %3605 = vxpose.xlu0.c.b16.start [1/8] %v3537, 128
        %3606 = vxpose.xlu0.c.b16.cont [2/8] 0, 128
        %3607 = vxpose.xlu0.c.b16.cont [3/8] 0, 128
        %3608 = vxpose.xlu0.c.b16.cont [4/8] 0, 128
        %3609 = vxpose.xlu0.c.b16.cont [5/8] 0, 128
        %3610 = vxpose.xlu0.c.b16.cont [6/8] 0, 128
        %3611 = vxpose.xlu0.c.b16.cont [7/8] 0, 128
        %3612 = vxpose.xlu0.c.b16.end [8/8] 0, 128
        %v3613 = vpop.trf.xlu0
        %v3614 = vpop.trf.xlu0
        %v3615 = vpop.trf.xlu0
        %v3616 = vpop.trf.xlu0
        %v3617 = vpop.trf.xlu0
        %v3618 = vpop.trf.xlu0
        %v3619 = vpop.trf.xlu0
        %v3620 = vpop.trf.xlu0
        %3621 = vxpose.xlu0.c.b16.start [1/8] %v3538, 128
        %3622 = vxpose.xlu0.c.b16.cont [2/8] 0, 128
        %3623 = vxpose.xlu0.c.b16.cont [3/8] 0, 128
        %3624 = vxpose.xlu0.c.b16.cont [4/8] 0, 128
        %3625 = vxpose.xlu0.c.b16.cont [5/8] 0, 128
        %3626 = vxpose.xlu0.c.b16.cont [6/8] 0, 128
        %3627 = vxpose.xlu0.c.b16.cont [7/8] 0, 128
        %3628 = vxpose.xlu0.c.b16.end [8/8] 0, 128
        %v3629 = vpop.trf.xlu0
        %v3630 = vpop.trf.xlu0
        %v3631 = vpop.trf.xlu0
        %v3632 = vpop.trf.xlu0
        %v3633 = vpop.trf.xlu0
        %v3634 = vpop.trf.xlu0
        %v3635 = vpop.trf.xlu0
        %v3636 = vpop.trf.xlu0
        %3637 = vxpose.xlu0.c.b16.start [1/8] %v3539, 128
        %3638 = vxpose.xlu0.c.b16.cont [2/8] 0, 128
        %3639 = vxpose.xlu0.c.b16.cont [3/8] 0, 128
        %3640 = vxpose.xlu0.c.b16.cont [4/8] 0, 128
        %3641 = vxpose.xlu0.c.b16.cont [5/8] 0, 128
        %3642 = vxpose.xlu0.c.b16.cont [6/8] 0, 128
        %3643 = vxpose.xlu0.c.b16.cont [7/8] 0, 128
        %3644 = vxpose.xlu0.c.b16.end [8/8] 0, 128
        %v3645 = vpop.trf.xlu0
        %v3646 = vpop.trf.xlu0
        %v3647 = vpop.trf.xlu0
        %v3648 = vpop.trf.xlu0
        %v3649 = vpop.trf.xlu0
        %v3650 = vpop.trf.xlu0
        %v3651 = vpop.trf.xlu0
        %v3652 = vpop.trf.xlu0
        %3653 = vxpose.xlu0.c.b16.start [1/8] %v3540, 128
        %3654 = vxpose.xlu0.c.b16.cont [2/8] 0, 128
        %3655 = vxpose.xlu0.c.b16.cont [3/8] 0, 128
        %3656 = vxpose.xlu0.c.b16.cont [4/8] 0, 128
        %3657 = vxpose.xlu0.c.b16.cont [5/8] 0, 128
        %3658 = vxpose.xlu0.c.b16.cont [6/8] 0, 128
        %3659 = vxpose.xlu0.c.b16.cont [7/8] 0, 128
        %3660 = vxpose.xlu0.c.b16.end [8/8] 0, 128
        %v3661 = vpop.trf.xlu0
        %v3662 = vpop.trf.xlu0
        %v3663 = vpop.trf.xlu0
        %v3664 = vpop.trf.xlu0
        %v3665 = vpop.trf.xlu0
        %v3666 = vpop.trf.xlu0
        %v3667 = vpop.trf.xlu0
        %v3668 = vpop.trf.xlu0
        %v3669 = vcombine.low %v3549, %v3613
        %v3671 = vunpack.c.l.s4 1983009808
        %v3672 = vunpack.c.0.s8 %v3671
        %v3673 = vlaneseq
        %v3674 = vshrl.u32 %v3673, 7
        %v3675 = vsub.s32 %v3672, %v3674
        %v3676 = vrot.slane %v3669, %v3675
        %v3677 = vcombine.low %v3581, %v3645
        %v3679 = vunpack.c.l.s4 1983009808
        %v3680 = vunpack.c.0.s8 %v3679
        %v3681 = vlaneseq
        %v3682 = vshrl.u32 %v3681, 7
        %v3683 = vsub.s32 %v3680, %v3682
        %v3684 = vrot.slane %v3677, %v3683
        %v3685 = vcombine.low %v3676, %v3684
        %v3686 = vcombine.high %v3676, %v3684
        %v3688 = vunpack.c.l.s4 1934713408
        %v3689 = vunpack.c.0.s8 %v3688
        %v3690 = vlaneseq
        %v3691 = vshrl.u32 %v3690, 7
        %v3692 = vsub.s32 %v3689, %v3691
        %v3693 = vrot.slane %v3685, %v3692
        %v3695 = vunpack.c.l.s4 1934713408
        %v3696 = vunpack.c.0.s8 %v3695
        %v3697 = vlaneseq
        %v3698 = vshrl.u32 %v3697, 7
        %v3699 = vsub.s32 %v3696, %v3698
        %v3700 = vrot.slane %v3686, %v3699
        %v3701 = vcombine.high %v3693, 0
        %v3702 = vcombine.high %v3700, 0
        %v3703 = vcombine.low %v3565, %v3629
        %v3705 = vunpack.c.l.s4 1983009808
        %v3706 = vunpack.c.0.s8 %v3705
        %v3707 = vlaneseq
        %v3708 = vshrl.u32 %v3707, 7
        %v3709 = vsub.s32 %v3706, %v3708
        %v3710 = vrot.slane %v3703, %v3709
        %v3711 = vcombine.low %v3597, %v3661
        %v3713 = vunpack.c.l.s4 1983009808
        %v3714 = vunpack.c.0.s8 %v3713
        %v3715 = vlaneseq
        %v3716 = vshrl.u32 %v3715, 7
        %v3717 = vsub.s32 %v3714, %v3716
        %v3718 = vrot.slane %v3711, %v3717
        %v3719 = vcombine.low %v3710, %v3718
        %v3720 = vcombine.high %v3710, %v3718
        %v3722 = vunpack.c.l.s4 1934713408
        %v3723 = vunpack.c.0.s8 %v3722
        %v3724 = vlaneseq
        %v3725 = vshrl.u32 %v3724, 7
        %v3726 = vsub.s32 %v3723, %v3725
        %v3727 = vrot.slane %v3719, %v3726
        %v3729 = vunpack.c.l.s4 1934713408
        %v3730 = vunpack.c.0.s8 %v3729
        %v3731 = vlaneseq
        %v3732 = vshrl.u32 %v3731, 7
        %v3733 = vsub.s32 %v3730, %v3732
        %v3734 = vrot.slane %v3720, %v3733
        %v3735 = vcombine.high %v3727, 0
        %v3736 = vcombine.high %v3734, 0
        %v3739 = vpack.i.b16 %v3727, %v3693
        %v3741 = vshrl.u32 %v3693, 16
        %v3742 = vshrl.u32 %v3727, 16
        %v3743 = vpack.i.b16 %v3742, %v3741
        %v3747 = vpack.i.b16 %v3735, %v3701
        %v3749 = vshrl.u32 %v3701, 16
        %v3750 = vshrl.u32 %v3735, 16
        %v3751 = vpack.i.b16 %v3750, %v3749
        %v3755 = vpack.i.b16 %v3734, %v3700
        %v3757 = vshrl.u32 %v3700, 16
        %v3758 = vshrl.u32 %v3734, 16
        %v3759 = vpack.i.b16 %v3758, %v3757
        %v3763 = vpack.i.b16 %v3736, %v3702
        %v3765 = vshrl.u32 %v3702, 16
        %v3766 = vshrl.u32 %v3736, 16
        %v3767 = vpack.i.b16 %v3766, %v3765
        %3769 = vxpose.xlu0.c.b16.start [1/8] %v3739, 128
        %3770 = vxpose.xlu0.c.b16.cont [2/8] 0, 128
        %3771 = vxpose.xlu0.c.b16.cont [3/8] 0, 128
        %3772 = vxpose.xlu0.c.b16.cont [4/8] 0, 128
        %3773 = vxpose.xlu0.c.b16.cont [5/8] 0, 128
        %3774 = vxpose.xlu0.c.b16.cont [6/8] 0, 128
        %3775 = vxpose.xlu0.c.b16.cont [7/8] 0, 128
        %3776 = vxpose.xlu0.c.b16.end [8/8] 0, 128
        %v3777 = vpop.trf.xlu0
        %v3778 = vpop.trf.xlu0
        %v3779 = vpop.trf.xlu0
        %v3780 = vpop.trf.xlu0
        %v3781 = vpop.trf.xlu0
        %v3782 = vpop.trf.xlu0
        %v3783 = vpop.trf.xlu0
        %v3784 = vpop.trf.xlu0
        %3785 = vxpose.xlu0.c.b16.start [1/8] %v3743, 128
        %3786 = vxpose.xlu0.c.b16.cont [2/8] 0, 128
        %3787 = vxpose.xlu0.c.b16.cont [3/8] 0, 128
        %3788 = vxpose.xlu0.c.b16.cont [4/8] 0, 128
        %3789 = vxpose.xlu0.c.b16.cont [5/8] 0, 128
        %3790 = vxpose.xlu0.c.b16.cont [6/8] 0, 128
        %3791 = vxpose.xlu0.c.b16.cont [7/8] 0, 128
        %3792 = vxpose.xlu0.c.b16.end [8/8] 0, 128
        %v3793 = vpop.trf.xlu0
        %v3794 = vpop.trf.xlu0
        %v3795 = vpop.trf.xlu0
        %v3796 = vpop.trf.xlu0
        %v3797 = vpop.trf.xlu0
        %v3798 = vpop.trf.xlu0
        %v3799 = vpop.trf.xlu0
        %v3800 = vpop.trf.xlu0
        %3801 = vxpose.xlu0.c.b16.start [1/8] %v3747, 128
        %3802 = vxpose.xlu0.c.b16.cont [2/8] 0, 128
        %3803 = vxpose.xlu0.c.b16.cont [3/8] 0, 128
        %3804 = vxpose.xlu0.c.b16.cont [4/8] 0, 128
        %3805 = vxpose.xlu0.c.b16.cont [5/8] 0, 128
        %3806 = vxpose.xlu0.c.b16.cont [6/8] 0, 128
        %3807 = vxpose.xlu0.c.b16.cont [7/8] 0, 128
        %3808 = vxpose.xlu0.c.b16.end [8/8] 0, 128
        %v3809 = vpop.trf.xlu0
        %v3810 = vpop.trf.xlu0
        %v3811 = vpop.trf.xlu0
        %v3812 = vpop.trf.xlu0
        %v3813 = vpop.trf.xlu0
        %v3814 = vpop.trf.xlu0
        %v3815 = vpop.trf.xlu0
        %v3816 = vpop.trf.xlu0
        %3817 = vxpose.xlu0.c.b16.start [1/8] %v3751, 128
        %3818 = vxpose.xlu0.c.b16.cont [2/8] 0, 128
        %3819 = vxpose.xlu0.c.b16.cont [3/8] 0, 128
        %3820 = vxpose.xlu0.c.b16.cont [4/8] 0, 128
        %3821 = vxpose.xlu0.c.b16.cont [5/8] 0, 128
        %3822 = vxpose.xlu0.c.b16.cont [6/8] 0, 128
        %3823 = vxpose.xlu0.c.b16.cont [7/8] 0, 128
        %3824 = vxpose.xlu0.c.b16.end [8/8] 0, 128
        %v3825 = vpop.trf.xlu0
        %v3826 = vpop.trf.xlu0
        %v3827 = vpop.trf.xlu0
        %v3828 = vpop.trf.xlu0
        %v3829 = vpop.trf.xlu0
        %v3830 = vpop.trf.xlu0
        %v3831 = vpop.trf.xlu0
        %v3832 = vpop.trf.xlu0
        %3833 = vxpose.xlu0.c.b16.start [1/8] %v3755, 128
        %3834 = vxpose.xlu0.c.b16.cont [2/8] 0, 128
        %3835 = vxpose.xlu0.c.b16.cont [3/8] 0, 128
        %3836 = vxpose.xlu0.c.b16.cont [4/8] 0, 128
        %3837 = vxpose.xlu0.c.b16.cont [5/8] 0, 128
        %3838 = vxpose.xlu0.c.b16.cont [6/8] 0, 128
        %3839 = vxpose.xlu0.c.b16.cont [7/8] 0, 128
        %3840 = vxpose.xlu0.c.b16.end [8/8] 0, 128
        %v3841 = vpop.trf.xlu0
        %v3842 = vpop.trf.xlu0
        %v3843 = vpop.trf.xlu0
        %v3844 = vpop.trf.xlu0
        %v3845 = vpop.trf.xlu0
        %v3846 = vpop.trf.xlu0
        %v3847 = vpop.trf.xlu0
        %v3848 = vpop.trf.xlu0
        %3849 = vxpose.xlu0.c.b16.start [1/8] %v3759, 128
        %3850 = vxpose.xlu0.c.b16.cont [2/8] 0, 128
        %3851 = vxpose.xlu0.c.b16.cont [3/8] 0, 128
        %3852 = vxpose.xlu0.c.b16.cont [4/8] 0, 128
        %3853 = vxpose.xlu0.c.b16.cont [5/8] 0, 128
        %3854 = vxpose.xlu0.c.b16.cont [6/8] 0, 128
        %3855 = vxpose.xlu0.c.b16.cont [7/8] 0, 128
        %3856 = vxpose.xlu0.c.b16.end [8/8] 0, 128
        %v3857 = vpop.trf.xlu0
        %v3858 = vpop.trf.xlu0
        %v3859 = vpop.trf.xlu0
        %v3860 = vpop.trf.xlu0
        %v3861 = vpop.trf.xlu0
        %v3862 = vpop.trf.xlu0
        %v3863 = vpop.trf.xlu0
        %v3864 = vpop.trf.xlu0
        %3865 = vxpose.xlu0.c.b16.start [1/8] %v3763, 128
        %3866 = vxpose.xlu0.c.b16.cont [2/8] 0, 128
        %3867 = vxpose.xlu0.c.b16.cont [3/8] 0, 128
        %3868 = vxpose.xlu0.c.b16.cont [4/8] 0, 128
        %3869 = vxpose.xlu0.c.b16.cont [5/8] 0, 128
        %3870 = vxpose.xlu0.c.b16.cont [6/8] 0, 128
        %3871 = vxpose.xlu0.c.b16.cont [7/8] 0, 128
        %3872 = vxpose.xlu0.c.b16.end [8/8] 0, 128
        %v3873 = vpop.trf.xlu0
        %v3874 = vpop.trf.xlu0
        %v3875 = vpop.trf.xlu0
        %v3876 = vpop.trf.xlu0
        %v3877 = vpop.trf.xlu0
        %v3878 = vpop.trf.xlu0
        %v3879 = vpop.trf.xlu0
        %v3880 = vpop.trf.xlu0
        %3881 = vxpose.xlu0.c.b16.start [1/8] %v3767, 128
        %3882 = vxpose.xlu0.c.b16.cont [2/8] 0, 128
        %3883 = vxpose.xlu0.c.b16.cont [3/8] 0, 128
        %3884 = vxpose.xlu0.c.b16.cont [4/8] 0, 128
        %3885 = vxpose.xlu0.c.b16.cont [5/8] 0, 128
        %3886 = vxpose.xlu0.c.b16.cont [6/8] 0, 128
        %3887 = vxpose.xlu0.c.b16.cont [7/8] 0, 128
        %3888 = vxpose.xlu0.c.b16.end [8/8] 0, 128
        %v3889 = vpop.trf.xlu0
        %v3890 = vpop.trf.xlu0
        %v3891 = vpop.trf.xlu0
        %v3892 = vpop.trf.xlu0
        %v3893 = vpop.trf.xlu0
        %v3894 = vpop.trf.xlu0
        %v3895 = vpop.trf.xlu0
        %v3896 = vpop.trf.xlu0
        %v3897 = vcombine.low %v3777, %v3841
        %v3899 = vunpack.c.l.s4 1983009808
        %v3900 = vunpack.c.0.s8 %v3899
        %v3901 = vlaneseq
        %v3902 = vshrl.u32 %v3901, 7
        %v3903 = vsub.s32 %v3900, %v3902
        %v3904 = vrot.slane %v3897, %v3903
        %v3905 = vcombine.low %v3809, %v3873
        %v3907 = vunpack.c.l.s4 1983009808
        %v3908 = vunpack.c.0.s8 %v3907
        %v3909 = vlaneseq
        %v3910 = vshrl.u32 %v3909, 7
        %v3911 = vsub.s32 %v3908, %v3910
        %v3912 = vrot.slane %v3905, %v3911
        %v3913 = vcombine.low %v3904, %v3912
        %v3915 = vunpack.c.l.s4 1934713408
        %v3916 = vunpack.c.0.s8 %v3915
        %v3917 = vlaneseq
        %v3918 = vshrl.u32 %v3917, 7
        %v3919 = vsub.s32 %v3916, %v3918
        %v3920 = vrot.slane %v3913, %v3919
        %v3921 = vcombine.high %v3920, 0
        %v3922 = vcombine.low %v3793, %v3857
        %v3924 = vunpack.c.l.s4 1983009808
        %v3925 = vunpack.c.0.s8 %v3924
        %v3926 = vlaneseq
        %v3927 = vshrl.u32 %v3926, 7
        %v3928 = vsub.s32 %v3925, %v3927
        %v3929 = vrot.slane %v3922, %v3928
        %v3930 = vcombine.low %v3825, %v3889
        %v3932 = vunpack.c.l.s4 1983009808
        %v3933 = vunpack.c.0.s8 %v3932
        %v3934 = vlaneseq
        %v3935 = vshrl.u32 %v3934, 7
        %v3936 = vsub.s32 %v3933, %v3935
        %v3937 = vrot.slane %v3930, %v3936
        %v3938 = vcombine.low %v3929, %v3937
        %v3940 = vunpack.c.l.s4 1934713408
        %v3941 = vunpack.c.0.s8 %v3940
        %v3942 = vlaneseq
        %v3943 = vshrl.u32 %v3942, 7
        %v3944 = vsub.s32 %v3941, %v3943
        %v3945 = vrot.slane %v3938, %v3944
        %v3946 = vcombine.high %v3945, 0
        %v3949 = vpack.i.b16 %v3945, %v3920
        %v3950 = vshrl.u32 %v3920, 16
        %v3951 = vshrl.u32 %v3945, 16
        %v3952 = vpack.i.b16 %v3951, %v3950
        %v3955 = vpack.i.b16 %v3946, %v3921
        %v3956 = vshrl.u32 %v3921, 16
        %v3957 = vshrl.u32 %v3946, 16
        %v3958 = vpack.i.b16 %v3957, %v3956
        %v3960 = vsel %vm1092, %v3949, 0
        %v3963 = vsel %vm1092, %v3529, 0
        %3965 = vmatprep.subr.bf16.mxu0 0
        %3966 = vmatpush1.bf16.xpose.msra.mxu0 %v3963
        %3967 = vmatprep.subr.bf16.mxu0 0
        %3968 = vmatpush1.bf16.xpose.msra.mxu0 0
        %3969 = vmatprep.subr.bf16.mxu0 0
        %3970 = vmatpush1.bf16.xpose.msra.mxu0 0
        %3971 = vmatprep.subr.bf16.mxu0 0
        %3972 = vmatpush1.bf16.xpose.msra.mxu0 0
        %3973 = vmatprep.subr.bf16.mxu0 0
        %3974 = vmatpush1.bf16.xpose.msra.mxu0 0
        %3975 = vmatprep.subr.bf16.mxu0 0
        %3976 = vmatpush1.bf16.xpose.msra.mxu0 0
        %3977 = vmatprep.subr.bf16.mxu0 0
        %3978 = vmatpush1.bf16.xpose.msra.mxu0 0
        %3979 = vmatprep.subr.bf16.mxu0 0
        %3980 = vmatpush1.bf16.xpose.msra.mxu0 0
        %3981 = vmatprep.subr.bf16.mxu0 0
        %3982 = vmatpush1.bf16.xpose.msra.mxu0 0
        %3983 = vmatprep.subr.bf16.mxu0 0
        %3984 = vmatpush1.bf16.xpose.msra.mxu0 0
        %3985 = vmatprep.subr.bf16.mxu0 0
        %3986 = vmatpush1.bf16.xpose.msra.mxu0 0
        %3987 = vmatprep.subr.bf16.mxu0 0
        %3988 = vmatpush1.bf16.xpose.msra.mxu0 0
        %3989 = vmatprep.subr.bf16.mxu0 0
        %3990 = vmatpush1.bf16.xpose.msra.mxu0 0
        %3991 = vmatprep.subr.bf16.mxu0 0
        %3992 = vmatpush1.bf16.xpose.msra.mxu0 0
        %3993 = vmatprep.subr.bf16.mxu0 0
        %3994 = vmatpush1.bf16.xpose.msra.mxu0 0
        %3995 = vmatprep.subr.bf16.mxu0 0
        %3996 = vmatpush1.bf16.xpose.msra.mxu0 0
        %3997 = vmatprep.mubr.bf16.mxu0 0
        %3998 = vmatmul.mubr.bf16.gmra.mrb[0].mxu0 %v3960
        %v3999 = vpop.f32.mrb[0].mxu0
        %v4000 = vadd.f32 0.0, %v3999
        %v4001 = vpop.f32.mrb[0].mxu0
        %v4002 = vpop.f32.mrb[0].mxu0
        %v4003 = vpop.f32.mrb[0].mxu0
        %4004 = vdwg.mxu0
        %v4006 = vsel %vm1092, %v3952, 0
        %v4009 = vsel %vm1092, %v3530, 0
        %4011 = vmatprep.subr.bf16.mxu0 0
        %4012 = vmatpush1.bf16.xpose.msra.mxu0 %v4009
        %4013 = vmatprep.subr.bf16.mxu0 0
        %4014 = vmatpush1.bf16.xpose.msra.mxu0 0
        %4015 = vmatprep.subr.bf16.mxu0 0
        %4016 = vmatpush1.bf16.xpose.msra.mxu0 0
        %4017 = vmatprep.subr.bf16.mxu0 0
        %4018 = vmatpush1.bf16.xpose.msra.mxu0 0
        %4019 = vmatprep.subr.bf16.mxu0 0
        %4020 = vmatpush1.bf16.xpose.msra.mxu0 0
        %4021 = vmatprep.subr.bf16.mxu0 0
        %4022 = vmatpush1.bf16.xpose.msra.mxu0 0
        %4023 = vmatprep.subr.bf16.mxu0 0
        %4024 = vmatpush1.bf16.xpose.msra.mxu0 0
        %4025 = vmatprep.subr.bf16.mxu0 0
        %4026 = vmatpush1.bf16.xpose.msra.mxu0 0
        %4027 = vmatprep.subr.bf16.mxu0 0
        %4028 = vmatpush1.bf16.xpose.msra.mxu0 0
        %4029 = vmatprep.subr.bf16.mxu0 0
        %4030 = vmatpush1.bf16.xpose.msra.mxu0 0
        %4031 = vmatprep.subr.bf16.mxu0 0
        %4032 = vmatpush1.bf16.xpose.msra.mxu0 0
        %4033 = vmatprep.subr.bf16.mxu0 0
        %4034 = vmatpush1.bf16.xpose.msra.mxu0 0
        %4035 = vmatprep.subr.bf16.mxu0 0
        %4036 = vmatpush1.bf16.xpose.msra.mxu0 0
        %4037 = vmatprep.subr.bf16.mxu0 0
        %4038 = vmatpush1.bf16.xpose.msra.mxu0 0
        %4039 = vmatprep.subr.bf16.mxu0 0
        %4040 = vmatpush1.bf16.xpose.msra.mxu0 0
        %4041 = vmatprep.subr.bf16.mxu0 0
        %4042 = vmatpush1.bf16.xpose.msra.mxu0 0
        %4043 = vmatprep.mubr.bf16.mxu0 0
        %4044 = vmatmul.mubr.bf16.gmra.mrb[0].mxu0 %v4006
        %v4045 = vpop.f32.mrb[0].mxu0
        %v4046 = vadd.f32 0.0, %v4045
        %v4047 = vpop.f32.mrb[0].mxu0
        %v4048 = vpop.f32.mrb[0].mxu0
        %v4049 = vpop.f32.mrb[0].mxu0
        %4050 = vdwg.mxu0
        %v4052 = vsel %vm1092, %v3955, 0
        %v4055 = vsel %vm1092, %v3531, 0
        %4057 = vmatprep.subr.bf16.mxu0 0
        %4058 = vmatpush1.bf16.xpose.msra.mxu0 %v4055
        %4059 = vmatprep.subr.bf16.mxu0 0
        %4060 = vmatpush1.bf16.xpose.msra.mxu0 0
        %4061 = vmatprep.subr.bf16.mxu0 0
        %4062 = vmatpush1.bf16.xpose.msra.mxu0 0
        %4063 = vmatprep.subr.bf16.mxu0 0
        %4064 = vmatpush1.bf16.xpose.msra.mxu0 0
        %4065 = vmatprep.subr.bf16.mxu0 0
        %4066 = vmatpush1.bf16.xpose.msra.mxu0 0
        %4067 = vmatprep.subr.bf16.mxu0 0
        %4068 = vmatpush1.bf16.xpose.msra.mxu0 0
        %4069 = vmatprep.subr.bf16.mxu0 0
        %4070 = vmatpush1.bf16.xpose.msra.mxu0 0
        %4071 = vmatprep.subr.bf16.mxu0 0
        %4072 = vmatpush1.bf16.xpose.msra.mxu0 0
        %4073 = vmatprep.subr.bf16.mxu0 0
        %4074 = vmatpush1.bf16.xpose.msra.mxu0 0
        %4075 = vmatprep.subr.bf16.mxu0 0
        %4076 = vmatpush1.bf16.xpose.msra.mxu0 0
        %4077 = vmatprep.subr.bf16.mxu0 0
        %4078 = vmatpush1.bf16.xpose.msra.mxu0 0
        %4079 = vmatprep.subr.bf16.mxu0 0
        %4080 = vmatpush1.bf16.xpose.msra.mxu0 0
        %4081 = vmatprep.subr.bf16.mxu0 0
        %4082 = vmatpush1.bf16.xpose.msra.mxu0 0
        %4083 = vmatprep.subr.bf16.mxu0 0
        %4084 = vmatpush1.bf16.xpose.msra.mxu0 0
        %4085 = vmatprep.subr.bf16.mxu0 0
        %4086 = vmatpush1.bf16.xpose.msra.mxu0 0
        %4087 = vmatprep.subr.bf16.mxu0 0
        %4088 = vmatpush1.bf16.xpose.msra.mxu0 0
        %4089 = vmatprep.mubr.bf16.mxu0 0
        %4090 = vmatmul.mubr.bf16.gmra.mrb[0].mxu0 %v4052
        %v4091 = vpop.f32.mrb[0].mxu0
        %v4092 = vadd.f32 0.0, %v4091
        %v4093 = vpop.f32.mrb[0].mxu0
        %v4094 = vpop.f32.mrb[0].mxu0
        %v4095 = vpop.f32.mrb[0].mxu0
        %4096 = vdwg.mxu0
        %v4098 = vsel %vm1092, %v3958, 0
        %v4101 = vsel %vm1092, %v3532, 0
        %4103 = vmatprep.subr.bf16.mxu0 0
        %4104 = vmatpush1.bf16.xpose.msra.mxu0 %v4101
        %4105 = vmatprep.subr.bf16.mxu0 0
        %4106 = vmatpush1.bf16.xpose.msra.mxu0 0
        %4107 = vmatprep.subr.bf16.mxu0 0
        %4108 = vmatpush1.bf16.xpose.msra.mxu0 0
        %4109 = vmatprep.subr.bf16.mxu0 0
        %4110 = vmatpush1.bf16.xpose.msra.mxu0 0
        %4111 = vmatprep.subr.bf16.mxu0 0
        %4112 = vmatpush1.bf16.xpose.msra.mxu0 0
        %4113 = vmatprep.subr.bf16.mxu0 0
        %4114 = vmatpush1.bf16.xpose.msra.mxu0 0
        %4115 = vmatprep.subr.bf16.mxu0 0
        %4116 = vmatpush1.bf16.xpose.msra.mxu0 0
        %4117 = vmatprep.subr.bf16.mxu0 0
        %4118 = vmatpush1.bf16.xpose.msra.mxu0 0
        %4119 = vmatprep.subr.bf16.mxu0 0
        %4120 = vmatpush1.bf16.xpose.msra.mxu0 0
        %4121 = vmatprep.subr.bf16.mxu0 0
        %4122 = vmatpush1.bf16.xpose.msra.mxu0 0
        %4123 = vmatprep.subr.bf16.mxu0 0
        %4124 = vmatpush1.bf16.xpose.msra.mxu0 0
        %4125 = vmatprep.subr.bf16.mxu0 0
        %4126 = vmatpush1.bf16.xpose.msra.mxu0 0
        %4127 = vmatprep.subr.bf16.mxu0 0
        %4128 = vmatpush1.bf16.xpose.msra.mxu0 0
        %4129 = vmatprep.subr.bf16.mxu0 0
        %4130 = vmatpush1.bf16.xpose.msra.mxu0 0
        %4131 = vmatprep.subr.bf16.mxu0 0
        %4132 = vmatpush1.bf16.xpose.msra.mxu0 0
        %4133 = vmatprep.subr.bf16.mxu0 0
        %4134 = vmatpush1.bf16.xpose.msra.mxu0 0
        %4135 = vmatprep.mubr.bf16.mxu0 0
        %4136 = vmatmul.mubr.bf16.gmra.mrb[0].mxu0 %v4098
        %v4137 = vpop.f32.mrb[0].mxu0
        %v4138 = vadd.f32 0.0, %v4137
        %v4139 = vpop.f32.mrb[0].mxu0
        %v4140 = vpop.f32.mrb[0].mxu0
        %v4141 = vpop.f32.mrb[0].mxu0
        %4142 = vdwg.mxu0
        %4143 = vxpose.xlu0.b32.start [1/16] %v4000, 128
        %4144 = vxpose.xlu0.b32.cont [2/16] 0.0, 128
        %4145 = vxpose.xlu0.b32.cont [3/16] 0.0, 128
        %4146 = vxpose.xlu0.b32.cont [4/16] 0.0, 128
        %4147 = vxpose.xlu0.b32.cont [5/16] 0.0, 128
        %4148 = vxpose.xlu0.b32.cont [6/16] 0.0, 128
        %4149 = vxpose.xlu0.b32.cont [7/16] 0.0, 128
        %4150 = vxpose.xlu0.b32.cont [8/16] 0.0, 128
        %4151 = vxpose.xlu0.b32.cont [9/16] 0.0, 128
        %4152 = vxpose.xlu0.b32.cont [10/16] 0.0, 128
        %4153 = vxpose.xlu0.b32.cont [11/16] 0.0, 128
        %4154 = vxpose.xlu0.b32.cont [12/16] 0.0, 128
        %4155 = vxpose.xlu0.b32.cont [13/16] 0.0, 128
        %4156 = vxpose.xlu0.b32.cont [14/16] 0.0, 128
        %4157 = vxpose.xlu0.b32.cont [15/16] 0.0, 128
        %4158 = vxpose.xlu0.b32.end [16/16] 0.0, 128
        %v4159 = vpop.trf.xlu0
        %v4160 = vpop.trf.xlu0
        %v4161 = vpop.trf.xlu0
        %v4162 = vpop.trf.xlu0
        %v4163 = vpop.trf.xlu0
        %v4164 = vpop.trf.xlu0
        %v4165 = vpop.trf.xlu0
        %v4166 = vpop.trf.xlu0
        %v4167 = vpop.trf.xlu0
        %v4168 = vpop.trf.xlu0
        %v4169 = vpop.trf.xlu0
        %v4170 = vpop.trf.xlu0
        %v4171 = vpop.trf.xlu0
        %v4172 = vpop.trf.xlu0
        %v4173 = vpop.trf.xlu0
        %v4174 = vpop.trf.xlu0
        %4175 = vxpose.xlu0.b32.start [1/16] %v4046, 128
        %4176 = vxpose.xlu0.b32.cont [2/16] 0.0, 128
        %4177 = vxpose.xlu0.b32.cont [3/16] 0.0, 128
        %4178 = vxpose.xlu0.b32.cont [4/16] 0.0, 128
        %4179 = vxpose.xlu0.b32.cont [5/16] 0.0, 128
        %4180 = vxpose.xlu0.b32.cont [6/16] 0.0, 128
        %4181 = vxpose.xlu0.b32.cont [7/16] 0.0, 128
        %4182 = vxpose.xlu0.b32.cont [8/16] 0.0, 128
        %4183 = vxpose.xlu0.b32.cont [9/16] 0.0, 128
        %4184 = vxpose.xlu0.b32.cont [10/16] 0.0, 128
        %4185 = vxpose.xlu0.b32.cont [11/16] 0.0, 128
        %4186 = vxpose.xlu0.b32.cont [12/16] 0.0, 128
        %4187 = vxpose.xlu0.b32.cont [13/16] 0.0, 128
        %4188 = vxpose.xlu0.b32.cont [14/16] 0.0, 128
        %4189 = vxpose.xlu0.b32.cont [15/16] 0.0, 128
        %4190 = vxpose.xlu0.b32.end [16/16] 0.0, 128
        %v4191 = vpop.trf.xlu0
        %v4192 = vpop.trf.xlu0
        %v4193 = vpop.trf.xlu0
        %v4194 = vpop.trf.xlu0
        %v4195 = vpop.trf.xlu0
        %v4196 = vpop.trf.xlu0
        %v4197 = vpop.trf.xlu0
        %v4198 = vpop.trf.xlu0
        %v4199 = vpop.trf.xlu0
        %v4200 = vpop.trf.xlu0
        %v4201 = vpop.trf.xlu0
        %v4202 = vpop.trf.xlu0
        %v4203 = vpop.trf.xlu0
        %v4204 = vpop.trf.xlu0
        %v4205 = vpop.trf.xlu0
        %v4206 = vpop.trf.xlu0
        %4207 = vxpose.xlu0.b32.start [1/16] %v4092, 128
        %4208 = vxpose.xlu0.b32.cont [2/16] 0.0, 128
        %4209 = vxpose.xlu0.b32.cont [3/16] 0.0, 128
        %4210 = vxpose.xlu0.b32.cont [4/16] 0.0, 128
        %4211 = vxpose.xlu0.b32.cont [5/16] 0.0, 128
        %4212 = vxpose.xlu0.b32.cont [6/16] 0.0, 128
        %4213 = vxpose.xlu0.b32.cont [7/16] 0.0, 128
        %4214 = vxpose.xlu0.b32.cont [8/16] 0.0, 128
        %4215 = vxpose.xlu0.b32.cont [9/16] 0.0, 128
        %4216 = vxpose.xlu0.b32.cont [10/16] 0.0, 128
        %4217 = vxpose.xlu0.b32.cont [11/16] 0.0, 128
        %4218 = vxpose.xlu0.b32.cont [12/16] 0.0, 128
        %4219 = vxpose.xlu0.b32.cont [13/16] 0.0, 128
        %4220 = vxpose.xlu0.b32.cont [14/16] 0.0, 128
        %4221 = vxpose.xlu0.b32.cont [15/16] 0.0, 128
        %4222 = vxpose.xlu0.b32.end [16/16] 0.0, 128
        %v4223 = vpop.trf.xlu0
        %v4224 = vpop.trf.xlu0
        %v4225 = vpop.trf.xlu0
        %v4226 = vpop.trf.xlu0
        %v4227 = vpop.trf.xlu0
        %v4228 = vpop.trf.xlu0
        %v4229 = vpop.trf.xlu0
        %v4230 = vpop.trf.xlu0
        %v4231 = vpop.trf.xlu0
        %v4232 = vpop.trf.xlu0
        %v4233 = vpop.trf.xlu0
        %v4234 = vpop.trf.xlu0
        %v4235 = vpop.trf.xlu0
        %v4236 = vpop.trf.xlu0
        %v4237 = vpop.trf.xlu0
        %v4238 = vpop.trf.xlu0
        %4239 = vxpose.xlu0.b32.start [1/16] %v4138, 128
        %4240 = vxpose.xlu0.b32.cont [2/16] 0.0, 128
        %4241 = vxpose.xlu0.b32.cont [3/16] 0.0, 128
        %4242 = vxpose.xlu0.b32.cont [4/16] 0.0, 128
        %4243 = vxpose.xlu0.b32.cont [5/16] 0.0, 128
        %4244 = vxpose.xlu0.b32.cont [6/16] 0.0, 128
        %4245 = vxpose.xlu0.b32.cont [7/16] 0.0, 128
        %4246 = vxpose.xlu0.b32.cont [8/16] 0.0, 128
        %4247 = vxpose.xlu0.b32.cont [9/16] 0.0, 128
        %4248 = vxpose.xlu0.b32.cont [10/16] 0.0, 128
        %4249 = vxpose.xlu0.b32.cont [11/16] 0.0, 128
        %4250 = vxpose.xlu0.b32.cont [12/16] 0.0, 128
        %4251 = vxpose.xlu0.b32.cont [13/16] 0.0, 128
        %4252 = vxpose.xlu0.b32.cont [14/16] 0.0, 128
        %4253 = vxpose.xlu0.b32.cont [15/16] 0.0, 128
        %4254 = vxpose.xlu0.b32.end [16/16] 0.0, 128
        %v4255 = vpop.trf.xlu0
        %v4256 = vpop.trf.xlu0
        %v4257 = vpop.trf.xlu0
        %v4258 = vpop.trf.xlu0
        %v4259 = vpop.trf.xlu0
        %v4260 = vpop.trf.xlu0
        %v4261 = vpop.trf.xlu0
        %v4262 = vpop.trf.xlu0
        %v4263 = vpop.trf.xlu0
        %v4264 = vpop.trf.xlu0
        %v4265 = vpop.trf.xlu0
        %v4266 = vpop.trf.xlu0
        %v4267 = vpop.trf.xlu0
        %v4268 = vpop.trf.xlu0
        %v4269 = vpop.trf.xlu0
        %v4270 = vpop.trf.xlu0
        %v4271 = vcombine.low %v4159, %v4223
        %v4272 = vcombine.high %v4159, %v4223
        %v4274 = vunpack.c.l.s4 1983009808
        %v4275 = vunpack.c.0.s8 %v4274
        %v4276 = vlaneseq
        %v4277 = vshrl.u32 %v4276, 7
        %v4278 = vsub.s32 %v4275, %v4277
        %v4279 = vrot.slane %v4271, %v4278
        %v4281 = vunpack.c.l.s4 1983009808
        %v4282 = vunpack.c.0.s8 %v4281
        %v4283 = vlaneseq
        %v4284 = vshrl.u32 %v4283, 7
        %v4285 = vsub.s32 %v4282, %v4284
        %v4286 = vrot.slane %v4272, %v4285
        %v4287 = vcombine.low %v4191, %v4255
        %v4288 = vcombine.high %v4191, %v4255
        %v4290 = vunpack.c.l.s4 1983009808
        %v4291 = vunpack.c.0.s8 %v4290
        %v4292 = vlaneseq
        %v4293 = vshrl.u32 %v4292, 7
        %v4294 = vsub.s32 %v4291, %v4293
        %v4295 = vrot.slane %v4287, %v4294
        %v4297 = vunpack.c.l.s4 1983009808
        %v4298 = vunpack.c.0.s8 %v4297
        %v4299 = vlaneseq
        %v4300 = vshrl.u32 %v4299, 7
        %v4301 = vsub.s32 %v4298, %v4300
        %v4302 = vrot.slane %v4288, %v4301
        %v4303 = vcombine.low %v4279, %v4295
        %v4304 = vcombine.high %v4279, %v4295
        %v4306 = vunpack.c.l.s4 1934713408
        %v4307 = vunpack.c.0.s8 %v4306
        %v4308 = vlaneseq
        %v4309 = vshrl.u32 %v4308, 7
        %v4310 = vsub.s32 %v4307, %v4309
        %v4311 = vrot.slane %v4303, %v4310
        %v4313 = vunpack.c.l.s4 1934713408
        %v4314 = vunpack.c.0.s8 %v4313
        %v4315 = vlaneseq
        %v4316 = vshrl.u32 %v4315, 7
        %v4317 = vsub.s32 %v4314, %v4316
        %v4318 = vrot.slane %v4304, %v4317
        %v4319 = vcombine.low %v4286, %v4302
        %v4320 = vcombine.high %v4286, %v4302
        %v4322 = vunpack.c.l.s4 1934713408
        %v4323 = vunpack.c.0.s8 %v4322
        %v4324 = vlaneseq
        %v4325 = vshrl.u32 %v4324, 7
        %v4326 = vsub.s32 %v4323, %v4325
        %v4327 = vrot.slane %v4319, %v4326
        %v4329 = vunpack.c.l.s4 1934713408
        %v4330 = vunpack.c.0.s8 %v4329
        %v4331 = vlaneseq
        %v4332 = vshrl.u32 %v4331, 7
        %v4333 = vsub.s32 %v4330, %v4332
        %v4334 = vrot.slane %v4320, %v4333
        %v4335 = vcombine.high %v4311, 0.0
        %v4336 = vcombine.high %v4318, 0.0
        %v4337 = vcombine.high %v4327, 0.0
        %v4338 = vcombine.high %v4334, 0.0
        %v4339 = vcombine.low %v4311, %v4318
        %v4341 = vunpack.c.l.s4 1983009808
        %v4342 = vunpack.c.0.s8 %v4341
        %v4343 = vlaneseq
        %v4344 = vshrl.u32 %v4343, 7
        %v4345 = vsub.s32 %v4342, %v4344
        %v4346 = vrot.slane %v4339, %v4345
        %v4347 = vcombine.low %v4335, %v4336
        %v4349 = vunpack.c.l.s4 1983009808
        %v4350 = vunpack.c.0.s8 %v4349
        %v4351 = vlaneseq
        %v4352 = vshrl.u32 %v4351, 7
        %v4353 = vsub.s32 %v4350, %v4352
        %v4354 = vrot.slane %v4347, %v4353
        %v4355 = vcombine.low %v4327, %v4334
        %v4357 = vunpack.c.l.s4 1983009808
        %v4358 = vunpack.c.0.s8 %v4357
        %v4359 = vlaneseq
        %v4360 = vshrl.u32 %v4359, 7
        %v4361 = vsub.s32 %v4358, %v4360
        %v4362 = vrot.slane %v4355, %v4361
        %v4363 = vcombine.low %v4337, %v4338
        %v4365 = vunpack.c.l.s4 1983009808
        %v4366 = vunpack.c.0.s8 %v4365
        %v4367 = vlaneseq
        %v4368 = vshrl.u32 %v4367, 7
        %v4369 = vsub.s32 %v4366, %v4368
        %v4370 = vrot.slane %v4363, %v4369
        %v4371 = vcombine.low %v4346, %v4354
        %v4372 = vcombine.high %v4346, %v4354
        %v4374 = vunpack.c.l.s4 1934713408
        %v4375 = vunpack.c.0.s8 %v4374
        %v4376 = vlaneseq
        %v4377 = vshrl.u32 %v4376, 7
        %v4378 = vsub.s32 %v4375, %v4377
        %v4379 = vrot.slane %v4371, %v4378
        %v4381 = vunpack.c.l.s4 1934713408
        %v4382 = vunpack.c.0.s8 %v4381
        %v4383 = vlaneseq
        %v4384 = vshrl.u32 %v4383, 7
        %v4385 = vsub.s32 %v4382, %v4384
        %v4386 = vrot.slane %v4372, %v4385
        %v4387 = vcombine.low %v4362, %v4370
        %v4388 = vcombine.high %v4362, %v4370
        %v4390 = vunpack.c.l.s4 1934713408
        %v4391 = vunpack.c.0.s8 %v4390
        %v4392 = vlaneseq
        %v4393 = vshrl.u32 %v4392, 7
        %v4394 = vsub.s32 %v4391, %v4393
        %v4395 = vrot.slane %v4387, %v4394
        %v4397 = vunpack.c.l.s4 1934713408
        %v4398 = vunpack.c.0.s8 %v4397
        %v4399 = vlaneseq
        %v4400 = vshrl.u32 %v4399, 7
        %v4401 = vsub.s32 %v4398, %v4400
        %v4402 = vrot.slane %v4388, %v4401
        %v4403 = vcombine.low %v4379, %v4395
        %v4404 = vcombine.high %v4379, %v4395
        %v4405 = vcombine.low %v4386, %v4402
        %v4406 = vcombine.high %v4386, %v4402
        %4408 = vrot.lane.b32.xlu0 %v4404, 8
        %v4409 = vpop.permute.xlu0 %4408
        %4412 = vrot.lane.b32.xlu0 %v4405, 16
        %v4413 = vpop.permute.xlu0 %4412
        %4416 = vrot.lane.b32.xlu0 %v4406, 24
        %v4417 = vpop.permute.xlu0 %4416
        %v4419 = vsel %vm1092, %v4403, %v4409
        %v4420 = vsel %vm2213, %v4419, %v4413
        %v4421 = vsel %vm2215, %v4420, %v4417
        %v4422 = vpack.c.bf16 %v4421, %v4421
        %s4423 = scalar_lea.vmem %s3, 16
        %v4424 = vld [vmem:[%s4423] sm:$0xf]
        %v4425 = vld [vmem:[%s4423 + $0x4] sm:$0xf]
        %v4426 = vld [vmem:[%s4423 + $0x8] sm:$0xf]
        %v4427 = vld [vmem:[%s4423 + $0xc] sm:$0xf]
        %v4428 = vlaneseq
        %v4429 = vshrl.u32 %v4428, 7
        %v4430 = vsub.s32 0, %v4429
        %v4431 = vrot.slane %v2505, %v4430
        %v4436 = vunpack.c.l.b16 %v4424
        %v4437 = vunpack.c.l.b16 %v4425
        %v4438 = vunpack.c.l.b16 %v4426
        %v4439 = vunpack.c.l.b16 %v4427
        %v4440 = vpack.c.b16 %v4437, %v4436
        %v4441 = vpack.c.b16 %v4439, %v4438
        %v4445 = vsel %vm314, %v4422, 0
        %4447 = vmatprep.subr.bf16.mxu0 0
        %4448 = vmatpush1.bf16.msra.mxu0 %v4440
        %4449 = vmatprep.subr.bf16.mxu0 0
        %4450 = vmatpush1.bf16.msra.mxu0 %v4441
        %4451 = vmatprep.subr.bf16.mxu0 0
        %4452 = vmatpush1.bf16.msra.mxu0 0
        %4453 = vmatprep.subr.bf16.mxu0 0
        %4454 = vmatpush1.bf16.msra.mxu0 0
        %4455 = vmatprep.subr.bf16.mxu0 0
        %4456 = vmatpush1.bf16.msra.mxu0 0
        %4457 = vmatprep.subr.bf16.mxu0 0
        %4458 = vmatpush1.bf16.msra.mxu0 0
        %4459 = vmatprep.subr.bf16.mxu0 0
        %4460 = vmatpush1.bf16.msra.mxu0 0
        %4461 = vmatprep.subr.bf16.mxu0 0
        %4462 = vmatpush1.bf16.msra.mxu0 0
        %4463 = vmatprep.subr.bf16.mxu0 0
        %4464 = vmatpush1.bf16.msra.mxu0 0
        %4465 = vmatprep.subr.bf16.mxu0 0
        %4466 = vmatpush1.bf16.msra.mxu0 0
        %4467 = vmatprep.subr.bf16.mxu0 0
        %4468 = vmatpush1.bf16.msra.mxu0 0
        %4469 = vmatprep.subr.bf16.mxu0 0
        %4470 = vmatpush1.bf16.msra.mxu0 0
        %4471 = vmatprep.subr.bf16.mxu0 0
        %4472 = vmatpush1.bf16.msra.mxu0 0
        %4473 = vmatprep.subr.bf16.mxu0 0
        %4474 = vmatpush1.bf16.msra.mxu0 0
        %4475 = vmatprep.subr.bf16.mxu0 0
        %4476 = vmatpush1.bf16.msra.mxu0 0
        %4477 = vmatprep.subr.bf16.mxu0 0
        %4478 = vmatpush1.bf16.msra.mxu0 0
        %4479 = vmatprep.mubr.bf16.mxu0 0
        %4480 = vmatmul.mubr.bf16.gmra.mrb[0].mxu0 %v4445
        %v4481 = vpop.f32.mrb[0].mxu0
        %v4482 = vadd.f32 %v4431, %v4481
        %v4483 = vpop.f32.mrb[0].mxu0
        %v4484 = vpop.f32.mrb[0].mxu0
        %v4485 = vpop.f32.mrb[0].mxu0
        %4486 = vdwg.mxu0
        %v4487 = vadd.f32 %v4482, %v2503
        %v4488 = vsel %vm314, %v4487, 0.0
        %4489 = vadd.xlane.f32.xlu0 %v4488
        %v4490 = vpop.xlane.xlu0 %4489
        %v4491 = vmul.f32 %v4490, %v2285
        %v4492 = vsub.f32 %v4487, %v4491
        %v4493 = vmul.f32 %v4492, %v4492
        %v4494 = vsel %vm314, %v4493, 0.0
        %4495 = vadd.xlane.f32.xlu0 %v4494
        %v4496 = vpop.xlane.xlu0 %4495
        %v4497 = vmul.f32 %v4496, %v2285
        %v4498 = vadd.f32 %v4497, 1e-05
        %v4499 = vrsqrt.pop %v4498
        %v4500 = vmul.f32 %v4492, %v4499
        %v4501 = vlaneseq
        %v4502 = vshrl.u32 %v4501, 7
        %v4503 = vsub.s32 1, %v4502
        %v4504 = vrot.slane %v2505, %v4503
        %v4505 = vmul.f32 %v4500, %v4504
        %v4506 = vlaneseq
        %v4507 = vshrl.u32 %v4506, 7
        %v4508 = vsub.s32 2, %v4507
        %v4509 = vrot.slane %v2505, %v4508
        %v4510 = vadd.f32 %v4505, %v4509
        %v4511 = vpack.c.bf16 %v4510, %v4510
        %s4512 = scalar_lea.vmem %s4, 16
        %v4513 = vld [vmem:[%s4512] sm:$0xf]
        %v4514 = vld [vmem:[%s4512 + $0x4] sm:$0xf]
        %v4515 = vld [vmem:[%s4512 + $0x8] sm:$0xf]
        %v4516 = vld [vmem:[%s4512 + $0xc] sm:$0xf]
        %v4517 = vlaneseq
        %v4518 = vshrl.u32 %v4517, 7
        %v4519 = vsub.s32 5, %v4518
        %v4520 = vrot.slane %v2505, %v4519
        %v4525 = vunpack.c.l.b16 %v4513
        %v4526 = vunpack.c.l.b16 %v4514
        %v4527 = vunpack.c.l.b16 %v4515
        %v4528 = vunpack.c.l.b16 %v4516
        %v4529 = vpack.c.b16 %v4526, %v4525
        %v4530 = vpack.c.b16 %v4528, %v4527
        %v4534 = vsel %vm314, %v4511, 0
        %4536 = vmatprep.subr.bf16.mxu0 0
        %4537 = vmatpush1.bf16.msra.mxu0 %v4529
        %4538 = vmatprep.subr.bf16.mxu0 0
        %4539 = vmatpush1.bf16.msra.mxu0 %v4530
        %4540 = vmatprep.subr.bf16.mxu0 0
        %4541 = vmatpush1.bf16.msra.mxu0 0
        %4542 = vmatprep.subr.bf16.mxu0 0
        %4543 = vmatpush1.bf16.msra.mxu0 0
        %4544 = vmatprep.subr.bf16.mxu0 0
        %4545 = vmatpush1.bf16.msra.mxu0 0
        %4546 = vmatprep.subr.bf16.mxu0 0
        %4547 = vmatpush1.bf16.msra.mxu0 0
        %4548 = vmatprep.subr.bf16.mxu0 0
        %4549 = vmatpush1.bf16.msra.mxu0 0
        %4550 = vmatprep.subr.bf16.mxu0 0
        %4551 = vmatpush1.bf16.msra.mxu0 0
        %4552 = vmatprep.subr.bf16.mxu0 0
        %4553 = vmatpush1.bf16.msra.mxu0 0
        %4554 = vmatprep.subr.bf16.mxu0 0
        %4555 = vmatpush1.bf16.msra.mxu0 0
        %4556 = vmatprep.subr.bf16.mxu0 0
        %4557 = vmatpush1.bf16.msra.mxu0 0
        %4558 = vmatprep.subr.bf16.mxu0 0
        %4559 = vmatpush1.bf16.msra.mxu0 0
        %4560 = vmatprep.subr.bf16.mxu0 0
        %4561 = vmatpush1.bf16.msra.mxu0 0
        %4562 = vmatprep.subr.bf16.mxu0 0
        %4563 = vmatpush1.bf16.msra.mxu0 0
        %4564 = vmatprep.subr.bf16.mxu0 0
        %4565 = vmatpush1.bf16.msra.mxu0 0
        %4566 = vmatprep.subr.bf16.mxu0 0
        %4567 = vmatpush1.bf16.msra.mxu0 0
        %4568 = vmatprep.mubr.bf16.mxu0 0
        %4569 = vmatmul.mubr.bf16.gmra.mrb[0].mxu0 %v4534
        %v4570 = vpop.f32.mrb[0].mxu0
        %v4571 = vadd.f32 %v4520, %v4570
        %v4572 = vpop.f32.mrb[0].mxu0
        %v4573 = vpop.f32.mrb[0].mxu0
        %v4574 = vpop.f32.mrb[0].mxu0
        %4575 = vdwg.mxu0
        %v4576 = vmax.f32 %v4571, 0.0
        %v4577 = vpack.c.bf16 %v4576, %v4576
        %s4578 = scalar_lea.vmem %s5, 64
        %v4579 = vld [vmem:[%s4578] sm:$0xf]
        %v4580 = vld [vmem:[%s4578 + $0x4] sm:$0xf]
        %v4581 = vld [vmem:[%s4578 + $0x8] sm:$0xf]
        %v4582 = vld [vmem:[%s4578 + $0xc] sm:$0xf]
        %v4583 = vld [vmem:[%s4578 + $0x10] sm:$0xf]
        %v4584 = vld [vmem:[%s4578 + $0x14] sm:$0xf]
        %v4585 = vld [vmem:[%s4578 + $0x18] sm:$0xf]
        %v4586 = vld [vmem:[%s4578 + $0x1c] sm:$0xf]
        %v4587 = vld [vmem:[%s4578 + $0x20] sm:$0xf]
        %v4588 = vld [vmem:[%s4578 + $0x24] sm:$0xf]
        %v4589 = vld [vmem:[%s4578 + $0x28] sm:$0xf]
        %v4590 = vld [vmem:[%s4578 + $0x2c] sm:$0xf]
        %v4591 = vld [vmem:[%s4578 + $0x30] sm:$0xf]
        %v4592 = vld [vmem:[%s4578 + $0x34] sm:$0xf]
        %v4593 = vld [vmem:[%s4578 + $0x38] sm:$0xf]
        %v4594 = vld [vmem:[%s4578 + $0x3c] sm:$0xf]
        %v4595 = vlaneseq
        %v4596 = vshrl.u32 %v4595, 7
        %v4597 = vsub.s32 6, %v4596
        %v4598 = vrot.slane %v2505, %v4597
        %v4615 = vunpack.c.l.b16 %v4579
        %v4616 = vunpack.c.l.b16 %v4580
        %v4617 = vunpack.c.l.b16 %v4581
        %v4618 = vunpack.c.l.b16 %v4582
        %v4619 = vunpack.c.l.b16 %v4583
        %v4620 = vunpack.c.l.b16 %v4584
        %v4621 = vunpack.c.l.b16 %v4585
        %v4622 = vunpack.c.l.b16 %v4586
        %v4623 = vunpack.c.l.b16 %v4587
        %v4624 = vunpack.c.l.b16 %v4588
        %v4625 = vunpack.c.l.b16 %v4589
        %v4626 = vunpack.c.l.b16 %v4590
        %v4627 = vunpack.c.l.b16 %v4591
        %v4628 = vunpack.c.l.b16 %v4592
        %v4629 = vunpack.c.l.b16 %v4593
        %v4630 = vunpack.c.l.b16 %v4594
        %v4631 = vpack.c.b16 %v4616, %v4615
        %v4632 = vpack.c.b16 %v4618, %v4617
        %v4633 = vpack.c.b16 %v4620, %v4619
        %v4634 = vpack.c.b16 %v4622, %v4621
        %v4635 = vpack.c.b16 %v4624, %v4623
        %v4636 = vpack.c.b16 %v4626, %v4625
        %v4637 = vpack.c.b16 %v4628, %v4627
        %v4638 = vpack.c.b16 %v4630, %v4629
        %4647 = vmatprep.subr.bf16.mxu0 0
        %4648 = vmatpush1.bf16.msra.mxu0 %v4631
        %4649 = vmatprep.subr.bf16.mxu0 0
        %4650 = vmatpush1.bf16.msra.mxu0 %v4632
        %4651 = vmatprep.subr.bf16.mxu0 0
        %4652 = vmatpush1.bf16.msra.mxu0 %v4633
        %4653 = vmatprep.subr.bf16.mxu0 0
        %4654 = vmatpush1.bf16.msra.mxu0 %v4634
        %4655 = vmatprep.subr.bf16.mxu0 0
        %4656 = vmatpush1.bf16.msra.mxu0 %v4635
        %4657 = vmatprep.subr.bf16.mxu0 0
        %4658 = vmatpush1.bf16.msra.mxu0 %v4636
        %4659 = vmatprep.subr.bf16.mxu0 0
        %4660 = vmatpush1.bf16.msra.mxu0 %v4637
        %4661 = vmatprep.subr.bf16.mxu0 0
        %4662 = vmatpush1.bf16.msra.mxu0 %v4638
        %4663 = vmatprep.subr.bf16.mxu0 0
        %4664 = vmatpush1.bf16.msra.mxu0 0
        %4665 = vmatprep.subr.bf16.mxu0 0
        %4666 = vmatpush1.bf16.msra.mxu0 0
        %4667 = vmatprep.subr.bf16.mxu0 0
        %4668 = vmatpush1.bf16.msra.mxu0 0
        %4669 = vmatprep.subr.bf16.mxu0 0
        %4670 = vmatpush1.bf16.msra.mxu0 0
        %4671 = vmatprep.subr.bf16.mxu0 0
        %4672 = vmatpush1.bf16.msra.mxu0 0
        %4673 = vmatprep.subr.bf16.mxu0 0
        %4674 = vmatpush1.bf16.msra.mxu0 0
        %4675 = vmatprep.subr.bf16.mxu0 0
        %4676 = vmatpush1.bf16.msra.mxu0 0
        %4677 = vmatprep.subr.bf16.mxu0 0
        %4678 = vmatpush1.bf16.msra.mxu0 0
        %4679 = vmatprep.mubr.bf16.mxu0 0
        %4680 = vmatmul.mubr.bf16.gmra.mrb[0].mxu0 %v4577
        %v4681 = vpop.f32.mrb[0].mxu0
        %v4682 = vadd.f32 %v4598, %v4681
        %v4683 = vpop.f32.mrb[0].mxu0
        %v4684 = vpop.f32.mrb[0].mxu0
        %v4685 = vpop.f32.mrb[0].mxu0
        %4686 = vdwg.mxu0
        %v4687 = vadd.f32 %v4682, %v4510
        %v4688 = vsel %vm314, %v4687, 0.0
        %4689 = vadd.xlane.f32.xlu0 %v4688
        %v4690 = vpop.xlane.xlu0 %4689
        %v4691 = vmul.f32 %v4690, %v2285
        %v4692 = vsub.f32 %v4687, %v4691
        %v4693 = vmul.f32 %v4692, %v4692
        %v4694 = vsel %vm314, %v4693, 0.0
        %4695 = vadd.xlane.f32.xlu0 %v4694
        %v4696 = vpop.xlane.xlu0 %4695
        %v4697 = vmul.f32 %v4696, %v2285
        %v4698 = vadd.f32 %v4697, 1e-05
        %v4699 = vrsqrt.pop %v4698
        %v4700 = vmul.f32 %v4692, %v4699
        %v4701 = vlaneseq
        %v4702 = vshrl.u32 %v4701, 7
        %v4703 = vsub.s32 3, %v4702
        %v4704 = vrot.slane %v2505, %v4703
        %v4705 = vmul.f32 %v4700, %v4704
        %v4706 = vlaneseq
        %v4707 = vshrl.u32 %v4706, 7
        %v4708 = vsub.s32 4, %v4707
        %v4709 = vrot.slane %v2505, %v4708
        %v4710 = vadd.f32 %v4705, %v4709
        %4711 = vst.msk [vmem:[%s282] sm:$0xff] %vm314, %v4710
        %s4712 = sand.u32 %s186, 1
        %s4713 = scalar_lea.sflag [#allocation3], %s4712
        %s4714 = sand.u32 %s186, 1
        %s4715 = smul.addr %s4714, 8
        %s4716 = scalar_lea.vmem [#allocation2], %s4715
        // Predicated region
        $region49: #{tpu_custom_call.1} parent=47 // pred_check
          %p4717 = pneg %p196
        $region50: #{tpu_custom_call.1} parent=47 // pred_check_branch
          %4719 = sbr.rel (%p4717) target = $region52
        $region51: #{tpu_custom_call.1} parent=47 // pred_region
          %s4721 = ssub.s32 128, 128
          %4722 = vsyncadd %s4713, %s4721
          %s4723 = smul.addr %s21, 128
          %s4724 = scalar_lea.hbm %s7, %s4723
          %s4726 = sshll.u32 %s4716, 4
          %s4727 = int_to_ptr.vmem [resolvable:$true] %s4726
          %4729 = dma.vmem_to_hbm [thread:$0]  %s4727, 128, %s4724, %s4713
        $region52: #{tpu_custom_call.1} parent=47 // pred_fallthru
          _
      $region48: #{tpu_custom_call.1} parent=5 // pred_fallthru
        _
      %p4730 = scmp.le.s32.totalorder 2, %s16
      // Predicated region
      $region53: #{tpu_custom_call.1} parent=5 // pred_check
        %p4731 = pneg %p4730
      $region54: #{tpu_custom_call.1} parent=5 // pred_check_branch
        %4733 = sbr.rel (%p4731) target = $region56
      $region55: #{tpu_custom_call.1} parent=5 // pred_region
        %s4734 = ssub.s32 %s16, 2
        // Predicated region
        $region57: #{tpu_custom_call.1} parent=55 // pred_check
          %p4735 = pneg %p202
        $region58: #{tpu_custom_call.1} parent=55 // pred_check_branch
          %4737 = sbr.rel (%p4735) target = $region60
        $region59: #{tpu_custom_call.1} parent=55 // pred_region
          %s4738 = sand.u32 %s187, 1
          %s4739 = scalar_lea.sflag [#allocation3], %s4738
          %s4740 = sand.u32 %s187, 1
          %s4741 = smul.addr %s4740, 8
          %s4742 = scalar_lea.vmem [#allocation2], %s4741
          %4743 = dma.done %s4739, 128
        $region60: #{tpu_custom_call.1} parent=55 // pred_fallthru
          _
      $region56: #{tpu_custom_call.1} parent=5 // pred_fallthru
        _
    $region6: #{tpu_custom_call.1} parent=1 // loop_footer
      %s20 = sadd.s32 1, %s16
    $region7: #{tpu_custom_call.1} parent=1 // loop_footer_branch
      %15 = sbr.rel target = $region3
    $region8: #{tpu_custom_call.1} parent=1 // loop_exit
      _
    %4744 = vsyncpa [#allocation3], 1
    %s4745 = scalar_lea.sflag [#allocation3], 1
    %4746 = vsyncpa %s4745, 1

</llo_original>
